<compile_context>
chip_gen: v7x
topology: tpu7x:2x2x1
jax: 0.10.0
libtpu: 0.0.40
codegen_flags: <defaults>
</compile_context>

<pallas_src>
import functools
import math

import jax
import jax.numpy as jnp
from jax.experimental import pallas as pl
from jax.experimental.pallas import tpu as pltpu

D_FFN = 2048          # hardcoded in the PyTorch FeedForwardNet
D_HEAD = 64           # hardcoded in Multi_Head_Attn
LN_EPS = 1e-5
MASK_VALUE = -1e7     # matches masked_fill_(-10000000.0)


def _round_up(x, m):
    return ((x + m - 1) // m) * m


def _layernorm(y, g, b):
    mean = jnp.mean(y, axis=-1, keepdims=True)
    var = jnp.mean((y - mean) ** 2, axis=-1, keepdims=True)   # biased, like PyTorch
    return (y - mean) * jax.lax.rsqrt(var + LN_EPS) * g + b


# ------------------------- Multi-head attention block ------------------------
def _attn_kernel(x_ref, wq_ref, wk_ref, wv_ref, wo_ref, g_ref, b_ref, o_ref,
                 *, num_heads):
    x = x_ref[0]                                               # (S, D) f32

    q = jnp.dot(x, wq_ref[...], preferred_element_type=jnp.float32)
    k = jnp.dot(x, wk_ref[...], preferred_element_type=jnp.float32)
    v = jnp.dot(x, wv_ref[...], preferred_element_type=jnp.float32)

    s = x.shape[0]
    row = jax.lax.broadcasted_iota(jnp.int32, (s, s), 0)
    col = jax.lax.broadcasted_iota(jnp.int32, (s, s), 1)
    causal_mask = col > row                                    # strict upper tri

    scale = 1.0 / math.sqrt(D_HEAD)
    head_outs = []
    for h in range(num_heads):                                 # static, small
        sl = slice(h * D_HEAD, (h + 1) * D_HEAD)
        qh, kh, vh = q[:, sl], k[:, sl], v[:, sl]
        # scores = qh @ kh.T  (NT matmul, no materialized transpose)
        scores = jax.lax.dot_general(
            qh, kh, (((1,), (1,)), ((), ())),
            preferred_element_type=jnp.float32) * scale
        scores = jnp.where(causal_mask, jnp.float32(MASK_VALUE), scores)
        scores = scores - jnp.max(scores, axis=-1, keepdims=True)
        p = jnp.exp(scores)
        p = p / jnp.sum(p, axis=-1, keepdims=True)
        head_outs.append(jnp.dot(p, vh, preferred_element_type=jnp.float32))
    attn = jnp.concatenate(head_outs, axis=-1)                 # (S, H*64)

    y = jnp.dot(attn, wo_ref[...], preferred_element_type=jnp.float32) + x
    o_ref[0] = _layernorm(y, g_ref[...], b_ref[...]).astype(o_ref.dtype)


def multi_head_attention_block(x, wq, wk, wv, wo, gamma, beta, *, num_heads):
    """x: (B, S, d_model). Weights are (in, out). Returns (B, S, d_model) f32."""
    B, S, D = x.shape
    d_attn = wq.shape[1]
    g2 = gamma.reshape(1, D).astype(jnp.float32)
    b2 = beta.reshape(1, D).astype(jnp.float32)

    kernel = functools.partial(_attn_kernel, num_heads=num_heads)
    return pl.pallas_call(
        kernel,
        out_shape=jax.ShapeDtypeStruct((B, S, D), jnp.float32),
        grid_spec=pltpu.PrefetchScalarGridSpec(
            num_scalar_prefetch=0,
            grid=(B,),
            in_specs=[
                pl.BlockSpec((1, S, D), lambda b: (b, 0, 0)),     # x (per batch)
                pl.BlockSpec((D, d_attn), lambda b: (0, 0)),      # Wq (VMEM-resident)
                pl.BlockSpec((D, d_attn), lambda b: (0, 0)),      # Wk
                pl.BlockSpec((D, d_attn), lambda b: (0, 0)),      # Wv
                pl.BlockSpec((d_attn, D), lambda b: (0, 0)),      # Wo
                pl.BlockSpec((1, D), lambda b: (0, 0)),           # gamma
                pl.BlockSpec((1, D), lambda b: (0, 0)),           # beta
            ],
            out_specs=pl.BlockSpec((1, S, D), lambda b: (b, 0, 0)),
        ),
        compiler_params=pltpu.CompilerParams(
            dimension_semantics=("parallel",),
        ),
    )(x.astype(jnp.float32), wq.astype(jnp.float32), wk.astype(jnp.float32),
      wv.astype(jnp.float32), wo.astype(jnp.float32), g2, b2)


# ------------------------------- FFN block -----------------------------------
def _ffn_kernel(x_ref, w1_ref, w2_ref, g_ref, b_ref, o_ref):
    x = x_ref[...]                                              # (tm, D) f32
    # h = relu(x @ W1): bf16 inputs, f32 MXU accumulation
    h = jnp.dot(x.astype(jnp.bfloat16), w1_ref[...],
                preferred_element_type=jnp.float32)
    h = jnp.maximum(h, 0.0)
    # y = h @ W2 + x (f32 residual)
    y = jnp.dot(h.astype(jnp.bfloat16), w2_ref[...],
                preferred_element_type=jnp.float32)
    y = y + x
    o_ref[...] = _layernorm(y, g_ref[...], b_ref[...]).astype(o_ref.dtype)


def feed_forward_net(x, w1, w2, gamma, beta, *, tm=256):
    """x: (B, S, d_model). w1: (d_model, d_ffn). w2: (d_ffn, d_model)."""
    B, S, d_model = x.shape
    d_ffn = w1.shape[1]
    N = B * S

    x2 = x.reshape(N, d_model).astype(jnp.float32)

    tm_eff = min(tm, _round_up(N, 8))
    n_pad = _round_up(N, tm_eff)
    if n_pad != N:
        x2 = jnp.pad(x2, ((0, n_pad - N), (0, 0)))

    w1_bf = w1.astype(jnp.bfloat16)                  # halve weight HBM traffic
    w2_bf = w2.astype(jnp.bfloat16)
    g2 = gamma.reshape(1, d_model).astype(jnp.float32)
    b2 = beta.reshape(1, d_model).astype(jnp.float32)

    cost = pl.CostEstimate(
        flops=4 * n_pad * d_model * d_ffn,
        transcendentals=n_pad,
        bytes_accessed=(x2.size * 4 + w1_bf.size * 2 + w2_bf.size * 2
                        + n_pad * d_model * 4),
    )

    out = pl.pallas_call(
        _ffn_kernel,
        out_shape=jax.ShapeDtypeStruct((n_pad, d_model), jnp.float32),
        grid_spec=pltpu.PrefetchScalarGridSpec(
            num_scalar_prefetch=0,
            grid=(n_pad // tm_eff,),
            in_specs=[
                pl.BlockSpec((tm_eff, d_model), lambda i: (i, 0)),   # x tile
                pl.BlockSpec((d_model, d_ffn), lambda i: (0, 0)),    # W1 (VMEM-resident)
                pl.BlockSpec((d_ffn, d_model), lambda i: (0, 0)),    # W2 (VMEM-resident)
                pl.BlockSpec((1, d_model), lambda i: (0, 0)),        # gamma
                pl.BlockSpec((1, d_model), lambda i: (0, 0)),        # beta
            ],
            out_specs=pl.BlockSpec((tm_eff, d_model), lambda i: (i, 0)),
        ),
        compiler_params=pltpu.CompilerParams(
            dimension_semantics=("parallel",),
        ),
        cost_estimate=cost,
    )(x2, w1_bf, w2_bf, g2, b2)

    return out[:N].reshape(B, S, d_model)


# --------------------------- Final vocab projection ---------------------------
def _linear_kernel(x_ref, w_ref, b_ref, o_ref):
    o_ref[...] = (jnp.dot(x_ref[...], w_ref[...],
                          preferred_element_type=jnp.float32)
                  + b_ref[...]).astype(o_ref.dtype)


def final_linear(x, w, b, *, tm=256):
    """x: (B, S, d_model). w: (d_model, vocab). b: (vocab,)."""
    B, S, D = x.shape
    V = w.shape[1]
    N = B * S
    x2 = x.reshape(N, D).astype(jnp.float32)

    tm_eff = min(tm, _round_up(N, 8))
    n_pad = _round_up(N, tm_eff)
    if n_pad != N:
        x2 = jnp.pad(x2, ((0, n_pad - N), (0, 0)))

    out = pl.pallas_call(
        _linear_kernel,
        out_shape=jax.ShapeDtypeStruct((n_pad, V), jnp.float32),
        grid_spec=pltpu.PrefetchScalarGridSpec(
            num_scalar_prefetch=0,
            grid=(n_pad // tm_eff,),
            in_specs=[
                pl.BlockSpec((tm_eff, D), lambda i: (i, 0)),
                pl.BlockSpec((D, V), lambda i: (0, 0)),
                pl.BlockSpec((1, V), lambda i: (0, 0)),
            ],
            out_specs=pl.BlockSpec((tm_eff, V), lambda i: (i, 0)),
        ),
        compiler_params=pltpu.CompilerParams(
            dimension_semantics=("parallel",),
        ),
    )(x2, w.astype(jnp.float32), b.reshape(1, V).astype(jnp.float32))

    return out[:N].reshape(B, S, V)


# --------------------- Embedding + positional encoding (JAX) ------------------
# TODO(synk): token gather + sinusoidal PE are left in plain JAX (tiny,
# data-dependent gather with no dense-tile Pallas benefit).
def embed_and_position(token_ids, emb_table):
    S = token_ids.shape[1]
    D = emb_table.shape[1]
    x = jnp.take(emb_table, token_ids, axis=0)                # (B, S, D)
    pos = jnp.arange(S, dtype=jnp.float32).reshape(-1, 1)
    exponent = jnp.arange(0, D, 2, dtype=jnp.float32).reshape(1, -1) / D
    angles = pos / jnp.power(10000.0, exponent)               # (S, D//2)
    pe = jnp.stack([jnp.sin(angles), jnp.cos(angles)], axis=-1).reshape(S, D)
    return x.astype(jnp.float32) + pe[None]


# ------------------------------- Full model -----------------------------------
def poem_model_forward(token_ids, params, *, num_heads):
    x = embed_and_position(token_ids, params["embedding"])
    for layer in params["layers"]:
        x = multi_head_attention_block(
            x, layer["wq"], layer["wk"], layer["wv"], layer["wo"],
            layer["ln1_g"], layer["ln1_b"], num_heads=num_heads)
        x = feed_forward_net(
            x, layer["w1"], layer["w2"], layer["ln2_g"], layer["ln2_b"])
    return final_linear(x, params["w_out"], params["b_out"])


# ------------------------------ Pure-JAX reference ----------------------------
def reference_forward(token_ids, params, *, num_heads):
    hi = jax.lax.Precision.HIGHEST
    x = embed_and_position(token_ids, params["embedding"])
    B, S, D = x.shape
    for layer in params["layers"]:
        q = jnp.dot(x, layer["wq"], precision=hi)
        k = jnp.dot(x, layer["wk"], precision=hi)
        v = jnp.dot(x, layer["wv"], precision=hi)
        q = q.reshape(B, S, num_heads, D_HEAD).transpose(0, 2, 1, 3)
        k = k.reshape(B, S, num_heads, D_HEAD).transpose(0, 2, 1, 3)
        v = v.reshape(B, S, num_heads, D_HEAD).transpose(0, 2, 1, 3)
        scores = jnp.einsum("bhqd,bhkd->bhqk", q, k, precision=hi) / math.sqrt(D_HEAD)
        mask = jnp.triu(jnp.ones((S, S), dtype=bool), k=1)
        scores = jnp.where(mask, MASK_VALUE, scores)
        p = jax.nn.softmax(scores, axis=-1)
        attn = jnp.einsum("bhqk,bhkd->bhqd", p, v, precision=hi)
        attn = attn.transpose(0, 2, 1, 3).reshape(B, S, num_heads * D_HEAD)
        x = _layernorm(jnp.dot(attn, layer["wo"], precision=hi) + x,
                       layer["ln1_g"], layer["ln1_b"])
        # FFN mirrors kernel numerics (bf16 matmul inputs, f32 accumulation)
        h = jnp.maximum(
            jnp.dot(x.astype(jnp.bfloat16), layer["w1"].astype(jnp.bfloat16),
                    preferred_element_type=jnp.float32), 0.0)
        y = jnp.dot(h.astype(jnp.bfloat16), layer["w2"].astype(jnp.bfloat16),
                    preferred_element_type=jnp.float32) + x
        x = _layernorm(y, layer["ln2_g"], layer["ln2_b"])
    return jnp.dot(x, params["w_out"], precision=hi) + params["b_out"]


# ------------------------------ Param construction ----------------------------
def build_params(key, vocab_size, num_heads, d_model, num_layers):
    d_attn = num_heads * D_HEAD
    keys = jax.random.split(key, 2 + num_layers)
    emb = jax.random.normal(keys[0], (vocab_size, d_model), jnp.float32) * 0.02
    w_out = (jax.random.normal(keys[1], (d_model, vocab_size), jnp.float32)
             / math.sqrt(d_model))
    b_out = jnp.zeros((vocab_size,), jnp.float32)
    layers = []
    for l in range(num_layers):
        k = jax.random.split(keys[2 + l], 6)
        layers.append(dict(
            wq=jax.random.normal(k[0], (d_model, d_attn), jnp.float32) / math.sqrt(d_model),
            wk=jax.random.normal(k[1], (d_model, d_attn), jnp.float32) / math.sqrt(d_model),
            wv=jax.random.normal(k[2], (d_model, d_attn), jnp.float32) / math.sqrt(d_model),
            wo=jax.random.normal(k[3], (d_attn, d_model), jnp.float32) / math.sqrt(d_attn),
            ln1_g=jnp.ones((d_model,), jnp.float32),
            ln1_b=jnp.zeros((d_model,), jnp.float32),
            w1=jax.random.normal(k[4], (d_model, D_FFN), jnp.float32) / math.sqrt(d_model),
            w2=jax.random.normal(k[5], (D_FFN, d_model), jnp.float32) / math.sqrt(D_FFN),
            ln2_g=jnp.ones((d_model,), jnp.float32),
            ln2_b=jnp.zeros((d_model,), jnp.float32),
        ))
    return dict(embedding=emb, w_out=w_out, b_out=b_out, layers=layers)


if __name__ == "__main__":
    # Small shapes consistent with the module: 2 heads x 64 -> d_model=128.
    vocab_size, num_heads, d_model, num_layers = 256, 2, 128, 2
    B, S = 2, 8

    key = jax.random.PRNGKey(0)
    kp, kt = jax.random.split(key)
    params = build_params(kp, vocab_size, num_heads, d_model, num_layers)
    token_ids = jax.random.randint(kt, (B, S), 0, vocab_size, dtype=jnp.int32)

    fwd = jax.jit(functools.partial(poem_model_forward, num_heads=num_heads))
    logits = jax.block_until_ready(fwd(token_ids, params))

    ref = reference_forward(token_ids, params, num_heads=num_heads)
    assert logits.shape == (B, S, vocab_size)
    assert jnp.allclose(logits, ref, atol=2e-2, rtol=2e-2), float(
        jnp.max(jnp.abs(logits - ref)))

    print("KERNEL_OK")
</pallas_src>

<mosaic_0001>
module attributes {stable_mosaic.version = 11 : i64} {
  func.func @_ffn_kernel(%arg0: i32, %arg1: memref<16x128xf32, #tpu.memory_space<vmem>>, %arg2: memref<128x2048xbf16, #tpu.memory_space<vmem>>, %arg3: memref<2048x128xbf16, #tpu.memory_space<vmem>>, %arg4: memref<1x128xf32, #tpu.memory_space<vmem>>, %arg5: memref<1x128xf32, #tpu.memory_space<vmem>>, %arg6: memref<16x128xf32, #tpu.memory_space<vmem>>) attributes {dimension_semantics = [#tpu.dimension_semantics<parallel>], iteration_bounds = array<i64: 1>, scalar_prefetch = 0 : i64, scratch_operands = 0 : i64, tpu.core_type = #tpu.core_type<tc>, window_params = [{transform_indices = @transform_0, window_bounds = array<i64: 16, 128>}, {pipeline_mode = #tpu.pipeline_mode<synchronous>, transform_indices = @transform_1, window_bounds = array<i64: 128, 2048>}, {pipeline_mode = #tpu.pipeline_mode<synchronous>, transform_indices = @transform_2, window_bounds = array<i64: 2048, 128>}, {pipeline_mode = #tpu.pipeline_mode<synchronous>, transform_indices = @transform_3, window_bounds = array<i64: 1, 128>}, {pipeline_mode = #tpu.pipeline_mode<synchronous>, transform_indices = @transform_4, window_bounds = array<i64: 1, 128>}, {transform_indices = @transform_5, window_bounds = array<i64: 16, 128>}]} {
    %c0 = arith.constant 0 : index
    %c0_0 = arith.constant 0 : index
    %0 = vector.load %arg1[%c0, %c0_0] : memref<16x128xf32, #tpu.memory_space<vmem>>, vector<16x128xf32>
    %1 = arith.truncf %0 : vector<16x128xf32> to vector<16x128xbf16>
    %c0_1 = arith.constant 0 : index
    %c0_2 = arith.constant 0 : index
    %2 = vector.load %arg2[%c0_1, %c0_2] : memref<128x2048xbf16, #tpu.memory_space<vmem>>, vector<128x2048xbf16>
    %cst = arith.constant dense<0.000000e+00> : vector<16x2048xf32>
    %3 = tpu.matmul %1, %2, %cst {dimension_numbers = #tpu.dot_dimension_numbers<[1], [0], [0], [1], [0, 0, 1, 1], [], []>} : vector<16x128xbf16>, vector<128x2048xbf16>, vector<16x2048xf32> -> vector<16x2048xf32>
    %cst_3 = arith.constant 0.000000e+00 : f32
    %4 = vector.broadcast %cst_3 : f32 to vector<16x2048xf32>
    %5 = arith.maximumf %3, %4 : vector<16x2048xf32>
    %6 = arith.truncf %5 : vector<16x2048xf32> to vector<16x2048xbf16>
    %c0_4 = arith.constant 0 : index
    %c0_5 = arith.constant 0 : index
    %7 = vector.load %arg3[%c0_4, %c0_5] : memref<2048x128xbf16, #tpu.memory_space<vmem>>, vector<2048x128xbf16>
    %cst_6 = arith.constant dense<0.000000e+00> : vector<16x128xf32>
    %8 = tpu.matmul %6, %7, %cst_6 {dimension_numbers = #tpu.dot_dimension_numbers<[1], [0], [0], [1], [0, 0, 1, 1], [], []>} : vector<16x2048xbf16>, vector<2048x128xbf16>, vector<16x128xf32> -> vector<16x128xf32>
    %9 = arith.addf %8, %0 : vector<16x128xf32>
    %c0_7 = arith.constant 0 : index
    %c0_8 = arith.constant 0 : index
    %10 = vector.load %arg4[%c0_7, %c0_8] : memref<1x128xf32, #tpu.memory_space<vmem>>, vector<1x128xf32>
    %c0_9 = arith.constant 0 : index
    %c0_10 = arith.constant 0 : index
    %11 = vector.load %arg5[%c0_9, %c0_10] : memref<1x128xf32, #tpu.memory_space<vmem>>, vector<1x128xf32>
    %cst_11 = arith.constant dense<0.000000e+00> : vector<16xf32>
    %12 = vector.multi_reduction <add>, %9, %cst_11 [1] : vector<16x128xf32> to vector<16xf32>
    %13 = vector.shape_cast %12 : vector<16xf32> to vector<16x1xf32>
    %cst_12 = arith.constant 1.280000e+02 : f32
    %14 = vector.broadcast %cst_12 : f32 to vector<16x1xf32>
    %15 = arith.divf %13, %14 : vector<16x1xf32>
    %16 = vector.broadcast %15 : vector<16x1xf32> to vector<16x128xf32>
    %17 = arith.subf %9, %16 : vector<16x128xf32>
    %18 = arith.mulf %17, %17 : vector<16x128xf32>
    %cst_13 = arith.constant dense<0.000000e+00> : vector<16xf32>
    %19 = vector.multi_reduction <add>, %18, %cst_13 [1] : vector<16x128xf32> to vector<16xf32>
    %20 = vector.shape_cast %19 : vector<16xf32> to vector<16x1xf32>
    %cst_14 = arith.constant 1.280000e+02 : f32
    %21 = vector.broadcast %cst_14 : f32 to vector<16x1xf32>
    %22 = arith.divf %20, %21 : vector<16x1xf32>
    %23 = vector.broadcast %15 : vector<16x1xf32> to vector<16x128xf32>
    %24 = arith.subf %9, %23 : vector<16x128xf32>
    %cst_15 = arith.constant 9.99999974E-6 : f32
    %25 = vector.broadcast %cst_15 : f32 to vector<16x1xf32>
    %26 = arith.addf %22, %25 : vector<16x1xf32>
    %27 = math.rsqrt %26 : vector<16x1xf32>
    %28 = vector.broadcast %27 : vector<16x1xf32> to vector<16x128xf32>
    %29 = arith.mulf %24, %28 : vector<16x128xf32>
    %30 = vector.broadcast %10 : vector<1x128xf32> to vector<16x128xf32>
    %31 = arith.mulf %29, %30 : vector<16x128xf32>
    %32 = vector.broadcast %11 : vector<1x128xf32> to vector<16x128xf32>
    %33 = arith.addf %31, %32 : vector<16x128xf32>
    %c0_16 = arith.constant 0 : index
    %c0_17 = arith.constant 0 : index
    %34 = vector.load %arg6[%c0_16, %c0_17] : memref<16x128xf32, #tpu.memory_space<vmem>>, vector<16x128xf32>
    tpu.vector_store %arg6[%c0_16, %c0_17], %33 {strides = array<i32>} : memref<16x128xf32, #tpu.memory_space<vmem>>, vector<16x128xf32>,
    return
  }
  func.func @transform_0(%arg0: i32) -> (i32, i32) {
    %c0_i32 = arith.constant 0 : i32
    %c0_i32_0 = arith.constant 0 : i32
    return %arg0, %c0_i32 : i32, i32
  }
  func.func @transform_1(%arg0: i32) -> (i32, i32) {
    %c0_i32 = arith.constant 0 : i32
    %c0_i32_0 = arith.constant 0 : i32
    %c0_i32_1 = arith.constant 0 : i32
    return %c0_i32, %c0_i32_0 : i32, i32
  }
  func.func @transform_2(%arg0: i32) -> (i32, i32) {
    %c0_i32 = arith.constant 0 : i32
    %c0_i32_0 = arith.constant 0 : i32
    %c0_i32_1 = arith.constant 0 : i32
    return %c0_i32, %c0_i32_0 : i32, i32
  }
  func.func @transform_3(%arg0: i32) -> (i32, i32) {
    %c0_i32 = arith.constant 0 : i32
    %c0_i32_0 = arith.constant 0 : i32
    %c0_i32_1 = arith.constant 0 : i32
    return %c0_i32, %c0_i32_0 : i32, i32
  }
  func.func @transform_4(%arg0: i32) -> (i32, i32) {
    %c0_i32 = arith.constant 0 : i32
    %c0_i32_0 = arith.constant 0 : i32
    %c0_i32_1 = arith.constant 0 : i32
    return %c0_i32, %c0_i32_0 : i32, i32
  }
  func.func @transform_5(%arg0: i32) -> (i32, i32) {
    %c0_i32 = arith.constant 0 : i32
    %c0_i32_0 = arith.constant 0 : i32
    return %arg0, %c0_i32 : i32, i32
  }
}

module attributes {stable_mosaic.version = 11 : i64} {
  func.func @_attn_kernel(%arg0: i32, %arg1: memref<1x8x128xf32, #tpu.memory_space<vmem>>, %arg2: memref<128x128xf32, #tpu.memory_space<vmem>>, %arg3: memref<128x128xf32, #tpu.memory_space<vmem>>, %arg4: memref<128x128xf32, #tpu.memory_space<vmem>>, %arg5: memref<128x128xf32, #tpu.memory_space<vmem>>, %arg6: memref<1x128xf32, #tpu.memory_space<vmem>>, %arg7: memref<1x128xf32, #tpu.memory_space<vmem>>, %arg8: memref<1x8x128xf32, #tpu.memory_space<vmem>>) attributes {dimension_semantics = [#tpu.dimension_semantics<parallel>], iteration_bounds = array<i64: 2>, scalar_prefetch = 0 : i64, scratch_operands = 0 : i64, tpu.core_type = #tpu.core_type<tc>, window_params = [{transform_indices = @transform_0, window_bounds = array<i64: 1, 8, 128>}, {pipeline_mode = #tpu.pipeline_mode<synchronous>, transform_indices = @transform_1, window_bounds = array<i64: 128, 128>}, {pipeline_mode = #tpu.pipeline_mode<synchronous>, transform_indices = @transform_2, window_bounds = array<i64: 128, 128>}, {pipeline_mode = #tpu.pipeline_mode<synchronous>, transform_indices = @transform_3, window_bounds = array<i64: 128, 128>}, {pipeline_mode = #tpu.pipeline_mode<synchronous>, transform_indices = @transform_4, window_bounds = array<i64: 128, 128>}, {pipeline_mode = #tpu.pipeline_mode<synchronous>, transform_indices = @transform_5, window_bounds = array<i64: 1, 128>}, {pipeline_mode = #tpu.pipeline_mode<synchronous>, transform_indices = @transform_6, window_bounds = array<i64: 1, 128>}, {transform_indices = @transform_7, window_bounds = array<i64: 1, 8, 128>}]} {
    %c0 = arith.constant 0 : index
    %c0_0 = arith.constant 0 : index
    %c0_1 = arith.constant 0 : index
    %0 = vector.load %arg1[%c0, %c0_0, %c0_1] : memref<1x8x128xf32, #tpu.memory_space<vmem>>, vector<1x8x128xf32>
    %1 = vector.shape_cast %0 : vector<1x8x128xf32> to vector<8x128xf32>
    %c0_2 = arith.constant 0 : index
    %c0_3 = arith.constant 0 : index
    %2 = vector.load %arg2[%c0_2, %c0_3] : memref<128x128xf32, #tpu.memory_space<vmem>>, vector<128x128xf32>
    %cst = arith.constant dense<0.000000e+00> : vector<8x128xf32>
    %3 = tpu.matmul %1, %2, %cst {dimension_numbers = #tpu.dot_dimension_numbers<[1], [0], [0], [1], [0, 0, 1, 1], [], []>} : vector<8x128xf32>, vector<128x128xf32>, vector<8x128xf32> -> vector<8x128xf32>
    %c0_4 = arith.constant 0 : index
    %c0_5 = arith.constant 0 : index
    %4 = vector.load %arg3[%c0_4, %c0_5] : memref<128x128xf32, #tpu.memory_space<vmem>>, vector<128x128xf32>
    %cst_6 = arith.constant dense<0.000000e+00> : vector<8x128xf32>
    %5 = tpu.matmul %1, %4, %cst_6 {dimension_numbers = #tpu.dot_dimension_numbers<[1], [0], [0], [1], [0, 0, 1, 1], [], []>} : vector<8x128xf32>, vector<128x128xf32>, vector<8x128xf32> -> vector<8x128xf32>
    %c0_7 = arith.constant 0 : index
    %c0_8 = arith.constant 0 : index
    %6 = vector.load %arg4[%c0_7, %c0_8] : memref<128x128xf32, #tpu.memory_space<vmem>>, vector<128x128xf32>
    %cst_9 = arith.constant dense<0.000000e+00> : vector<8x128xf32>
    %7 = tpu.matmul %1, %6, %cst_9 {dimension_numbers = #tpu.dot_dimension_numbers<[1], [0], [0], [1], [0, 0, 1, 1], [], []>} : vector<8x128xf32>, vector<128x128xf32>, vector<8x128xf32> -> vector<8x128xf32>
    %8 = tpu.iota {dimensions = array<i32: 0>} : vector<8x8xi32>
    %9 = tpu.iota {dimensions = array<i32: 1>} : vector<8x8xi32>
    %10 = arith.cmpi sgt, %9, %8 : vector<8x8xi32>
    %11 = vector.extract_strided_slice %3 {offsets = [0, 0], sizes = [8, 64], strides = [1, 1]} : vector<8x128xf32> to vector<8x64xf32>
    %12 = vector.extract_strided_slice %5 {offsets = [0, 0], sizes = [8, 64], strides = [1, 1]} : vector<8x128xf32> to vector<8x64xf32>
    %13 = vector.extract_strided_slice %7 {offsets = [0, 0], sizes = [8, 64], strides = [1, 1]} : vector<8x128xf32> to vector<8x64xf32>
    %cst_10 = arith.constant dense<0.000000e+00> : vector<8x8xf32>
    %14 = tpu.matmul %11, %12, %cst_10 {dimension_numbers = #tpu.dot_dimension_numbers<[1], [1], [0], [0], [0, 0, 1, 0], [], []>} : vector<8x64xf32>, vector<8x64xf32>, vector<8x8xf32> -> vector<8x8xf32>
    %cst_11 = arith.constant 1.250000e-01 : f32
    %15 = vector.broadcast %cst_11 : f32 to vector<8x8xf32>
    %16 = arith.mulf %14, %15 : vector<8x8xf32>
    %cst_12 = arith.constant -1.000000e+07 : f32
    %17 = vector.broadcast %cst_12 : f32 to vector<8x8xf32>
    %18 = arith.select %10, %17, %16 : vector<8x8xi1>, vector<8x8xf32>
    %cst_13 = arith.constant dense<0xFF800000> : vector<8xf32>
    %19 = vector.multi_reduction <maximumf>, %18, %cst_13 [1] : vector<8x8xf32> to vector<8xf32>
    %20 = vector.shape_cast %19 : vector<8xf32> to vector<8x1xf32>
    %21 = vector.broadcast %20 : vector<8x1xf32> to vector<8x8xf32>
    %22 = arith.subf %18, %21 : vector<8x8xf32>
    %23 = math.exp %22 : vector<8x8xf32>
    %cst_14 = arith.constant dense<0.000000e+00> : vector<8xf32>
    %24 = vector.multi_reduction <add>, %23, %cst_14 [1] : vector<8x8xf32> to vector<8xf32>
    %25 = vector.shape_cast %24 : vector<8xf32> to vector<8x1xf32>
    %26 = vector.broadcast %25 : vector<8x1xf32> to vector<8x8xf32>
    %27 = arith.divf %23, %26 : vector<8x8xf32>
    %cst_15 = arith.constant dense<0.000000e+00> : vector<8x64xf32>
    %28 = tpu.matmul %27, %13, %cst_15 {dimension_numbers = #tpu.dot_dimension_numbers<[1], [0], [0], [1], [0, 0, 1, 1], [], []>} : vector<8x8xf32>, vector<8x64xf32>, vector<8x64xf32> -> vector<8x64xf32>
    %29 = vector.extract_strided_slice %3 {offsets = [0, 64], sizes = [8, 64], strides = [1, 1]} : vector<8x128xf32> to vector<8x64xf32>
    %30 = vector.extract_strided_slice %5 {offsets = [0, 64], sizes = [8, 64], strides = [1, 1]} : vector<8x128xf32> to vector<8x64xf32>
    %31 = vector.extract_strided_slice %7 {offsets = [0, 64], sizes = [8, 64], strides = [1, 1]} : vector<8x128xf32> to vector<8x64xf32>
    %cst_16 = arith.constant dense<0.000000e+00> : vector<8x8xf32>
    %32 = tpu.matmul %29, %30, %cst_16 {dimension_numbers = #tpu.dot_dimension_numbers<[1], [1], [0], [0], [0, 0, 1, 0], [], []>} : vector<8x64xf32>, vector<8x64xf32>, vector<8x8xf32> -> vector<8x8xf32>
    %cst_17 = arith.constant 1.250000e-01 : f32
    %33 = vector.broadcast %cst_17 : f32 to vector<8x8xf32>
    %34 = arith.mulf %32, %33 : vector<8x8xf32>
    %cst_18 = arith.constant -1.000000e+07 : f32
    %35 = vector.broadcast %cst_18 : f32 to vector<8x8xf32>
    %36 = arith.select %10, %35, %34 : vector<8x8xi1>, vector<8x8xf32>
    %cst_19 = arith.constant dense<0xFF800000> : vector<8xf32>
    %37 = vector.multi_reduction <maximumf>, %36, %cst_19 [1] : vector<8x8xf32> to vector<8xf32>
    %38 = vector.shape_cast %37 : vector<8xf32> to vector<8x1xf32>
    %39 = vector.broadcast %38 : vector<8x1xf32> to vector<8x8xf32>
    %40 = arith.subf %36, %39 : vector<8x8xf32>
    %41 = math.exp %40 : vector<8x8xf32>
    %cst_20 = arith.constant dense<0.000000e+00> : vector<8xf32>
    %42 = vector.multi_reduction <add>, %41, %cst_20 [1] : vector<8x8xf32> to vector<8xf32>
    %43 = vector.shape_cast %42 : vector<8xf32> to vector<8x1xf32>
    %44 = vector.broadcast %43 : vector<8x1xf32> to vector<8x8xf32>
    %45 = arith.divf %41, %44 : vector<8x8xf32>
    %cst_21 = arith.constant dense<0.000000e+00> : vector<8x64xf32>
    %46 = tpu.matmul %45, %31, %cst_21 {dimension_numbers = #tpu.dot_dimension_numbers<[1], [0], [0], [1], [0, 0, 1, 1], [], []>} : vector<8x8xf32>, vector<8x64xf32>, vector<8x64xf32> -> vector<8x64xf32>
    %47 = tpu.concatenate %28, %46 in 1 : vector<8x64xf32>, vector<8x64xf32> -> vector<8x128xf32>
    %c0_22 = arith.constant 0 : index
    %c0_23 = arith.constant 0 : index
    %48 = vector.load %arg5[%c0_22, %c0_23] : memref<128x128xf32, #tpu.memory_space<vmem>>, vector<128x128xf32>
    %cst_24 = arith.constant dense<0.000000e+00> : vector<8x128xf32>
    %49 = tpu.matmul %47, %48, %cst_24 {dimension_numbers = #tpu.dot_dimension_numbers<[1], [0], [0], [1], [0, 0, 1, 1], [], []>} : vector<8x128xf32>, vector<128x128xf32>, vector<8x128xf32> -> vector<8x128xf32>
    %50 = arith.addf %49, %1 : vector<8x128xf32>
    %c0_25 = arith.constant 0 : index
    %c0_26 = arith.constant 0 : index
    %51 = vector.load %arg6[%c0_25, %c0_26] : memref<1x128xf32, #tpu.memory_space<vmem>>, vector<1x128xf32>
    %c0_27 = arith.constant 0 : index
    %c0_28 = arith.constant 0 : index
    %52 = vector.load %arg7[%c0_27, %c0_28] : memref<1x128xf32, #tpu.memory_space<vmem>>, vector<1x128xf32>
    %cst_29 = arith.constant dense<0.000000e+00> : vector<8xf32>
    %53 = vector.multi_reduction <add>, %50, %cst_29 [1] : vector<8x128xf32> to vector<8xf32>
    %54 = vector.shape_cast %53 : vector<8xf32> to vector<8x1xf32>
    %cst_30 = arith.constant 1.280000e+02 : f32
    %55 = vector.broadcast %cst_30 : f32 to vector<8x1xf32>
    %56 = arith.divf %54, %55 : vector<8x1xf32>
    %57 = vector.broadcast %56 : vector<8x1xf32> to vector<8x128xf32>
    %58 = arith.subf %50, %57 : vector<8x128xf32>
    %59 = arith.mulf %58, %58 : vector<8x128xf32>
    %cst_31 = arith.constant dense<0.000000e+00> : vector<8xf32>
    %60 = vector.multi_reduction <add>, %59, %cst_31 [1] : vector<8x128xf32> to vector<8xf32>
    %61 = vector.shape_cast %60 : vector<8xf32> to vector<8x1xf32>
    %cst_32 = arith.constant 1.280000e+02 : f32
    %62 = vector.broadcast %cst_32 : f32 to vector<8x1xf32>
    %63 = arith.divf %61, %62 : vector<8x1xf32>
    %64 = vector.broadcast %56 : vector<8x1xf32> to vector<8x128xf32>
    %65 = arith.subf %50, %64 : vector<8x128xf32>
    %cst_33 = arith.constant 9.99999974E-6 : f32
    %66 = vector.broadcast %cst_33 : f32 to vector<8x1xf32>
    %67 = arith.addf %63, %66 : vector<8x1xf32>
    %68 = math.rsqrt %67 : vector<8x1xf32>
    %69 = vector.broadcast %68 : vector<8x1xf32> to vector<8x128xf32>
    %70 = arith.mulf %65, %69 : vector<8x128xf32>
    %71 = vector.broadcast %51 : vector<1x128xf32> to vector<8x128xf32>
    %72 = arith.mulf %70, %71 : vector<8x128xf32>
    %73 = vector.broadcast %52 : vector<1x128xf32> to vector<8x128xf32>
    %74 = arith.addf %72, %73 : vector<8x128xf32>
    %c0_34 = arith.constant 0 : index
    %c0_35 = arith.constant 0 : index
    %c0_36 = arith.constant 0 : index
    %75 = vector.load %arg8[%c0_34, %c0_35, %c0_36] : memref<1x8x128xf32, #tpu.memory_space<vmem>>, vector<1x8x128xf32>
    %76 = vector.shape_cast %75 : vector<1x8x128xf32> to vector<8x128xf32>
    %77 = vector.shape_cast %74 : vector<8x128xf32> to vector<1x8x128xf32>
    tpu.vector_store %arg8[%c0_34, %c0_35, %c0_36], %77 {strides = array<i32>} : memref<1x8x128xf32, #tpu.memory_space<vmem>>, vector<1x8x128xf32>,
    return
  }
  func.func @transform_0(%arg0: i32) -> (i32, i32, i32) {
    %c0_i32 = arith.constant 0 : i32
    %c0_i32_0 = arith.constant 0 : i32
    %c0_i32_1 = arith.constant 0 : i32
    return %arg0, %c0_i32, %c0_i32_0 : i32, i32, i32
  }
  func.func @transform_1(%arg0: i32) -> (i32, i32) {
    %c0_i32 = arith.constant 0 : i32
    %c0_i32_0 = arith.constant 0 : i32
    %c0_i32_1 = arith.constant 0 : i32
    return %c0_i32, %c0_i32_0 : i32, i32
  }
  func.func @transform_2(%arg0: i32) -> (i32, i32) {
    %c0_i32 = arith.constant 0 : i32
    %c0_i32_0 = arith.constant 0 : i32
    %c0_i32_1 = arith.constant 0 : i32
    return %c0_i32, %c0_i32_0 : i32, i32
  }
  func.func @transform_3(%arg0: i32) -> (i32, i32) {
    %c0_i32 = arith.constant 0 : i32
    %c0_i32_0 = arith.constant 0 : i32
    %c0_i32_1 = arith.constant 0 : i32
    return %c0_i32, %c0_i32_0 : i32, i32
  }
  func.func @transform_4(%arg0: i32) -> (i32, i32) {
    %c0_i32 = arith.constant 0 : i32
    %c0_i32_0 = arith.constant 0 : i32
    %c0_i32_1 = arith.constant 0 : i32
    return %c0_i32, %c0_i32_0 : i32, i32
  }
  func.func @transform_5(%arg0: i32) -> (i32, i32) {
    %c0_i32 = arith.constant 0 : i32
    %c0_i32_0 = arith.constant 0 : i32
    %c0_i32_1 = arith.constant 0 : i32
    return %c0_i32, %c0_i32_0 : i32, i32
  }
  func.func @transform_6(%arg0: i32) -> (i32, i32) {
    %c0_i32 = arith.constant 0 : i32
    %c0_i32_0 = arith.constant 0 : i32
    %c0_i32_1 = arith.constant 0 : i32
    return %c0_i32, %c0_i32_0 : i32, i32
  }
  func.func @transform_7(%arg0: i32) -> (i32, i32, i32) {
    %c0_i32 = arith.constant 0 : i32
    %c0_i32_0 = arith.constant 0 : i32
    %c0_i32_1 = arith.constant 0 : i32
    return %arg0, %c0_i32, %c0_i32_0 : i32, i32, i32
  }
}

module attributes {stable_mosaic.version = 11 : i64} {
  func.func @_linear_kernel(%arg0: i32, %arg1: memref<16x128xf32, #tpu.memory_space<vmem>>, %arg2: memref<128x256xf32, #tpu.memory_space<vmem>>, %arg3: memref<1x256xf32, #tpu.memory_space<vmem>>, %arg4: memref<16x256xf32, #tpu.memory_space<vmem>>) attributes {dimension_semantics = [#tpu.dimension_semantics<parallel>], iteration_bounds = array<i64: 1>, scalar_prefetch = 0 : i64, scratch_operands = 0 : i64, tpu.core_type = #tpu.core_type<tc>, window_params = [{transform_indices = @transform_0, window_bounds = array<i64: 16, 128>}, {pipeline_mode = #tpu.pipeline_mode<synchronous>, transform_indices = @transform_1, window_bounds = array<i64: 128, 256>}, {pipeline_mode = #tpu.pipeline_mode<synchronous>, transform_indices = @transform_2, window_bounds = array<i64: 1, 256>}, {transform_indices = @transform_3, window_bounds = array<i64: 16, 256>}]} {
    %c0 = arith.constant 0 : index
    %c0_0 = arith.constant 0 : index
    %0 = vector.load %arg1[%c0, %c0_0] : memref<16x128xf32, #tpu.memory_space<vmem>>, vector<16x128xf32>
    %c0_1 = arith.constant 0 : index
    %c0_2 = arith.constant 0 : index
    %1 = vector.load %arg2[%c0_1, %c0_2] : memref<128x256xf32, #tpu.memory_space<vmem>>, vector<128x256xf32>
    %cst = arith.constant dense<0.000000e+00> : vector<16x256xf32>
    %2 = tpu.matmul %0, %1, %cst {dimension_numbers = #tpu.dot_dimension_numbers<[1], [0], [0], [1], [0, 0, 1, 1], [], []>} : vector<16x128xf32>, vector<128x256xf32>, vector<16x256xf32> -> vector<16x256xf32>
    %c0_3 = arith.constant 0 : index
    %c0_4 = arith.constant 0 : index
    %3 = vector.load %arg3[%c0_3, %c0_4] : memref<1x256xf32, #tpu.memory_space<vmem>>, vector<1x256xf32>
    %4 = vector.broadcast %3 : vector<1x256xf32> to vector<16x256xf32>
    %5 = arith.addf %2, %4 : vector<16x256xf32>
    %c0_5 = arith.constant 0 : index
    %c0_6 = arith.constant 0 : index
    %6 = vector.load %arg4[%c0_5, %c0_6] : memref<16x256xf32, #tpu.memory_space<vmem>>, vector<16x256xf32>
    tpu.vector_store %arg4[%c0_5, %c0_6], %5 {strides = array<i32>} : memref<16x256xf32, #tpu.memory_space<vmem>>, vector<16x256xf32>,
    return
  }
  func.func @transform_0(%arg0: i32) -> (i32, i32) {
    %c0_i32 = arith.constant 0 : i32
    %c0_i32_0 = arith.constant 0 : i32
    return %arg0, %c0_i32 : i32, i32
  }
  func.func @transform_1(%arg0: i32) -> (i32, i32) {
    %c0_i32 = arith.constant 0 : i32
    %c0_i32_0 = arith.constant 0 : i32
    %c0_i32_1 = arith.constant 0 : i32
    return %c0_i32, %c0_i32_0 : i32, i32
  }
  func.func @transform_2(%arg0: i32) -> (i32, i32) {
    %c0_i32 = arith.constant 0 : i32
    %c0_i32_0 = arith.constant 0 : i32
    %c0_i32_1 = arith.constant 0 : i32
    return %c0_i32, %c0_i32_0 : i32, i32
  }
  func.func @transform_3(%arg0: i32) -> (i32, i32) {
    %c0_i32 = arith.constant 0 : i32
    %c0_i32_0 = arith.constant 0 : i32
    return %arg0, %c0_i32 : i32, i32
  }
}

</mosaic_0001>

<llo_original>
// kernel: poem_model_forward.5
$region0: #{poem_model_forward.5}
  #allocation0 [shape = 'u32[]', space=smem, size = 0x4, offset = 0x4, fixed_abs, tag = 'smem constant byte address 0x4 - core index']
  #allocation1 [shape = 'u32[144,128]{1,0:T(1,128)}', space=vmem, size = 0x12000, scoped, tag = 'internal scratch']
  %s0 = inlined_call_operand.vmem [shape: f32[2,8,128], index: 0, kind: input, shape index: {}]
  %s1 = inlined_call_operand.vmem [shape: f32[128,128], index: 1, kind: input, shape index: {}]
  %s2 = inlined_call_operand.vmem [shape: f32[128,128], index: 2, kind: input, shape index: {}]
  %s3 = inlined_call_operand.vmem [shape: f32[128,128], index: 3, kind: input, shape index: {}]
  %s4 = inlined_call_operand.vmem [shape: f32[128,128], index: 4, kind: input, shape index: {}]
  %s5 = inlined_call_operand.vmem [shape: f32[1,128], index: 5, kind: input, shape index: {}]
  %s6 = inlined_call_operand.vmem [shape: f32[1,128], index: 6, kind: input, shape index: {}]
  %s7 = inlined_call_operand.vmem [shape: f32[2,8,128], index: 7, kind: output, shape index: {}]
  %s8 = sld [smem:[#allocation0]]
  $region61: #{poem_model_forward.5} parent=0
    _
  %s10 = ssub.s32 1, %s8
  %s11 = scalar_select 0, %s10, %s8
  loop: start=0, step=1, limit=4
  $region2: #{poem_model_forward.5} parent=0 // loop_pre_header
    _
  $region3: #{poem_model_forward.5} parent=0 // loop_header
    %s13 = sphi 0, %s17
    %p14 = scmp.ge.s32.totalorder %s13, 4
    %s23 = sphi 0, %s25
    %s26 = sphi 0, %s23
    %s27 = sphi 0, %s26
    %s43 = sphi 0, %s27
    %s47 = sphi 0, %s47
    %s49 = sphi 0, %s47
    %s50 = sphi 0, %s49
    %s64 = sphi 0, %s50
    %s68 = sphi 0, %s68
    %s70 = sphi 0, %s68
    %s71 = sphi 0, %s70
    %s85 = sphi 0, %s71
    %s89 = sphi 0, %s89
    %s91 = sphi 0, %s89
    %s92 = sphi 0, %s91
    %s106 = sphi 0, %s92
    %s110 = sphi 0, %s110
    %s112 = sphi 0, %s110
    %s113 = sphi 0, %s112
    %s127 = sphi 0, %s113
    %s131 = sphi 0, %s131
    %s133 = sphi 0, %s131
    %s134 = sphi 0, %s133
    %s148 = sphi 0, %s134
    %s152 = sphi 0, %s152
    %s154 = sphi 0, %s152
    %s155 = sphi 0, %s154
    %s169 = sphi 0, %s155
    %s175 = sphi 0, %s177
    %s178 = sphi 0, %s175
    %s179 = sphi 0, %s178
    %s195 = sphi 0, %s179
  $region4: #{poem_model_forward.5} parent=0 // loop_header_branch
    %16 = sbr.rel (%p14) target = $region8
  $region5: #{poem_model_forward.5} parent=0 // loop_body
    %s18 = ssub.s32 %s13, 1
    %s19 = ssub.s32 %s13, 2
    %s20 = sadd.s32 %s13, 1
    %s21 = ssub.s32 %s13, %s20
    %p22 = scmp.eq.s32.totalorder %s21, 0
    %s24 = sadd.s32 %s23, 1
    %s25 = scalar_select %p22, %s23, %s24
    %p28 = pneg %p22
    %p29 = scmp.eq.s32.totalorder %s13, 1
    %p30 = por %p28, %p29
    %p31 = scmp.ne.s32.totalorder %s23, %s26
    %p32 = scmp.eq.s32.totalorder %s13, 0
    %p33 = por %p31, %p32
    %p34 = scmp.ne.s32.totalorder %s23, %s26
    %p35 = scmp.eq.s32.totalorder %s18, 1
    %p36 = por %p34, %p35
    %p37 = scmp.ne.s32.totalorder %s26, %s27
    %p38 = scmp.eq.s32.totalorder %s18, 0
    %p39 = por %p37, %p38
    %p40 = scmp.ne.s32.totalorder %s26, %s27
    %p41 = scmp.eq.s32.totalorder %s19, 1
    %p42 = por %p40, %p41
    %p44 = scmp.ne.s32.totalorder %s27, %s43
    %p45 = scmp.eq.s32.totalorder %s19, 0
    %p46 = por %p44, %p45
    %s48 = sadd.s32 %s47, 1
    %p51 = scmp.eq.s32.totalorder %s13, 1
    %p52 = scmp.ne.s32.totalorder %s47, %s49
    %p53 = scmp.eq.s32.totalorder %s13, 0
    %p54 = por %p52, %p53
    %p55 = scmp.ne.s32.totalorder %s47, %s49
    %p56 = scmp.eq.s32.totalorder %s18, 1
    %p57 = por %p55, %p56
    %p58 = scmp.ne.s32.totalorder %s49, %s50
    %p59 = scmp.eq.s32.totalorder %s18, 0
    %p60 = por %p58, %p59
    %p61 = scmp.ne.s32.totalorder %s49, %s50
    %p62 = scmp.eq.s32.totalorder %s19, 1
    %p63 = por %p61, %p62
    %p65 = scmp.ne.s32.totalorder %s50, %s64
    %p66 = scmp.eq.s32.totalorder %s19, 0
    %p67 = por %p65, %p66
    %s69 = sadd.s32 %s68, 1
    %p72 = scmp.eq.s32.totalorder %s13, 1
    %p73 = scmp.ne.s32.totalorder %s68, %s70
    %p74 = scmp.eq.s32.totalorder %s13, 0
    %p75 = por %p73, %p74
    %p76 = scmp.ne.s32.totalorder %s68, %s70
    %p77 = scmp.eq.s32.totalorder %s18, 1
    %p78 = por %p76, %p77
    %p79 = scmp.ne.s32.totalorder %s70, %s71
    %p80 = scmp.eq.s32.totalorder %s18, 0
    %p81 = por %p79, %p80
    %p82 = scmp.ne.s32.totalorder %s70, %s71
    %p83 = scmp.eq.s32.totalorder %s19, 1
    %p84 = por %p82, %p83
    %p86 = scmp.ne.s32.totalorder %s71, %s85
    %p87 = scmp.eq.s32.totalorder %s19, 0
    %p88 = por %p86, %p87
    %s90 = sadd.s32 %s89, 1
    %p93 = scmp.eq.s32.totalorder %s13, 1
    %p94 = scmp.ne.s32.totalorder %s89, %s91
    %p95 = scmp.eq.s32.totalorder %s13, 0
    %p96 = por %p94, %p95
    %p97 = scmp.ne.s32.totalorder %s89, %s91
    %p98 = scmp.eq.s32.totalorder %s18, 1
    %p99 = por %p97, %p98
    %p100 = scmp.ne.s32.totalorder %s91, %s92
    %p101 = scmp.eq.s32.totalorder %s18, 0
    %p102 = por %p100, %p101
    %p103 = scmp.ne.s32.totalorder %s91, %s92
    %p104 = scmp.eq.s32.totalorder %s19, 1
    %p105 = por %p103, %p104
    %p107 = scmp.ne.s32.totalorder %s92, %s106
    %p108 = scmp.eq.s32.totalorder %s19, 0
    %p109 = por %p107, %p108
    %s111 = sadd.s32 %s110, 1
    %p114 = scmp.eq.s32.totalorder %s13, 1
    %p115 = scmp.ne.s32.totalorder %s110, %s112
    %p116 = scmp.eq.s32.totalorder %s13, 0
    %p117 = por %p115, %p116
    %p118 = scmp.ne.s32.totalorder %s110, %s112
    %p119 = scmp.eq.s32.totalorder %s18, 1
    %p120 = por %p118, %p119
    %p121 = scmp.ne.s32.totalorder %s112, %s113
    %p122 = scmp.eq.s32.totalorder %s18, 0
    %p123 = por %p121, %p122
    %p124 = scmp.ne.s32.totalorder %s112, %s113
    %p125 = scmp.eq.s32.totalorder %s19, 1
    %p126 = por %p124, %p125
    %p128 = scmp.ne.s32.totalorder %s113, %s127
    %p129 = scmp.eq.s32.totalorder %s19, 0
    %p130 = por %p128, %p129
    %s132 = sadd.s32 %s131, 1
    %p135 = scmp.eq.s32.totalorder %s13, 1
    %p136 = scmp.ne.s32.totalorder %s131, %s133
    %p137 = scmp.eq.s32.totalorder %s13, 0
    %p138 = por %p136, %p137
    %p139 = scmp.ne.s32.totalorder %s131, %s133
    %p140 = scmp.eq.s32.totalorder %s18, 1
    %p141 = por %p139, %p140
    %p142 = scmp.ne.s32.totalorder %s133, %s134
    %p143 = scmp.eq.s32.totalorder %s18, 0
    %p144 = por %p142, %p143
    %p145 = scmp.ne.s32.totalorder %s133, %s134
    %p146 = scmp.eq.s32.totalorder %s19, 1
    %p147 = por %p145, %p146
    %p149 = scmp.ne.s32.totalorder %s134, %s148
    %p150 = scmp.eq.s32.totalorder %s19, 0
    %p151 = por %p149, %p150
    %s153 = sadd.s32 %s152, 1
    %p156 = scmp.eq.s32.totalorder %s13, 1
    %p157 = scmp.ne.s32.totalorder %s152, %s154
    %p158 = scmp.eq.s32.totalorder %s13, 0
    %p159 = por %p157, %p158
    %p160 = scmp.ne.s32.totalorder %s152, %s154
    %p161 = scmp.eq.s32.totalorder %s18, 1
    %p162 = por %p160, %p161
    %p163 = scmp.ne.s32.totalorder %s154, %s155
    %p164 = scmp.eq.s32.totalorder %s18, 0
    %p165 = por %p163, %p164
    %p166 = scmp.ne.s32.totalorder %s154, %s155
    %p167 = scmp.eq.s32.totalorder %s19, 1
    %p168 = por %p166, %p167
    %p170 = scmp.ne.s32.totalorder %s155, %s169
    %p171 = scmp.eq.s32.totalorder %s19, 0
    %p172 = por %p170, %p171
    %s173 = ssub.s32 %s13, %s20
    %p174 = scmp.eq.s32.totalorder %s173, 0
    %s176 = sadd.s32 %s175, 1
    %s177 = scalar_select %p174, %s175, %s176
    %p180 = pneg %p174
    %p181 = scmp.eq.s32.totalorder %s13, 1
    %p182 = por %p180, %p181
    %p183 = scmp.ne.s32.totalorder %s175, %s178
    %p184 = scmp.eq.s32.totalorder %s13, 0
    %p185 = por %p183, %p184
    %p186 = scmp.ne.s32.totalorder %s175, %s178
    %p187 = scmp.eq.s32.totalorder %s18, 1
    %p188 = por %p186, %p187
    %p189 = scmp.ne.s32.totalorder %s178, %s179
    %p190 = scmp.eq.s32.totalorder %s18, 0
    %p191 = por %p189, %p190
    %p192 = scmp.ne.s32.totalorder %s178, %s179
    %p193 = scmp.eq.s32.totalorder %s19, 1
    %p194 = por %p192, %p193
    %p196 = scmp.ne.s32.totalorder %s179, %s195
    %p197 = scmp.eq.s32.totalorder %s19, 0
    %p198 = por %p196, %p197
    %p199 = scmp.le.s32.totalorder 1, %s13
    %p200 = scmp.lt.s32.totalorder %s13, 3
    %p201 = pnand %p199, %p200
    %p202 = pneg %p201
    // Predicated region
    $region9: #{poem_model_forward.5} parent=5 // pred_check
      _
    $region10: #{poem_model_forward.5} parent=5 // pred_check_branch
      %204 = sbr.rel (%p201) target = $region12
    $region11: #{poem_model_forward.5} parent=5 // pred_region
      %s205 = ssub.s32 %s13, 1
      // Predicated region
      $region13: #{poem_model_forward.5} parent=11 // pred_check
        %p206 = pneg %p60
      $region14: #{poem_model_forward.5} parent=11 // pred_check_branch
        %208 = sbr.rel (%p206) target = $region16
      $region15: #{poem_model_forward.5} parent=11 // pred_region
        _
      $region16: #{poem_model_forward.5} parent=11 // pred_fallthru
        _
      // Predicated region
      $region17: #{poem_model_forward.5} parent=11 // pred_check
        %p209 = pneg %p81
      $region18: #{poem_model_forward.5} parent=11 // pred_check_branch
        %211 = sbr.rel (%p209) target = $region20
      $region19: #{poem_model_forward.5} parent=11 // pred_region
        _
      $region20: #{poem_model_forward.5} parent=11 // pred_fallthru
        _
      // Predicated region
      $region21: #{poem_model_forward.5} parent=11 // pred_check
        %p212 = pneg %p102
      $region22: #{poem_model_forward.5} parent=11 // pred_check_branch
        %214 = sbr.rel (%p212) target = $region24
      $region23: #{poem_model_forward.5} parent=11 // pred_region
        _
      $region24: #{poem_model_forward.5} parent=11 // pred_fallthru
        _
      // Predicated region
      $region25: #{poem_model_forward.5} parent=11 // pred_check
        %p215 = pneg %p123
      $region26: #{poem_model_forward.5} parent=11 // pred_check_branch
        %217 = sbr.rel (%p215) target = $region28
      $region27: #{poem_model_forward.5} parent=11 // pred_region
        _
      $region28: #{poem_model_forward.5} parent=11 // pred_fallthru
        _
      // Predicated region
      $region29: #{poem_model_forward.5} parent=11 // pred_check
        %p218 = pneg %p144
      $region30: #{poem_model_forward.5} parent=11 // pred_check_branch
        %220 = sbr.rel (%p218) target = $region32
      $region31: #{poem_model_forward.5} parent=11 // pred_region
        _
      $region32: #{poem_model_forward.5} parent=11 // pred_fallthru
        _
      // Predicated region
      $region33: #{poem_model_forward.5} parent=11 // pred_check
        %p221 = pneg %p165
      $region34: #{poem_model_forward.5} parent=11 // pred_check_branch
        %223 = sbr.rel (%p221) target = $region36
      $region35: #{poem_model_forward.5} parent=11 // pred_region
        _
      $region36: #{poem_model_forward.5} parent=11 // pred_fallthru
        _
    $region12: #{poem_model_forward.5} parent=5 // pred_fallthru
      _
    %p224 = scmp.lt.s32.totalorder %s13, 2
    // Predicated region
    $region37: #{poem_model_forward.5} parent=5 // pred_check
      %p225 = pneg %p224
    $region38: #{poem_model_forward.5} parent=5 // pred_check_branch
      %227 = sbr.rel (%p225) target = $region40
    $region39: #{poem_model_forward.5} parent=5 // pred_region
      // Predicated region
      $region41: #{poem_model_forward.5} parent=39 // pred_check
        %p228 = pneg %p33
      $region42: #{poem_model_forward.5} parent=39 // pred_check_branch
        %230 = sbr.rel (%p228) target = $region44
      $region43: #{poem_model_forward.5} parent=39 // pred_region
        %p231 = scmp.lt.s32.totalorder %s13, 1
        %s232 = scalar_select %p231, %s13, 1
        %s233 = smul.addr %s232, 8
        %s234 = scalar_lea.vmem %s0, %s233
      $region44: #{poem_model_forward.5} parent=39 // pred_fallthru
        _
    $region40: #{poem_model_forward.5} parent=5 // pred_fallthru
      _
    %p235 = scmp.le.s32.totalorder 1, %s13
    %p236 = scmp.lt.s32.totalorder %s13, 3
    %p237 = pnand %p235, %p236
    %p238 = pneg %p237
    // Predicated region
    $region45: #{poem_model_forward.5} parent=5 // pred_check
      _
    $region46: #{poem_model_forward.5} parent=5 // pred_check_branch
      %240 = sbr.rel (%p237) target = $region48
    $region47: #{poem_model_forward.5} parent=5 // pred_region
      %s241 = ssub.s32 %s13, 1
      %p242 = scmp.lt.s32.totalorder %s18, 1
      %s243 = scalar_select %p242, %s18, 1
      %s244 = smul.addr %s243, 8
      %s245 = scalar_lea.vmem %s0, %s244
      %p246 = pneg %p39
      %p247 = pneg %p36
      %p248 = pneg %p60
      %p249 = pneg %p57
      %p250 = pneg %p81
      %p251 = pneg %p78
      %p252 = pneg %p102
      %p253 = pneg %p99
      %p254 = pneg %p123
      %p255 = pneg %p120
      %p256 = pneg %p144
      %p257 = pneg %p141
      %p258 = pneg %p165
      %p259 = pneg %p162
      %p260 = pneg %p191
      %p261 = pneg %p188
      %p262 = scmp.lt.s32.totalorder %s18, 1
      %s263 = scalar_select %p262, %s18, 1
      %s264 = smul.addr %s263, 8
      %s265 = scalar_lea.vmem %s7, %s264
      %p266 = scmp.lt.s32.totalorder %s18, 1
      %s267 = scalar_select %p266, %s18, 1
      %s268 = smul.addr %s267, 8
      %s269 = scalar_lea.vmem %s0, %s268
      %p270 = scmp.lt.s32.totalorder %s18, 1
      %s271 = scalar_select %p270, %s18, 1
      %s272 = smul.addr %s271, 8
      %s273 = scalar_lea.vmem %s7, %s272
      %v274 = vld [vmem:[%s269] sm:$0xff]
      %v275 = vld [vmem:[%s1] sm:$0xff]
      %v276 = vld [vmem:[%s1 + $0x8] sm:$0xff]
      %v277 = vld [vmem:[%s1 + $0x10] sm:$0xff]
      %v278 = vld [vmem:[%s1 + $0x18] sm:$0xff]
      %v279 = vld [vmem:[%s1 + $0x20] sm:$0xff]
      %v280 = vld [vmem:[%s1 + $0x28] sm:$0xff]
      %v281 = vld [vmem:[%s1 + $0x30] sm:$0xff]
      %v282 = vld [vmem:[%s1 + $0x38] sm:$0xff]
      %v283 = vld [vmem:[%s1 + $0x40] sm:$0xff]
      %v284 = vld [vmem:[%s1 + $0x48] sm:$0xff]
      %v285 = vld [vmem:[%s1 + $0x50] sm:$0xff]
      %v286 = vld [vmem:[%s1 + $0x58] sm:$0xff]
      %v287 = vld [vmem:[%s1 + $0x60] sm:$0xff]
      %v288 = vld [vmem:[%s1 + $0x68] sm:$0xff]
      %v289 = vld [vmem:[%s1 + $0x70] sm:$0xff]
      %v290 = vld [vmem:[%s1 + $0x78] sm:$0xff]
      %291 = vmatprep.subr.mxu0 0.0
      %292 = vmatpush1.msra.mxu0 %v275
      %293 = vmatprep.subr.mxu0 0.0
      %294 = vmatpush1.msra.mxu0 %v276
      %295 = vmatprep.subr.mxu0 0.0
      %296 = vmatpush1.msra.mxu0 %v277
      %297 = vmatprep.subr.mxu0 0.0
      %298 = vmatpush1.msra.mxu0 %v278
      %299 = vmatprep.subr.mxu0 0.0
      %300 = vmatpush1.msra.mxu0 %v279
      %301 = vmatprep.subr.mxu0 0.0
      %302 = vmatpush1.msra.mxu0 %v280
      %303 = vmatprep.subr.mxu0 0.0
      %304 = vmatpush1.msra.mxu0 %v281
      %305 = vmatprep.subr.mxu0 0.0
      %306 = vmatpush1.msra.mxu0 %v282
      %307 = vmatprep.subr.mxu0 0.0
      %308 = vmatpush1.msra.mxu0 %v283
      %309 = vmatprep.subr.mxu0 0.0
      %310 = vmatpush1.msra.mxu0 %v284
      %311 = vmatprep.subr.mxu0 0.0
      %312 = vmatpush1.msra.mxu0 %v285
      %313 = vmatprep.subr.mxu0 0.0
      %314 = vmatpush1.msra.mxu0 %v286
      %315 = vmatprep.subr.mxu0 0.0
      %316 = vmatpush1.msra.mxu0 %v287
      %317 = vmatprep.subr.mxu0 0.0
      %318 = vmatpush1.msra.mxu0 %v288
      %319 = vmatprep.subr.mxu0 0.0
      %320 = vmatpush1.msra.mxu0 %v289
      %321 = vmatprep.subr.mxu0 0.0
      %322 = vmatpush1.msra.mxu0 %v290
      %323 = vmatprep.subr.mxu0 0.0
      %324 = vmatpush1.msra.mxu0 0.0
      %325 = vmatprep.subr.mxu0 0.0
      %326 = vmatpush1.msra.mxu0 0.0
      %327 = vmatprep.subr.mxu0 0.0
      %328 = vmatpush1.msra.mxu0 0.0
      %329 = vmatprep.subr.mxu0 0.0
      %330 = vmatpush1.msra.mxu0 0.0
      %331 = vmatprep.subr.mxu0 0.0
      %332 = vmatpush1.msra.mxu0 0.0
      %333 = vmatprep.subr.mxu0 0.0
      %334 = vmatpush1.msra.mxu0 0.0
      %335 = vmatprep.subr.mxu0 0.0
      %336 = vmatpush1.msra.mxu0 0.0
      %337 = vmatprep.subr.mxu0 0.0
      %338 = vmatpush1.msra.mxu0 0.0
      %339 = vmatprep.subr.mxu0 0.0
      %340 = vmatpush1.msra.mxu0 0.0
      %341 = vmatprep.subr.mxu0 0.0
      %342 = vmatpush1.msra.mxu0 0.0
      %343 = vmatprep.subr.mxu0 0.0
      %344 = vmatpush1.msra.mxu0 0.0
      %345 = vmatprep.subr.mxu0 0.0
      %346 = vmatpush1.msra.mxu0 0.0
      %347 = vmatprep.subr.mxu0 0.0
      %348 = vmatpush1.msra.mxu0 0.0
      %349 = vmatprep.subr.mxu0 0.0
      %350 = vmatpush1.msra.mxu0 0.0
      %351 = vmatprep.subr.mxu0 0.0
      %352 = vmatpush1.msra.mxu0 0.0
      %353 = vmatprep.subr.mxu0 0.0
      %354 = vmatpush1.msra.mxu0 0.0
      %355 = vmatprep.mubr.f32.mxu0 0.0
      %356 = vmatmul.mubr.f32.gmra.mrb[0].mxu0 %v274
      %v357 = vpop.f32.mrb[0].mxu0
      %v358 = vadd.f32 0.0, %v357
      %v359 = vpop.f32.mrb[0].mxu0
      %360 = vdwg.mxu0
      %v361 = vld [vmem:[%s2] sm:$0xff]
      %v362 = vld [vmem:[%s2 + $0x8] sm:$0xff]
      %v363 = vld [vmem:[%s2 + $0x10] sm:$0xff]
      %v364 = vld [vmem:[%s2 + $0x18] sm:$0xff]
      %v365 = vld [vmem:[%s2 + $0x20] sm:$0xff]
      %v366 = vld [vmem:[%s2 + $0x28] sm:$0xff]
      %v367 = vld [vmem:[%s2 + $0x30] sm:$0xff]
      %v368 = vld [vmem:[%s2 + $0x38] sm:$0xff]
      %v369 = vld [vmem:[%s2 + $0x40] sm:$0xff]
      %v370 = vld [vmem:[%s2 + $0x48] sm:$0xff]
      %v371 = vld [vmem:[%s2 + $0x50] sm:$0xff]
      %v372 = vld [vmem:[%s2 + $0x58] sm:$0xff]
      %v373 = vld [vmem:[%s2 + $0x60] sm:$0xff]
      %v374 = vld [vmem:[%s2 + $0x68] sm:$0xff]
      %v375 = vld [vmem:[%s2 + $0x70] sm:$0xff]
      %v376 = vld [vmem:[%s2 + $0x78] sm:$0xff]
      %377 = vmatprep.subr.mxu0 0.0
      %378 = vmatpush1.msra.mxu0 %v361
      %379 = vmatprep.subr.mxu0 0.0
      %380 = vmatpush1.msra.mxu0 %v362
      %381 = vmatprep.subr.mxu0 0.0
      %382 = vmatpush1.msra.mxu0 %v363
      %383 = vmatprep.subr.mxu0 0.0
      %384 = vmatpush1.msra.mxu0 %v364
      %385 = vmatprep.subr.mxu0 0.0
      %386 = vmatpush1.msra.mxu0 %v365
      %387 = vmatprep.subr.mxu0 0.0
      %388 = vmatpush1.msra.mxu0 %v366
      %389 = vmatprep.subr.mxu0 0.0
      %390 = vmatpush1.msra.mxu0 %v367
      %391 = vmatprep.subr.mxu0 0.0
      %392 = vmatpush1.msra.mxu0 %v368
      %393 = vmatprep.subr.mxu0 0.0
      %394 = vmatpush1.msra.mxu0 %v369
      %395 = vmatprep.subr.mxu0 0.0
      %396 = vmatpush1.msra.mxu0 %v370
      %397 = vmatprep.subr.mxu0 0.0
      %398 = vmatpush1.msra.mxu0 %v371
      %399 = vmatprep.subr.mxu0 0.0
      %400 = vmatpush1.msra.mxu0 %v372
      %401 = vmatprep.subr.mxu0 0.0
      %402 = vmatpush1.msra.mxu0 %v373
      %403 = vmatprep.subr.mxu0 0.0
      %404 = vmatpush1.msra.mxu0 %v374
      %405 = vmatprep.subr.mxu0 0.0
      %406 = vmatpush1.msra.mxu0 %v375
      %407 = vmatprep.subr.mxu0 0.0
      %408 = vmatpush1.msra.mxu0 %v376
      %409 = vmatprep.subr.mxu0 0.0
      %410 = vmatpush1.msra.mxu0 0.0
      %411 = vmatprep.subr.mxu0 0.0
      %412 = vmatpush1.msra.mxu0 0.0
      %413 = vmatprep.subr.mxu0 0.0
      %414 = vmatpush1.msra.mxu0 0.0
      %415 = vmatprep.subr.mxu0 0.0
      %416 = vmatpush1.msra.mxu0 0.0
      %417 = vmatprep.subr.mxu0 0.0
      %418 = vmatpush1.msra.mxu0 0.0
      %419 = vmatprep.subr.mxu0 0.0
      %420 = vmatpush1.msra.mxu0 0.0
      %421 = vmatprep.subr.mxu0 0.0
      %422 = vmatpush1.msra.mxu0 0.0
      %423 = vmatprep.subr.mxu0 0.0
      %424 = vmatpush1.msra.mxu0 0.0
      %425 = vmatprep.subr.mxu0 0.0
      %426 = vmatpush1.msra.mxu0 0.0
      %427 = vmatprep.subr.mxu0 0.0
      %428 = vmatpush1.msra.mxu0 0.0
      %429 = vmatprep.subr.mxu0 0.0
      %430 = vmatpush1.msra.mxu0 0.0
      %431 = vmatprep.subr.mxu0 0.0
      %432 = vmatpush1.msra.mxu0 0.0
      %433 = vmatprep.subr.mxu0 0.0
      %434 = vmatpush1.msra.mxu0 0.0
      %435 = vmatprep.subr.mxu0 0.0
      %436 = vmatpush1.msra.mxu0 0.0
      %437 = vmatprep.subr.mxu0 0.0
      %438 = vmatpush1.msra.mxu0 0.0
      %439 = vmatprep.subr.mxu0 0.0
      %440 = vmatpush1.msra.mxu0 0.0
      %441 = vmatprep.mubr.f32.mxu0 0.0
      %442 = vmatmul.mubr.f32.gmra.mrb[0].mxu0 %v274
      %v443 = vpop.f32.mrb[0].mxu0
      %v444 = vadd.f32 0.0, %v443
      %v445 = vpop.f32.mrb[0].mxu0
      %446 = vdwg.mxu0
      %v447 = vld [vmem:[%s3] sm:$0xff]
      %v448 = vld [vmem:[%s3 + $0x8] sm:$0xff]
      %v449 = vld [vmem:[%s3 + $0x10] sm:$0xff]
      %v450 = vld [vmem:[%s3 + $0x18] sm:$0xff]
      %v451 = vld [vmem:[%s3 + $0x20] sm:$0xff]
      %v452 = vld [vmem:[%s3 + $0x28] sm:$0xff]
      %v453 = vld [vmem:[%s3 + $0x30] sm:$0xff]
      %v454 = vld [vmem:[%s3 + $0x38] sm:$0xff]
      %v455 = vld [vmem:[%s3 + $0x40] sm:$0xff]
      %v456 = vld [vmem:[%s3 + $0x48] sm:$0xff]
      %v457 = vld [vmem:[%s3 + $0x50] sm:$0xff]
      %v458 = vld [vmem:[%s3 + $0x58] sm:$0xff]
      %v459 = vld [vmem:[%s3 + $0x60] sm:$0xff]
      %v460 = vld [vmem:[%s3 + $0x68] sm:$0xff]
      %v461 = vld [vmem:[%s3 + $0x70] sm:$0xff]
      %v462 = vld [vmem:[%s3 + $0x78] sm:$0xff]
      %463 = vmatprep.subr.mxu0 0.0
      %464 = vmatpush1.msra.mxu0 %v447
      %465 = vmatprep.subr.mxu0 0.0
      %466 = vmatpush1.msra.mxu0 %v448
      %467 = vmatprep.subr.mxu0 0.0
      %468 = vmatpush1.msra.mxu0 %v449
      %469 = vmatprep.subr.mxu0 0.0
      %470 = vmatpush1.msra.mxu0 %v450
      %471 = vmatprep.subr.mxu0 0.0
      %472 = vmatpush1.msra.mxu0 %v451
      %473 = vmatprep.subr.mxu0 0.0
      %474 = vmatpush1.msra.mxu0 %v452
      %475 = vmatprep.subr.mxu0 0.0
      %476 = vmatpush1.msra.mxu0 %v453
      %477 = vmatprep.subr.mxu0 0.0
      %478 = vmatpush1.msra.mxu0 %v454
      %479 = vmatprep.subr.mxu0 0.0
      %480 = vmatpush1.msra.mxu0 %v455
      %481 = vmatprep.subr.mxu0 0.0
      %482 = vmatpush1.msra.mxu0 %v456
      %483 = vmatprep.subr.mxu0 0.0
      %484 = vmatpush1.msra.mxu0 %v457
      %485 = vmatprep.subr.mxu0 0.0
      %486 = vmatpush1.msra.mxu0 %v458
      %487 = vmatprep.subr.mxu0 0.0
      %488 = vmatpush1.msra.mxu0 %v459
      %489 = vmatprep.subr.mxu0 0.0
      %490 = vmatpush1.msra.mxu0 %v460
      %491 = vmatprep.subr.mxu0 0.0
      %492 = vmatpush1.msra.mxu0 %v461
      %493 = vmatprep.subr.mxu0 0.0
      %494 = vmatpush1.msra.mxu0 %v462
      %495 = vmatprep.subr.mxu0 0.0
      %496 = vmatpush1.msra.mxu0 0.0
      %497 = vmatprep.subr.mxu0 0.0
      %498 = vmatpush1.msra.mxu0 0.0
      %499 = vmatprep.subr.mxu0 0.0
      %500 = vmatpush1.msra.mxu0 0.0
      %501 = vmatprep.subr.mxu0 0.0
      %502 = vmatpush1.msra.mxu0 0.0
      %503 = vmatprep.subr.mxu0 0.0
      %504 = vmatpush1.msra.mxu0 0.0
      %505 = vmatprep.subr.mxu0 0.0
      %506 = vmatpush1.msra.mxu0 0.0
      %507 = vmatprep.subr.mxu0 0.0
      %508 = vmatpush1.msra.mxu0 0.0
      %509 = vmatprep.subr.mxu0 0.0
      %510 = vmatpush1.msra.mxu0 0.0
      %511 = vmatprep.subr.mxu0 0.0
      %512 = vmatpush1.msra.mxu0 0.0
      %513 = vmatprep.subr.mxu0 0.0
      %514 = vmatpush1.msra.mxu0 0.0
      %515 = vmatprep.subr.mxu0 0.0
      %516 = vmatpush1.msra.mxu0 0.0
      %517 = vmatprep.subr.mxu0 0.0
      %518 = vmatpush1.msra.mxu0 0.0
      %519 = vmatprep.subr.mxu0 0.0
      %520 = vmatpush1.msra.mxu0 0.0
      %521 = vmatprep.subr.mxu0 0.0
      %522 = vmatpush1.msra.mxu0 0.0
      %523 = vmatprep.subr.mxu0 0.0
      %524 = vmatpush1.msra.mxu0 0.0
      %525 = vmatprep.subr.mxu0 0.0
      %526 = vmatpush1.msra.mxu0 0.0
      %527 = vmatprep.mubr.f32.mxu0 0.0
      %528 = vmatmul.mubr.f32.gmra.mrb[0].mxu0 %v274
      %v529 = vpop.f32.mrb[0].mxu0
      %v530 = vadd.f32 0.0, %v529
      %v531 = vpop.f32.mrb[0].mxu0
      %532 = vdwg.mxu0
      %v533 = vlaneseq
      %v534 = vshrl.u32 %v533, 7
      %v535 = vlaneseq
      %v536 = vand.u32 %v535, 127
      %vm537 = vcmp.gt.s32.totalorder %v536, %v534
      %vm538 = vcmask 523264
      %v540 = vsel %vm538, %v358, 0
      %v543 = vsel %vm538, %v444, 0
      %545 = vmatprep.subr.mxu0 0.0
      %546 = vmatpush1.xpose.msra.mxu0 %v543
      %547 = vmatprep.subr.mxu0 0.0
      %548 = vmatpush1.xpose.msra.mxu0 0.0
      %549 = vmatprep.subr.mxu0 0.0
      %550 = vmatpush1.xpose.msra.mxu0 0.0
      %551 = vmatprep.subr.mxu0 0.0
      %552 = vmatpush1.xpose.msra.mxu0 0.0
      %553 = vmatprep.subr.mxu0 0.0
      %554 = vmatpush1.xpose.msra.mxu0 0.0
      %555 = vmatprep.subr.mxu0 0.0
      %556 = vmatpush1.xpose.msra.mxu0 0.0
      %557 = vmatprep.subr.mxu0 0.0
      %558 = vmatpush1.xpose.msra.mxu0 0.0
      %559 = vmatprep.subr.mxu0 0.0
      %560 = vmatpush1.xpose.msra.mxu0 0.0
      %561 = vmatprep.subr.mxu0 0.0
      %562 = vmatpush1.xpose.msra.mxu0 0.0
      %563 = vmatprep.subr.mxu0 0.0
      %564 = vmatpush1.xpose.msra.mxu0 0.0
      %565 = vmatprep.subr.mxu0 0.0
      %566 = vmatpush1.xpose.msra.mxu0 0.0
      %567 = vmatprep.subr.mxu0 0.0
      %568 = vmatpush1.xpose.msra.mxu0 0.0
      %569 = vmatprep.subr.mxu0 0.0
      %570 = vmatpush1.xpose.msra.mxu0 0.0
      %571 = vmatprep.subr.mxu0 0.0
      %572 = vmatpush1.xpose.msra.mxu0 0.0
      %573 = vmatprep.subr.mxu0 0.0
      %574 = vmatpush1.xpose.msra.mxu0 0.0
      %575 = vmatprep.subr.mxu0 0.0
      %576 = vmatpush1.xpose.msra.mxu0 0.0
      %577 = vmatprep.subr.mxu0 0.0
      %578 = vmatpush1.xpose.msra.mxu0 0.0
      %579 = vmatprep.subr.mxu0 0.0
      %580 = vmatpush1.xpose.msra.mxu0 0.0
      %581 = vmatprep.subr.mxu0 0.0
      %582 = vmatpush1.xpose.msra.mxu0 0.0
      %583 = vmatprep.subr.mxu0 0.0
      %584 = vmatpush1.xpose.msra.mxu0 0.0
      %585 = vmatprep.subr.mxu0 0.0
      %586 = vmatpush1.xpose.msra.mxu0 0.0
      %587 = vmatprep.subr.mxu0 0.0
      %588 = vmatpush1.xpose.msra.mxu0 0.0
      %589 = vmatprep.subr.mxu0 0.0
      %590 = vmatpush1.xpose.msra.mxu0 0.0
      %591 = vmatprep.subr.mxu0 0.0
      %592 = vmatpush1.xpose.msra.mxu0 0.0
      %593 = vmatprep.subr.mxu0 0.0
      %594 = vmatpush1.xpose.msra.mxu0 0.0
      %595 = vmatprep.subr.mxu0 0.0
      %596 = vmatpush1.xpose.msra.mxu0 0.0
      %597 = vmatprep.subr.mxu0 0.0
      %598 = vmatpush1.xpose.msra.mxu0 0.0
      %599 = vmatprep.subr.mxu0 0.0
      %600 = vmatpush1.xpose.msra.mxu0 0.0
      %601 = vmatprep.subr.mxu0 0.0
      %602 = vmatpush1.xpose.msra.mxu0 0.0
      %603 = vmatprep.subr.mxu0 0.0
      %604 = vmatpush1.xpose.msra.mxu0 0.0
      %605 = vmatprep.subr.mxu0 0.0
      %606 = vmatpush1.xpose.msra.mxu0 0.0
      %607 = vmatprep.subr.mxu0 0.0
      %608 = vmatpush1.xpose.msra.mxu0 0.0
      %609 = vmatprep.mubr.f32.mxu0 0.0
      %610 = vmatmul.mubr.f32.gmra.mrb[0].mxu0 %v540
      %v611 = vpop.f32.mrb[0].mxu0
      %v612 = vadd.f32 0.0, %v611
      %v613 = vpop.f32.mrb[0].mxu0
      %614 = vdwg.mxu0
      %v615 = vmul.f32 %v612, 0.125
      %v616 = vsel %vm537, -10000000.0, %v615
      %vm617 = vcmask 64512
      %v618 = vsel %vm617, %v616, -inf
      %619 = vmax.xlane.f32.xlu0 %v618
      %v620 = vpop.xlane.xlu0 %619
      %v621 = vsub.f32 %v616, %v620
      %v622 = vmul.f32 %v621, 1.442695
      %v623 = vpow.pop %v622
      %v624 = vsel %vm617, %v623, 0.0
      %625 = vadd.xlane.f32.xlu0 %v624
      %v626 = vpop.xlane.xlu0 %625
      %v627 = vrcp.pop %v626
      %v628 = vmul.f32 %v623, %v627
      %v630 = vsel %vm617, %v628, 0
      %632 = vmatprep.subr.mxu0 0.0
      %633 = vmatpush1.msra.mxu0 %v530
      %634 = vmatprep.subr.mxu0 0.0
      %635 = vmatpush1.msra.mxu0 0.0
      %636 = vmatprep.subr.mxu0 0.0
      %637 = vmatpush1.msra.mxu0 0.0
      %638 = vmatprep.subr.mxu0 0.0
      %639 = vmatpush1.msra.mxu0 0.0
      %640 = vmatprep.subr.mxu0 0.0
      %641 = vmatpush1.msra.mxu0 0.0
      %642 = vmatprep.subr.mxu0 0.0
      %643 = vmatpush1.msra.mxu0 0.0
      %644 = vmatprep.subr.mxu0 0.0
      %645 = vmatpush1.msra.mxu0 0.0
      %646 = vmatprep.subr.mxu0 0.0
      %647 = vmatpush1.msra.mxu0 0.0
      %648 = vmatprep.subr.mxu0 0.0
      %649 = vmatpush1.msra.mxu0 0.0
      %650 = vmatprep.subr.mxu0 0.0
      %651 = vmatpush1.msra.mxu0 0.0
      %652 = vmatprep.subr.mxu0 0.0
      %653 = vmatpush1.msra.mxu0 0.0
      %654 = vmatprep.subr.mxu0 0.0
      %655 = vmatpush1.msra.mxu0 0.0
      %656 = vmatprep.subr.mxu0 0.0
      %657 = vmatpush1.msra.mxu0 0.0
      %658 = vmatprep.subr.mxu0 0.0
      %659 = vmatpush1.msra.mxu0 0.0
      %660 = vmatprep.subr.mxu0 0.0
      %661 = vmatpush1.msra.mxu0 0.0
      %662 = vmatprep.subr.mxu0 0.0
      %663 = vmatpush1.msra.mxu0 0.0
      %664 = vmatprep.subr.mxu0 0.0
      %665 = vmatpush1.msra.mxu0 0.0
      %666 = vmatprep.subr.mxu0 0.0
      %667 = vmatpush1.msra.mxu0 0.0
      %668 = vmatprep.subr.mxu0 0.0
      %669 = vmatpush1.msra.mxu0 0.0
      %670 = vmatprep.subr.mxu0 0.0
      %671 = vmatpush1.msra.mxu0 0.0
      %672 = vmatprep.subr.mxu0 0.0
      %673 = vmatpush1.msra.mxu0 0.0
      %674 = vmatprep.subr.mxu0 0.0
      %675 = vmatpush1.msra.mxu0 0.0
      %676 = vmatprep.subr.mxu0 0.0
      %677 = vmatpush1.msra.mxu0 0.0
      %678 = vmatprep.subr.mxu0 0.0
      %679 = vmatpush1.msra.mxu0 0.0
      %680 = vmatprep.subr.mxu0 0.0
      %681 = vmatpush1.msra.mxu0 0.0
      %682 = vmatprep.subr.mxu0 0.0
      %683 = vmatpush1.msra.mxu0 0.0
      %684 = vmatprep.subr.mxu0 0.0
      %685 = vmatpush1.msra.mxu0 0.0
      %686 = vmatprep.subr.mxu0 0.0
      %687 = vmatpush1.msra.mxu0 0.0
      %688 = vmatprep.subr.mxu0 0.0
      %689 = vmatpush1.msra.mxu0 0.0
      %690 = vmatprep.subr.mxu0 0.0
      %691 = vmatpush1.msra.mxu0 0.0
      %692 = vmatprep.subr.mxu0 0.0
      %693 = vmatpush1.msra.mxu0 0.0
      %694 = vmatprep.subr.mxu0 0.0
      %695 = vmatpush1.msra.mxu0 0.0
      %696 = vmatprep.mubr.f32.mxu0 0.0
      %697 = vmatmul.mubr.f32.gmra.mrb[0].mxu0 %v630
      %v698 = vpop.f32.mrb[0].mxu0
      %v699 = vadd.f32 0.0, %v698
      %v700 = vpop.f32.mrb[0].mxu0
      %701 = vdwg.mxu0
      %702 = vrot.lane.b32.xlu0 %v358, 64
      %v703 = vpop.permute.xlu0 %702
      %704 = vrot.lane.b32.xlu0 %v444, 64
      %v705 = vpop.permute.xlu0 %704
      %v706 = vsel %vm538, %v703, 0
      %v708 = vsel %vm538, %v705, 0
      %710 = vmatprep.subr.mxu0 0.0
      %711 = vmatpush1.xpose.msra.mxu0 %v708
      %712 = vmatprep.subr.mxu0 0.0
      %713 = vmatpush1.xpose.msra.mxu0 0.0
      %714 = vmatprep.subr.mxu0 0.0
      %715 = vmatpush1.xpose.msra.mxu0 0.0
      %716 = vmatprep.subr.mxu0 0.0
      %717 = vmatpush1.xpose.msra.mxu0 0.0
      %718 = vmatprep.subr.mxu0 0.0
      %719 = vmatpush1.xpose.msra.mxu0 0.0
      %720 = vmatprep.subr.mxu0 0.0
      %721 = vmatpush1.xpose.msra.mxu0 0.0
      %722 = vmatprep.subr.mxu0 0.0
      %723 = vmatpush1.xpose.msra.mxu0 0.0
      %724 = vmatprep.subr.mxu0 0.0
      %725 = vmatpush1.xpose.msra.mxu0 0.0
      %726 = vmatprep.subr.mxu0 0.0
      %727 = vmatpush1.xpose.msra.mxu0 0.0
      %728 = vmatprep.subr.mxu0 0.0
      %729 = vmatpush1.xpose.msra.mxu0 0.0
      %730 = vmatprep.subr.mxu0 0.0
      %731 = vmatpush1.xpose.msra.mxu0 0.0
      %732 = vmatprep.subr.mxu0 0.0
      %733 = vmatpush1.xpose.msra.mxu0 0.0
      %734 = vmatprep.subr.mxu0 0.0
      %735 = vmatpush1.xpose.msra.mxu0 0.0
      %736 = vmatprep.subr.mxu0 0.0
      %737 = vmatpush1.xpose.msra.mxu0 0.0
      %738 = vmatprep.subr.mxu0 0.0
      %739 = vmatpush1.xpose.msra.mxu0 0.0
      %740 = vmatprep.subr.mxu0 0.0
      %741 = vmatpush1.xpose.msra.mxu0 0.0
      %742 = vmatprep.subr.mxu0 0.0
      %743 = vmatpush1.xpose.msra.mxu0 0.0
      %744 = vmatprep.subr.mxu0 0.0
      %745 = vmatpush1.xpose.msra.mxu0 0.0
      %746 = vmatprep.subr.mxu0 0.0
      %747 = vmatpush1.xpose.msra.mxu0 0.0
      %748 = vmatprep.subr.mxu0 0.0
      %749 = vmatpush1.xpose.msra.mxu0 0.0
      %750 = vmatprep.subr.mxu0 0.0
      %751 = vmatpush1.xpose.msra.mxu0 0.0
      %752 = vmatprep.subr.mxu0 0.0
      %753 = vmatpush1.xpose.msra.mxu0 0.0
      %754 = vmatprep.subr.mxu0 0.0
      %755 = vmatpush1.xpose.msra.mxu0 0.0
      %756 = vmatprep.subr.mxu0 0.0
      %757 = vmatpush1.xpose.msra.mxu0 0.0
      %758 = vmatprep.subr.mxu0 0.0
      %759 = vmatpush1.xpose.msra.mxu0 0.0
      %760 = vmatprep.subr.mxu0 0.0
      %761 = vmatpush1.xpose.msra.mxu0 0.0
      %762 = vmatprep.subr.mxu0 0.0
      %763 = vmatpush1.xpose.msra.mxu0 0.0
      %764 = vmatprep.subr.mxu0 0.0
      %765 = vmatpush1.xpose.msra.mxu0 0.0
      %766 = vmatprep.subr.mxu0 0.0
      %767 = vmatpush1.xpose.msra.mxu0 0.0
      %768 = vmatprep.subr.mxu0 0.0
      %769 = vmatpush1.xpose.msra.mxu0 0.0
      %770 = vmatprep.subr.mxu0 0.0
      %771 = vmatpush1.xpose.msra.mxu0 0.0
      %772 = vmatprep.subr.mxu0 0.0
      %773 = vmatpush1.xpose.msra.mxu0 0.0
      %774 = vmatprep.mubr.f32.mxu0 0.0
      %775 = vmatmul.mubr.f32.gmra.mrb[0].mxu0 %v706
      %v776 = vpop.f32.mrb[0].mxu0
      %v777 = vadd.f32 0.0, %v776
      %v778 = vpop.f32.mrb[0].mxu0
      %779 = vdwg.mxu0
      %v780 = vmul.f32 %v777, 0.125
      %v781 = vsel %vm537, -10000000.0, %v780
      %v782 = vsel %vm617, %v781, -inf
      %783 = vmax.xlane.f32.xlu0 %v782
      %v784 = vpop.xlane.xlu0 %783
      %v785 = vsub.f32 %v781, %v784
      %v786 = vmul.f32 %v785, 1.442695
      %v787 = vpow.pop %v786
      %v788 = vsel %vm617, %v787, 0.0
      %789 = vadd.xlane.f32.xlu0 %v788
      %v790 = vpop.xlane.xlu0 %789
      %v791 = vrcp.pop %v790
      %v792 = vmul.f32 %v787, %v791
      %794 = vrot.lane.b32.xlu0 %v530, 64
      %v795 = vpop.permute.xlu0 %794
      %v798 = vsel %vm617, %v792, 0
      %800 = vmatprep.subr.mxu0 0.0
      %801 = vmatpush1.msra.mxu0 %v795
      %802 = vmatprep.subr.mxu0 0.0
      %803 = vmatpush1.msra.mxu0 0.0
      %804 = vmatprep.subr.mxu0 0.0
      %805 = vmatpush1.msra.mxu0 0.0
      %806 = vmatprep.subr.mxu0 0.0
      %807 = vmatpush1.msra.mxu0 0.0
      %808 = vmatprep.subr.mxu0 0.0
      %809 = vmatpush1.msra.mxu0 0.0
      %810 = vmatprep.subr.mxu0 0.0
      %811 = vmatpush1.msra.mxu0 0.0
      %812 = vmatprep.subr.mxu0 0.0
      %813 = vmatpush1.msra.mxu0 0.0
      %814 = vmatprep.subr.mxu0 0.0
      %815 = vmatpush1.msra.mxu0 0.0
      %816 = vmatprep.subr.mxu0 0.0
      %817 = vmatpush1.msra.mxu0 0.0
      %818 = vmatprep.subr.mxu0 0.0
      %819 = vmatpush1.msra.mxu0 0.0
      %820 = vmatprep.subr.mxu0 0.0
      %821 = vmatpush1.msra.mxu0 0.0
      %822 = vmatprep.subr.mxu0 0.0
      %823 = vmatpush1.msra.mxu0 0.0
      %824 = vmatprep.subr.mxu0 0.0
      %825 = vmatpush1.msra.mxu0 0.0
      %826 = vmatprep.subr.mxu0 0.0
      %827 = vmatpush1.msra.mxu0 0.0
      %828 = vmatprep.subr.mxu0 0.0
      %829 = vmatpush1.msra.mxu0 0.0
      %830 = vmatprep.subr.mxu0 0.0
      %831 = vmatpush1.msra.mxu0 0.0
      %832 = vmatprep.subr.mxu0 0.0
      %833 = vmatpush1.msra.mxu0 0.0
      %834 = vmatprep.subr.mxu0 0.0
      %835 = vmatpush1.msra.mxu0 0.0
      %836 = vmatprep.subr.mxu0 0.0
      %837 = vmatpush1.msra.mxu0 0.0
      %838 = vmatprep.subr.mxu0 0.0
      %839 = vmatpush1.msra.mxu0 0.0
      %840 = vmatprep.subr.mxu0 0.0
      %841 = vmatpush1.msra.mxu0 0.0
      %842 = vmatprep.subr.mxu0 0.0
      %843 = vmatpush1.msra.mxu0 0.0
      %844 = vmatprep.subr.mxu0 0.0
      %845 = vmatpush1.msra.mxu0 0.0
      %846 = vmatprep.subr.mxu0 0.0
      %847 = vmatpush1.msra.mxu0 0.0
      %848 = vmatprep.subr.mxu0 0.0
      %849 = vmatpush1.msra.mxu0 0.0
      %850 = vmatprep.subr.mxu0 0.0
      %851 = vmatpush1.msra.mxu0 0.0
      %852 = vmatprep.subr.mxu0 0.0
      %853 = vmatpush1.msra.mxu0 0.0
      %854 = vmatprep.subr.mxu0 0.0
      %855 = vmatpush1.msra.mxu0 0.0
      %856 = vmatprep.subr.mxu0 0.0
      %857 = vmatpush1.msra.mxu0 0.0
      %858 = vmatprep.subr.mxu0 0.0
      %859 = vmatpush1.msra.mxu0 0.0
      %860 = vmatprep.subr.mxu0 0.0
      %861 = vmatpush1.msra.mxu0 0.0
      %862 = vmatprep.subr.mxu0 0.0
      %863 = vmatpush1.msra.mxu0 0.0
      %864 = vmatprep.mubr.f32.mxu0 0.0
      %865 = vmatmul.mubr.f32.gmra.mrb[0].mxu0 %v798
      %v866 = vpop.f32.mrb[0].mxu0
      %v867 = vadd.f32 0.0, %v866
      %v868 = vpop.f32.mrb[0].mxu0
      %869 = vdwg.mxu0
      %871 = vrot.lane.b32.xlu0 %v867, 64
      %v872 = vpop.permute.xlu0 %871
      %v874 = vsel %vm538, %v699, %v872
      %v875 = vld [vmem:[%s4] sm:$0xff]
      %v876 = vld [vmem:[%s4 + $0x8] sm:$0xff]
      %v877 = vld [vmem:[%s4 + $0x10] sm:$0xff]
      %v878 = vld [vmem:[%s4 + $0x18] sm:$0xff]
      %v879 = vld [vmem:[%s4 + $0x20] sm:$0xff]
      %v880 = vld [vmem:[%s4 + $0x28] sm:$0xff]
      %v881 = vld [vmem:[%s4 + $0x30] sm:$0xff]
      %v882 = vld [vmem:[%s4 + $0x38] sm:$0xff]
      %v883 = vld [vmem:[%s4 + $0x40] sm:$0xff]
      %v884 = vld [vmem:[%s4 + $0x48] sm:$0xff]
      %v885 = vld [vmem:[%s4 + $0x50] sm:$0xff]
      %v886 = vld [vmem:[%s4 + $0x58] sm:$0xff]
      %v887 = vld [vmem:[%s4 + $0x60] sm:$0xff]
      %v888 = vld [vmem:[%s4 + $0x68] sm:$0xff]
      %v889 = vld [vmem:[%s4 + $0x70] sm:$0xff]
      %v890 = vld [vmem:[%s4 + $0x78] sm:$0xff]
      %891 = vmatprep.subr.mxu0 0.0
      %892 = vmatpush1.msra.mxu0 %v875
      %893 = vmatprep.subr.mxu0 0.0
      %894 = vmatpush1.msra.mxu0 %v876
      %895 = vmatprep.subr.mxu0 0.0
      %896 = vmatpush1.msra.mxu0 %v877
      %897 = vmatprep.subr.mxu0 0.0
      %898 = vmatpush1.msra.mxu0 %v878
      %899 = vmatprep.subr.mxu0 0.0
      %900 = vmatpush1.msra.mxu0 %v879
      %901 = vmatprep.subr.mxu0 0.0
      %902 = vmatpush1.msra.mxu0 %v880
      %903 = vmatprep.subr.mxu0 0.0
      %904 = vmatpush1.msra.mxu0 %v881
      %905 = vmatprep.subr.mxu0 0.0
      %906 = vmatpush1.msra.mxu0 %v882
      %907 = vmatprep.subr.mxu0 0.0
      %908 = vmatpush1.msra.mxu0 %v883
      %909 = vmatprep.subr.mxu0 0.0
      %910 = vmatpush1.msra.mxu0 %v884
      %911 = vmatprep.subr.mxu0 0.0
      %912 = vmatpush1.msra.mxu0 %v885
      %913 = vmatprep.subr.mxu0 0.0
      %914 = vmatpush1.msra.mxu0 %v886
      %915 = vmatprep.subr.mxu0 0.0
      %916 = vmatpush1.msra.mxu0 %v887
      %917 = vmatprep.subr.mxu0 0.0
      %918 = vmatpush1.msra.mxu0 %v888
      %919 = vmatprep.subr.mxu0 0.0
      %920 = vmatpush1.msra.mxu0 %v889
      %921 = vmatprep.subr.mxu0 0.0
      %922 = vmatpush1.msra.mxu0 %v890
      %923 = vmatprep.subr.mxu0 0.0
      %924 = vmatpush1.msra.mxu0 0.0
      %925 = vmatprep.subr.mxu0 0.0
      %926 = vmatpush1.msra.mxu0 0.0
      %927 = vmatprep.subr.mxu0 0.0
      %928 = vmatpush1.msra.mxu0 0.0
      %929 = vmatprep.subr.mxu0 0.0
      %930 = vmatpush1.msra.mxu0 0.0
      %931 = vmatprep.subr.mxu0 0.0
      %932 = vmatpush1.msra.mxu0 0.0
      %933 = vmatprep.subr.mxu0 0.0
      %934 = vmatpush1.msra.mxu0 0.0
      %935 = vmatprep.subr.mxu0 0.0
      %936 = vmatpush1.msra.mxu0 0.0
      %937 = vmatprep.subr.mxu0 0.0
      %938 = vmatpush1.msra.mxu0 0.0
      %939 = vmatprep.subr.mxu0 0.0
      %940 = vmatpush1.msra.mxu0 0.0
      %941 = vmatprep.subr.mxu0 0.0
      %942 = vmatpush1.msra.mxu0 0.0
      %943 = vmatprep.subr.mxu0 0.0
      %944 = vmatpush1.msra.mxu0 0.0
      %945 = vmatprep.subr.mxu0 0.0
      %946 = vmatpush1.msra.mxu0 0.0
      %947 = vmatprep.subr.mxu0 0.0
      %948 = vmatpush1.msra.mxu0 0.0
      %949 = vmatprep.subr.mxu0 0.0
      %950 = vmatpush1.msra.mxu0 0.0
      %951 = vmatprep.subr.mxu0 0.0
      %952 = vmatpush1.msra.mxu0 0.0
      %953 = vmatprep.subr.mxu0 0.0
      %954 = vmatpush1.msra.mxu0 0.0
      %955 = vmatprep.mubr.f32.mxu0 0.0
      %956 = vmatmul.mubr.f32.gmra.mrb[0].mxu0 %v874
      %v957 = vpop.f32.mrb[0].mxu0
      %v958 = vadd.f32 %v274, %v957
      %v959 = vpop.f32.mrb[0].mxu0
      %960 = vdwg.mxu0
      %v961 = vld [vmem:[%s5] sm:$0x1]
      %v962 = vld [vmem:[%s6] sm:$0x1]
      %963 = vadd.xlane.f32.xlu0 %v958
      %v964 = vpop.xlane.xlu0 %963
      %v965 = vrcp.pop 128.0
      %v966 = vmul.f32 %v964, %v965
      %v967 = vsub.f32 %v958, %v966
      %v968 = vmul.f32 %v967, %v967
      %969 = vadd.xlane.f32.xlu0 %v968
      %v970 = vpop.xlane.xlu0 %969
      %v971 = vmul.f32 %v970, %v965
      %v972 = vadd.f32 %v971, 1e-05
      %v973 = vrsqrt.pop %v972
      %v974 = vmul.f32 %v967, %v973
      %v976 = vlaneseq
      %v977 = vshrl.u32 %v976, 7
      %v978 = vsub.s32 0, %v977
      %v979 = vrot.slane %v961, %v978
      %v981 = vmul.f32 %v974, %v979
      %v983 = vlaneseq
      %v984 = vshrl.u32 %v983, 7
      %v985 = vsub.s32 0, %v984
      %v986 = vrot.slane %v962, %v985
      %v988 = vadd.f32 %v981, %v986
      %989 = vst [vmem:[%s273] sm:$0xff] %v988
      %p990 = scmp.lt.s32.totalorder %s18, 1
      %s991 = scalar_select %p990, %s18, 1
      %s992 = smul.addr %s991, 8
      %s993 = scalar_lea.vmem %s7, %s992
      // Predicated region
      $region49: #{poem_model_forward.5} parent=47 // pred_check
        %p994 = pneg %p188
      $region50: #{poem_model_forward.5} parent=47 // pred_check_branch
        %996 = sbr.rel (%p994) target = $region52
      $region51: #{poem_model_forward.5} parent=47 // pred_region
        _
      $region52: #{poem_model_forward.5} parent=47 // pred_fallthru
        _
    $region48: #{poem_model_forward.5} parent=5 // pred_fallthru
      _
    %p997 = scmp.le.s32.totalorder 2, %s13
    // Predicated region
    $region53: #{poem_model_forward.5} parent=5 // pred_check
      %p998 = pneg %p997
    $region54: #{poem_model_forward.5} parent=5 // pred_check_branch
      %1000 = sbr.rel (%p998) target = $region56
    $region55: #{poem_model_forward.5} parent=5 // pred_region
      %s1001 = ssub.s32 %s13, 2
      // Predicated region
      $region57: #{poem_model_forward.5} parent=55 // pred_check
        %p1002 = pneg %p194
      $region58: #{poem_model_forward.5} parent=55 // pred_check_branch
        %1004 = sbr.rel (%p1002) target = $region60
      $region59: #{poem_model_forward.5} parent=55 // pred_region
        %p1005 = scmp.lt.s32.totalorder %s19, 1
        %s1006 = scalar_select %p1005, %s19, 1
        %s1007 = smul.addr %s1006, 8
        %s1008 = scalar_lea.vmem %s7, %s1007
      $region60: #{poem_model_forward.5} parent=55 // pred_fallthru
        _
    $region56: #{poem_model_forward.5} parent=5 // pred_fallthru
      _
  $region6: #{poem_model_forward.5} parent=0 // loop_footer
    %s17 = sadd.s32 1, %s13
  $region7: #{poem_model_forward.5} parent=0 // loop_footer_branch
    %12 = sbr.rel target = $region3
  $region8: #{poem_model_forward.5} parent=0 // loop_exit
    _

// kernel: poem_model_forward.9
$region0: #{poem_model_forward.9}
  #allocation0 [shape = 'u32[]', space=smem, size = 0x4, offset = 0x4, fixed_abs, tag = 'smem constant byte address 0x4 - core index']
  #allocation1 [shape = 'u32[144,128]{1,0:T(1,128)}', space=vmem, size = 0x12000, scoped, tag = 'internal scratch']
  %s0 = inlined_call_operand.vmem [shape: f32[16,128], index: 0, kind: input, shape index: {}]
  %s1 = inlined_call_operand.vmem [shape: f32[128,256], index: 1, kind: input, shape index: {}]
  %s2 = inlined_call_operand.vmem [shape: f32[1,256], index: 2, kind: input, shape index: {}]
  %s3 = inlined_call_operand.hbm [shape: f32[16,256], index: 3, kind: output, shape index: {}]
  %s4 = sld [smem:[#allocation0]]
  $region22: #{poem_model_forward.9} parent=0
    _
  %s6 = ssub.s32 1, %s4
  %s7 = scalar_select 0, %s6, %s4
  $region1: #{poem_model_forward.9} parent=0
    #allocation2 [shape = 'u8[16384]{0}', space=vmem, size = 0x4000, scoped, tag = 'output window, operand 0, single buffered']
    #allocation3 [shape = 's32[1]{0}', space=sflag, size = 0x4, scoped, tag = 'scoped memory for poem_model_forward.9']
    %8 = vsyncpa [#allocation3], 0
    // Predicated region
    $region2: #{poem_model_forward.9} parent=1 // pred_check
      _
    $region3: #{poem_model_forward.9} parent=1 // pred_check_branch
      %10 = sbr.rel (0) target = $region5
    $region4: #{poem_model_forward.9} parent=1 // pred_region
      _
    $region5: #{poem_model_forward.9} parent=1 // pred_fallthru
      _
    // Predicated region
    $region6: #{poem_model_forward.9} parent=1 // pred_check
      _
    $region7: #{poem_model_forward.9} parent=1 // pred_check_branch
      %12 = sbr.rel (0) target = $region9
    $region8: #{poem_model_forward.9} parent=1 // pred_region
      _
    $region9: #{poem_model_forward.9} parent=1 // pred_fallthru
      _
    // Predicated region
    $region10: #{poem_model_forward.9} parent=1 // pred_check
      _
    $region11: #{poem_model_forward.9} parent=1 // pred_check_branch
      %14 = sbr.rel (0) target = $region13
    $region12: #{poem_model_forward.9} parent=1 // pred_region
      _
    $region13: #{poem_model_forward.9} parent=1 // pred_fallthru
      _
    %v15 = vld [vmem:[%s0] sm:$0xff]
    %v16 = vld [vmem:[%s0 + $0x8] sm:$0xff]
    %v17 = vld [vmem:[%s1] sm:$0xff]
    %v18 = vld [vmem:[%s1 + $0x8] sm:$0xff]
    %v19 = vld [vmem:[%s1 + $0x10] sm:$0xff]
    %v20 = vld [vmem:[%s1 + $0x18] sm:$0xff]
    %v21 = vld [vmem:[%s1 + $0x20] sm:$0xff]
    %v22 = vld [vmem:[%s1 + $0x28] sm:$0xff]
    %v23 = vld [vmem:[%s1 + $0x30] sm:$0xff]
    %v24 = vld [vmem:[%s1 + $0x38] sm:$0xff]
    %v25 = vld [vmem:[%s1 + $0x40] sm:$0xff]
    %v26 = vld [vmem:[%s1 + $0x48] sm:$0xff]
    %v27 = vld [vmem:[%s1 + $0x50] sm:$0xff]
    %v28 = vld [vmem:[%s1 + $0x58] sm:$0xff]
    %v29 = vld [vmem:[%s1 + $0x60] sm:$0xff]
    %v30 = vld [vmem:[%s1 + $0x68] sm:$0xff]
    %v31 = vld [vmem:[%s1 + $0x70] sm:$0xff]
    %v32 = vld [vmem:[%s1 + $0x78] sm:$0xff]
    %v33 = vld [vmem:[%s1 + $0x80] sm:$0xff]
    %v34 = vld [vmem:[%s1 + $0x88] sm:$0xff]
    %v35 = vld [vmem:[%s1 + $0x90] sm:$0xff]
    %v36 = vld [vmem:[%s1 + $0x98] sm:$0xff]
    %v37 = vld [vmem:[%s1 + $0xa0] sm:$0xff]
    %v38 = vld [vmem:[%s1 + $0xa8] sm:$0xff]
    %v39 = vld [vmem:[%s1 + $0xb0] sm:$0xff]
    %v40 = vld [vmem:[%s1 + $0xb8] sm:$0xff]
    %v41 = vld [vmem:[%s1 + $0xc0] sm:$0xff]
    %v42 = vld [vmem:[%s1 + $0xc8] sm:$0xff]
    %v43 = vld [vmem:[%s1 + $0xd0] sm:$0xff]
    %v44 = vld [vmem:[%s1 + $0xd8] sm:$0xff]
    %v45 = vld [vmem:[%s1 + $0xe0] sm:$0xff]
    %v46 = vld [vmem:[%s1 + $0xe8] sm:$0xff]
    %v47 = vld [vmem:[%s1 + $0xf0] sm:$0xff]
    %v48 = vld [vmem:[%s1 + $0xf8] sm:$0xff]
    %v49 = vld [vmem:[%s2] sm:$0x3]
    %v51 = vlaneseq
    %v52 = vshrl.u32 %v51, 7
    %v53 = vsub.s32 0, %v52
    %v54 = vrot.slane %v49, %v53
    %v55 = vlaneseq
    %v56 = vshrl.u32 %v55, 7
    %v57 = vsub.s32 1, %v56
    %v58 = vrot.slane %v49, %v57
    %61 = vmatprep.subr.mxu0 %v18
    %62 = vmatpush1.msra.mxu0 %v17
    %63 = vmatprep.subr.mxu0 %v20
    %64 = vmatpush1.msra.mxu0 %v19
    %65 = vmatprep.subr.mxu0 %v22
    %66 = vmatpush1.msra.mxu0 %v21
    %67 = vmatprep.subr.mxu0 %v24
    %68 = vmatpush1.msra.mxu0 %v23
    %69 = vmatprep.subr.mxu0 %v26
    %70 = vmatpush1.msra.mxu0 %v25
    %71 = vmatprep.subr.mxu0 %v28
    %72 = vmatpush1.msra.mxu0 %v27
    %73 = vmatprep.subr.mxu0 %v30
    %74 = vmatpush1.msra.mxu0 %v29
    %75 = vmatprep.subr.mxu0 %v32
    %76 = vmatpush1.msra.mxu0 %v31
    %77 = vmatprep.subr.mxu0 %v34
    %78 = vmatpush1.msra.mxu0 %v33
    %79 = vmatprep.subr.mxu0 %v36
    %80 = vmatpush1.msra.mxu0 %v35
    %81 = vmatprep.subr.mxu0 %v38
    %82 = vmatpush1.msra.mxu0 %v37
    %83 = vmatprep.subr.mxu0 %v40
    %84 = vmatpush1.msra.mxu0 %v39
    %85 = vmatprep.subr.mxu0 %v42
    %86 = vmatpush1.msra.mxu0 %v41
    %87 = vmatprep.subr.mxu0 %v44
    %88 = vmatpush1.msra.mxu0 %v43
    %89 = vmatprep.subr.mxu0 %v46
    %90 = vmatpush1.msra.mxu0 %v45
    %91 = vmatprep.subr.mxu0 %v48
    %92 = vmatpush1.msra.mxu0 %v47
    %93 = vmatprep.subr.mxu0 0.0
    %94 = vmatpush1.msra.mxu0 0.0
    %95 = vmatprep.subr.mxu0 0.0
    %96 = vmatpush1.msra.mxu0 0.0
    %97 = vmatprep.subr.mxu0 0.0
    %98 = vmatpush1.msra.mxu0 0.0
    %99 = vmatprep.subr.mxu0 0.0
    %100 = vmatpush1.msra.mxu0 0.0
    %101 = vmatprep.subr.mxu0 0.0
    %102 = vmatpush1.msra.mxu0 0.0
    %103 = vmatprep.subr.mxu0 0.0
    %104 = vmatpush1.msra.mxu0 0.0
    %105 = vmatprep.subr.mxu0 0.0
    %106 = vmatpush1.msra.mxu0 0.0
    %107 = vmatprep.subr.mxu0 0.0
    %108 = vmatpush1.msra.mxu0 0.0
    %109 = vmatprep.subr.mxu0 0.0
    %110 = vmatpush1.msra.mxu0 0.0
    %111 = vmatprep.subr.mxu0 0.0
    %112 = vmatpush1.msra.mxu0 0.0
    %113 = vmatprep.subr.mxu0 0.0
    %114 = vmatpush1.msra.mxu0 0.0
    %115 = vmatprep.subr.mxu0 0.0
    %116 = vmatpush1.msra.mxu0 0.0
    %117 = vmatprep.subr.mxu0 0.0
    %118 = vmatpush1.msra.mxu0 0.0
    %119 = vmatprep.subr.mxu0 0.0
    %120 = vmatpush1.msra.mxu0 0.0
    %121 = vmatprep.subr.mxu0 0.0
    %122 = vmatpush1.msra.mxu0 0.0
    %123 = vmatprep.subr.mxu0 0.0
    %124 = vmatpush1.msra.mxu0 0.0
    %125 = vmatprep.mubr.f32.mxu0 0.0
    %126 = vmatmul.mubr.f32.gmra.mrb[0].mxu0 %v15
    %v127 = vpop.f32.mrb[0].mxu0
    %v128 = vadd.f32 %v54, %v127
    %v129 = vpop.f32.mrb[0].mxu0
    %v130 = vadd.f32 %v58, %v129
    %131 = vmatprep.mubr.f32.mxu0 0.0
    %132 = vmatmul.mubr.f32.gmra.mrb[0].mxu0 %v16
    %v133 = vpop.f32.mrb[0].mxu0
    %v134 = vadd.f32 %v54, %v133
    %v135 = vpop.f32.mrb[0].mxu0
    %v136 = vadd.f32 %v58, %v135
    %137 = vdwg.mxu0
    %138 = vst [vmem:[#allocation2] sm:$0xff] %v128
    %139 = vst [vmem:[#allocation2 + $0x8] sm:$0xff] %v130
    %140 = vst [vmem:[#allocation2 + $0x10] sm:$0xff] %v134
    %141 = vst [vmem:[#allocation2 + $0x18] sm:$0xff] %v136
    // Predicated region
    $region14: #{poem_model_forward.9} parent=1 // pred_check
      _
    $region15: #{poem_model_forward.9} parent=1 // pred_check_branch
      %143 = sbr.rel (0) target = $region17
    $region16: #{poem_model_forward.9} parent=1 // pred_region
      %s145 = ssub.s32 512, 512
      %146 = vsyncadd [#allocation3], %s145
      %s147 = sshll.u32 [#allocation2], 4
      %s148 = int_to_ptr.vmem [resolvable:$true] %s147
      %153 = dma.vmem_to_hbm [thread:$0]  %s148, 512, %s3, [#allocation3], 256, 256, 16
    $region17: #{poem_model_forward.9} parent=1 // pred_fallthru
      _
    // Predicated region
    $region18: #{poem_model_forward.9} parent=1 // pred_check
      _
    $region19: #{poem_model_forward.9} parent=1 // pred_check_branch
      %155 = sbr.rel (0) target = $region21
    $region20: #{poem_model_forward.9} parent=1 // pred_region
      %156 = dma.done [#allocation3], 512
    $region21: #{poem_model_forward.9} parent=1 // pred_fallthru
      _
    %157 = vsyncpa [#allocation3], 1

// kernel: poem_model_forward.6
$region0: #{poem_model_forward.6}
  #allocation0 [shape = 'u32[]', space=smem, size = 0x4, offset = 0x4, fixed_abs, tag = 'smem constant byte address 0x4 - core index']
  #allocation1 [shape = 'u32[144,128]{1,0:T(1,128)}', space=vmem, size = 0x12000, scoped, tag = 'internal scratch']
  %s0 = inlined_call_operand.vmem [shape: f32[16,128], index: 0, kind: input, shape index: {}]
  %s1 = inlined_call_operand.vmem [shape: bf16[128,2048], index: 1, kind: input, shape index: {}]
  %s2 = inlined_call_operand.vmem [shape: bf16[2048,128], index: 2, kind: input, shape index: {}]
  %s3 = inlined_call_operand.vmem [shape: f32[1,128], index: 3, kind: input, shape index: {}]
  %s4 = inlined_call_operand.vmem [shape: f32[1,128], index: 4, kind: input, shape index: {}]
  %s5 = inlined_call_operand.vmem [shape: f32[16,128], index: 5, kind: output, shape index: {}]
  %s6 = sld [smem:[#allocation0]]
  $region30: #{poem_model_forward.6} parent=0
    _
  %s8 = ssub.s32 1, %s6
  %s9 = scalar_select 0, %s8, %s6
  // Predicated region
  $region2: #{poem_model_forward.6} parent=0 // pred_check
    _
  $region3: #{poem_model_forward.6} parent=0 // pred_check_branch
    %11 = sbr.rel (0) target = $region5
  $region4: #{poem_model_forward.6} parent=0 // pred_region
    _
  $region5: #{poem_model_forward.6} parent=0 // pred_fallthru
    _
  // Predicated region
  $region6: #{poem_model_forward.6} parent=0 // pred_check
    _
  $region7: #{poem_model_forward.6} parent=0 // pred_check_branch
    %13 = sbr.rel (0) target = $region9
  $region8: #{poem_model_forward.6} parent=0 // pred_region
    _
  $region9: #{poem_model_forward.6} parent=0 // pred_fallthru
    _
  // Predicated region
  $region10: #{poem_model_forward.6} parent=0 // pred_check
    _
  $region11: #{poem_model_forward.6} parent=0 // pred_check_branch
    %15 = sbr.rel (0) target = $region13
  $region12: #{poem_model_forward.6} parent=0 // pred_region
    _
  $region13: #{poem_model_forward.6} parent=0 // pred_fallthru
    _
  // Predicated region
  $region14: #{poem_model_forward.6} parent=0 // pred_check
    _
  $region15: #{poem_model_forward.6} parent=0 // pred_check_branch
    %17 = sbr.rel (0) target = $region17
  $region16: #{poem_model_forward.6} parent=0 // pred_region
    _
  $region17: #{poem_model_forward.6} parent=0 // pred_fallthru
    _
  // Predicated region
  $region18: #{poem_model_forward.6} parent=0 // pred_check
    _
  $region19: #{poem_model_forward.6} parent=0 // pred_check_branch
    %19 = sbr.rel (0) target = $region21
  $region20: #{poem_model_forward.6} parent=0 // pred_region
    _
  $region21: #{poem_model_forward.6} parent=0 // pred_fallthru
    _
  %v21 = vld [vmem:[%s0] sm:$0xff]
  %v22 = vld [vmem:[%s0 + $0x8] sm:$0xff]
  %v23 = vpack.c.bf16 %v22, %v21
  %v24 = vld [vmem:[%s1] sm:$0xff]
  %v25 = vld [vmem:[%s1 + $0x8] sm:$0xff]
  %v26 = vld [vmem:[%s1 + $0x10] sm:$0xff]
  %v27 = vld [vmem:[%s1 + $0x18] sm:$0xff]
  %v28 = vld [vmem:[%s1 + $0x20] sm:$0xff]
  %v29 = vld [vmem:[%s1 + $0x28] sm:$0xff]
  %v30 = vld [vmem:[%s1 + $0x30] sm:$0xff]
  %v31 = vld [vmem:[%s1 + $0x38] sm:$0xff]
  %v32 = vld [vmem:[%s1 + $0x40] sm:$0xff]
  %v33 = vld [vmem:[%s1 + $0x48] sm:$0xff]
  %v34 = vld [vmem:[%s1 + $0x50] sm:$0xff]
  %v35 = vld [vmem:[%s1 + $0x58] sm:$0xff]
  %v36 = vld [vmem:[%s1 + $0x60] sm:$0xff]
  %v37 = vld [vmem:[%s1 + $0x68] sm:$0xff]
  %v38 = vld [vmem:[%s1 + $0x70] sm:$0xff]
  %v39 = vld [vmem:[%s1 + $0x78] sm:$0xff]
  %v40 = vld [vmem:[%s1 + $0x80] sm:$0xff]
  %v41 = vld [vmem:[%s1 + $0x88] sm:$0xff]
  %v42 = vld [vmem:[%s1 + $0x90] sm:$0xff]
  %v43 = vld [vmem:[%s1 + $0x98] sm:$0xff]
  %v44 = vld [vmem:[%s1 + $0xa0] sm:$0xff]
  %v45 = vld [vmem:[%s1 + $0xa8] sm:$0xff]
  %v46 = vld [vmem:[%s1 + $0xb0] sm:$0xff]
  %v47 = vld [vmem:[%s1 + $0xb8] sm:$0xff]
  %v48 = vld [vmem:[%s1 + $0xc0] sm:$0xff]
  %v49 = vld [vmem:[%s1 + $0xc8] sm:$0xff]
  %v50 = vld [vmem:[%s1 + $0xd0] sm:$0xff]
  %v51 = vld [vmem:[%s1 + $0xd8] sm:$0xff]
  %v52 = vld [vmem:[%s1 + $0xe0] sm:$0xff]
  %v53 = vld [vmem:[%s1 + $0xe8] sm:$0xff]
  %v54 = vld [vmem:[%s1 + $0xf0] sm:$0xff]
  %v55 = vld [vmem:[%s1 + $0xf8] sm:$0xff]
  %v56 = vld [vmem:[%s1 + $0x100] sm:$0xff]
  %v57 = vld [vmem:[%s1 + $0x108] sm:$0xff]
  %v58 = vld [vmem:[%s1 + $0x110] sm:$0xff]
  %v59 = vld [vmem:[%s1 + $0x118] sm:$0xff]
  %v60 = vld [vmem:[%s1 + $0x120] sm:$0xff]
  %v61 = vld [vmem:[%s1 + $0x128] sm:$0xff]
  %v62 = vld [vmem:[%s1 + $0x130] sm:$0xff]
  %v63 = vld [vmem:[%s1 + $0x138] sm:$0xff]
  %v64 = vld [vmem:[%s1 + $0x140] sm:$0xff]
  %v65 = vld [vmem:[%s1 + $0x148] sm:$0xff]
  %v66 = vld [vmem:[%s1 + $0x150] sm:$0xff]
  %v67 = vld [vmem:[%s1 + $0x158] sm:$0xff]
  %v68 = vld [vmem:[%s1 + $0x160] sm:$0xff]
  %v69 = vld [vmem:[%s1 + $0x168] sm:$0xff]
  %v70 = vld [vmem:[%s1 + $0x170] sm:$0xff]
  %v71 = vld [vmem:[%s1 + $0x178] sm:$0xff]
  %v72 = vld [vmem:[%s1 + $0x180] sm:$0xff]
  %v73 = vld [vmem:[%s1 + $0x188] sm:$0xff]
  %v74 = vld [vmem:[%s1 + $0x190] sm:$0xff]
  %v75 = vld [vmem:[%s1 + $0x198] sm:$0xff]
  %v76 = vld [vmem:[%s1 + $0x1a0] sm:$0xff]
  %v77 = vld [vmem:[%s1 + $0x1a8] sm:$0xff]
  %v78 = vld [vmem:[%s1 + $0x1b0] sm:$0xff]
  %v79 = vld [vmem:[%s1 + $0x1b8] sm:$0xff]
  %v80 = vld [vmem:[%s1 + $0x1c0] sm:$0xff]
  %v81 = vld [vmem:[%s1 + $0x1c8] sm:$0xff]
  %v82 = vld [vmem:[%s1 + $0x1d0] sm:$0xff]
  %v83 = vld [vmem:[%s1 + $0x1d8] sm:$0xff]
  %v84 = vld [vmem:[%s1 + $0x1e0] sm:$0xff]
  %v85 = vld [vmem:[%s1 + $0x1e8] sm:$0xff]
  %v86 = vld [vmem:[%s1 + $0x1f0] sm:$0xff]
  %v87 = vld [vmem:[%s1 + $0x1f8] sm:$0xff]
  %v88 = vld [vmem:[%s1 + $0x200] sm:$0xff]
  %v89 = vld [vmem:[%s1 + $0x208] sm:$0xff]
  %v90 = vld [vmem:[%s1 + $0x210] sm:$0xff]
  %v91 = vld [vmem:[%s1 + $0x218] sm:$0xff]
  %v92 = vld [vmem:[%s1 + $0x220] sm:$0xff]
  %v93 = vld [vmem:[%s1 + $0x228] sm:$0xff]
  %v94 = vld [vmem:[%s1 + $0x230] sm:$0xff]
  %v95 = vld [vmem:[%s1 + $0x238] sm:$0xff]
  %v96 = vld [vmem:[%s1 + $0x240] sm:$0xff]
  %v97 = vld [vmem:[%s1 + $0x248] sm:$0xff]
  %v98 = vld [vmem:[%s1 + $0x250] sm:$0xff]
  %v99 = vld [vmem:[%s1 + $0x258] sm:$0xff]
  %v100 = vld [vmem:[%s1 + $0x260] sm:$0xff]
  %v101 = vld [vmem:[%s1 + $0x268] sm:$0xff]
  %v102 = vld [vmem:[%s1 + $0x270] sm:$0xff]
  %v103 = vld [vmem:[%s1 + $0x278] sm:$0xff]
  %v104 = vld [vmem:[%s1 + $0x280] sm:$0xff]
  %v105 = vld [vmem:[%s1 + $0x288] sm:$0xff]
  %v106 = vld [vmem:[%s1 + $0x290] sm:$0xff]
  %v107 = vld [vmem:[%s1 + $0x298] sm:$0xff]
  %v108 = vld [vmem:[%s1 + $0x2a0] sm:$0xff]
  %v109 = vld [vmem:[%s1 + $0x2a8] sm:$0xff]
  %v110 = vld [vmem:[%s1 + $0x2b0] sm:$0xff]
  %v111 = vld [vmem:[%s1 + $0x2b8] sm:$0xff]
  %v112 = vld [vmem:[%s1 + $0x2c0] sm:$0xff]
  %v113 = vld [vmem:[%s1 + $0x2c8] sm:$0xff]
  %v114 = vld [vmem:[%s1 + $0x2d0] sm:$0xff]
  %v115 = vld [vmem:[%s1 + $0x2d8] sm:$0xff]
  %v116 = vld [vmem:[%s1 + $0x2e0] sm:$0xff]
  %v117 = vld [vmem:[%s1 + $0x2e8] sm:$0xff]
  %v118 = vld [vmem:[%s1 + $0x2f0] sm:$0xff]
  %v119 = vld [vmem:[%s1 + $0x2f8] sm:$0xff]
  %v120 = vld [vmem:[%s1 + $0x300] sm:$0xff]
  %v121 = vld [vmem:[%s1 + $0x308] sm:$0xff]
  %v122 = vld [vmem:[%s1 + $0x310] sm:$0xff]
  %v123 = vld [vmem:[%s1 + $0x318] sm:$0xff]
  %v124 = vld [vmem:[%s1 + $0x320] sm:$0xff]
  %v125 = vld [vmem:[%s1 + $0x328] sm:$0xff]
  %v126 = vld [vmem:[%s1 + $0x330] sm:$0xff]
  %v127 = vld [vmem:[%s1 + $0x338] sm:$0xff]
  %v128 = vld [vmem:[%s1 + $0x340] sm:$0xff]
  %v129 = vld [vmem:[%s1 + $0x348] sm:$0xff]
  %v130 = vld [vmem:[%s1 + $0x350] sm:$0xff]
  %v131 = vld [vmem:[%s1 + $0x358] sm:$0xff]
  %v132 = vld [vmem:[%s1 + $0x360] sm:$0xff]
  %v133 = vld [vmem:[%s1 + $0x368] sm:$0xff]
  %v134 = vld [vmem:[%s1 + $0x370] sm:$0xff]
  %v135 = vld [vmem:[%s1 + $0x378] sm:$0xff]
  %v136 = vld [vmem:[%s1 + $0x380] sm:$0xff]
  %v137 = vld [vmem:[%s1 + $0x388] sm:$0xff]
  %v138 = vld [vmem:[%s1 + $0x390] sm:$0xff]
  %v139 = vld [vmem:[%s1 + $0x398] sm:$0xff]
  %v140 = vld [vmem:[%s1 + $0x3a0] sm:$0xff]
  %v141 = vld [vmem:[%s1 + $0x3a8] sm:$0xff]
  %v142 = vld [vmem:[%s1 + $0x3b0] sm:$0xff]
  %v143 = vld [vmem:[%s1 + $0x3b8] sm:$0xff]
  %v144 = vld [vmem:[%s1 + $0x3c0] sm:$0xff]
  %v145 = vld [vmem:[%s1 + $0x3c8] sm:$0xff]
  %v146 = vld [vmem:[%s1 + $0x3d0] sm:$0xff]
  %v147 = vld [vmem:[%s1 + $0x3d8] sm:$0xff]
  %v148 = vld [vmem:[%s1 + $0x3e0] sm:$0xff]
  %v149 = vld [vmem:[%s1 + $0x3e8] sm:$0xff]
  %v150 = vld [vmem:[%s1 + $0x3f0] sm:$0xff]
  %v151 = vld [vmem:[%s1 + $0x3f8] sm:$0xff]
  %v280 = vunpack.c.l.b16 %v24
  %v281 = vunpack.c.h.b16 %v24
  %v282 = vunpack.c.l.b16 %v25
  %v283 = vunpack.c.h.b16 %v25
  %v284 = vunpack.c.l.b16 %v26
  %v285 = vunpack.c.h.b16 %v26
  %v286 = vunpack.c.l.b16 %v27
  %v287 = vunpack.c.h.b16 %v27
  %v288 = vunpack.c.l.b16 %v28
  %v289 = vunpack.c.h.b16 %v28
  %v290 = vunpack.c.l.b16 %v29
  %v291 = vunpack.c.h.b16 %v29
  %v292 = vunpack.c.l.b16 %v30
  %v293 = vunpack.c.h.b16 %v30
  %v294 = vunpack.c.l.b16 %v31
  %v295 = vunpack.c.h.b16 %v31
  %v296 = vunpack.c.l.b16 %v32
  %v297 = vunpack.c.h.b16 %v32
  %v298 = vunpack.c.l.b16 %v33
  %v299 = vunpack.c.h.b16 %v33
  %v300 = vunpack.c.l.b16 %v34
  %v301 = vunpack.c.h.b16 %v34
  %v302 = vunpack.c.l.b16 %v35
  %v303 = vunpack.c.h.b16 %v35
  %v304 = vunpack.c.l.b16 %v36
  %v305 = vunpack.c.h.b16 %v36
  %v306 = vunpack.c.l.b16 %v37
  %v307 = vunpack.c.h.b16 %v37
  %v308 = vunpack.c.l.b16 %v38
  %v309 = vunpack.c.h.b16 %v38
  %v310 = vunpack.c.l.b16 %v39
  %v311 = vunpack.c.h.b16 %v39
  %v312 = vunpack.c.l.b16 %v40
  %v313 = vunpack.c.h.b16 %v40
  %v314 = vunpack.c.l.b16 %v41
  %v315 = vunpack.c.h.b16 %v41
  %v316 = vunpack.c.l.b16 %v42
  %v317 = vunpack.c.h.b16 %v42
  %v318 = vunpack.c.l.b16 %v43
  %v319 = vunpack.c.h.b16 %v43
  %v320 = vunpack.c.l.b16 %v44
  %v321 = vunpack.c.h.b16 %v44
  %v322 = vunpack.c.l.b16 %v45
  %v323 = vunpack.c.h.b16 %v45
  %v324 = vunpack.c.l.b16 %v46
  %v325 = vunpack.c.h.b16 %v46
  %v326 = vunpack.c.l.b16 %v47
  %v327 = vunpack.c.h.b16 %v47
  %v328 = vunpack.c.l.b16 %v48
  %v329 = vunpack.c.h.b16 %v48
  %v330 = vunpack.c.l.b16 %v49
  %v331 = vunpack.c.h.b16 %v49
  %v332 = vunpack.c.l.b16 %v50
  %v333 = vunpack.c.h.b16 %v50
  %v334 = vunpack.c.l.b16 %v51
  %v335 = vunpack.c.h.b16 %v51
  %v336 = vunpack.c.l.b16 %v52
  %v337 = vunpack.c.h.b16 %v52
  %v338 = vunpack.c.l.b16 %v53
  %v339 = vunpack.c.h.b16 %v53
  %v340 = vunpack.c.l.b16 %v54
  %v341 = vunpack.c.h.b16 %v54
  %v342 = vunpack.c.l.b16 %v55
  %v343 = vunpack.c.h.b16 %v55
  %v344 = vunpack.c.l.b16 %v56
  %v345 = vunpack.c.h.b16 %v56
  %v346 = vunpack.c.l.b16 %v57
  %v347 = vunpack.c.h.b16 %v57
  %v348 = vunpack.c.l.b16 %v58
  %v349 = vunpack.c.h.b16 %v58
  %v350 = vunpack.c.l.b16 %v59
  %v351 = vunpack.c.h.b16 %v59
  %v352 = vunpack.c.l.b16 %v60
  %v353 = vunpack.c.h.b16 %v60
  %v354 = vunpack.c.l.b16 %v61
  %v355 = vunpack.c.h.b16 %v61
  %v356 = vunpack.c.l.b16 %v62
  %v357 = vunpack.c.h.b16 %v62
  %v358 = vunpack.c.l.b16 %v63
  %v359 = vunpack.c.h.b16 %v63
  %v360 = vunpack.c.l.b16 %v64
  %v361 = vunpack.c.h.b16 %v64
  %v362 = vunpack.c.l.b16 %v65
  %v363 = vunpack.c.h.b16 %v65
  %v364 = vunpack.c.l.b16 %v66
  %v365 = vunpack.c.h.b16 %v66
  %v366 = vunpack.c.l.b16 %v67
  %v367 = vunpack.c.h.b16 %v67
  %v368 = vunpack.c.l.b16 %v68
  %v369 = vunpack.c.h.b16 %v68
  %v370 = vunpack.c.l.b16 %v69
  %v371 = vunpack.c.h.b16 %v69
  %v372 = vunpack.c.l.b16 %v70
  %v373 = vunpack.c.h.b16 %v70
  %v374 = vunpack.c.l.b16 %v71
  %v375 = vunpack.c.h.b16 %v71
  %v376 = vunpack.c.l.b16 %v72
  %v377 = vunpack.c.h.b16 %v72
  %v378 = vunpack.c.l.b16 %v73
  %v379 = vunpack.c.h.b16 %v73
  %v380 = vunpack.c.l.b16 %v74
  %v381 = vunpack.c.h.b16 %v74
  %v382 = vunpack.c.l.b16 %v75
  %v383 = vunpack.c.h.b16 %v75
  %v384 = vunpack.c.l.b16 %v76
  %v385 = vunpack.c.h.b16 %v76
  %v386 = vunpack.c.l.b16 %v77
  %v387 = vunpack.c.h.b16 %v77
  %v388 = vunpack.c.l.b16 %v78
  %v389 = vunpack.c.h.b16 %v78
  %v390 = vunpack.c.l.b16 %v79
  %v391 = vunpack.c.h.b16 %v79
  %v392 = vunpack.c.l.b16 %v80
  %v393 = vunpack.c.h.b16 %v80
  %v394 = vunpack.c.l.b16 %v81
  %v395 = vunpack.c.h.b16 %v81
  %v396 = vunpack.c.l.b16 %v82
  %v397 = vunpack.c.h.b16 %v82
  %v398 = vunpack.c.l.b16 %v83
  %v399 = vunpack.c.h.b16 %v83
  %v400 = vunpack.c.l.b16 %v84
  %v401 = vunpack.c.h.b16 %v84
  %v402 = vunpack.c.l.b16 %v85
  %v403 = vunpack.c.h.b16 %v85
  %v404 = vunpack.c.l.b16 %v86
  %v405 = vunpack.c.h.b16 %v86
  %v406 = vunpack.c.l.b16 %v87
  %v407 = vunpack.c.h.b16 %v87
  %v408 = vunpack.c.l.b16 %v88
  %v409 = vunpack.c.h.b16 %v88
  %v410 = vunpack.c.l.b16 %v89
  %v411 = vunpack.c.h.b16 %v89
  %v412 = vunpack.c.l.b16 %v90
  %v413 = vunpack.c.h.b16 %v90
  %v414 = vunpack.c.l.b16 %v91
  %v415 = vunpack.c.h.b16 %v91
  %v416 = vunpack.c.l.b16 %v92
  %v417 = vunpack.c.h.b16 %v92
  %v418 = vunpack.c.l.b16 %v93
  %v419 = vunpack.c.h.b16 %v93
  %v420 = vunpack.c.l.b16 %v94
  %v421 = vunpack.c.h.b16 %v94
  %v422 = vunpack.c.l.b16 %v95
  %v423 = vunpack.c.h.b16 %v95
  %v424 = vunpack.c.l.b16 %v96
  %v425 = vunpack.c.h.b16 %v96
  %v426 = vunpack.c.l.b16 %v97
  %v427 = vunpack.c.h.b16 %v97
  %v428 = vunpack.c.l.b16 %v98
  %v429 = vunpack.c.h.b16 %v98
  %v430 = vunpack.c.l.b16 %v99
  %v431 = vunpack.c.h.b16 %v99
  %v432 = vunpack.c.l.b16 %v100
  %v433 = vunpack.c.h.b16 %v100
  %v434 = vunpack.c.l.b16 %v101
  %v435 = vunpack.c.h.b16 %v101
  %v436 = vunpack.c.l.b16 %v102
  %v437 = vunpack.c.h.b16 %v102
  %v438 = vunpack.c.l.b16 %v103
  %v439 = vunpack.c.h.b16 %v103
  %v440 = vunpack.c.l.b16 %v104
  %v441 = vunpack.c.h.b16 %v104
  %v442 = vunpack.c.l.b16 %v105
  %v443 = vunpack.c.h.b16 %v105
  %v444 = vunpack.c.l.b16 %v106
  %v445 = vunpack.c.h.b16 %v106
  %v446 = vunpack.c.l.b16 %v107
  %v447 = vunpack.c.h.b16 %v107
  %v448 = vunpack.c.l.b16 %v108
  %v449 = vunpack.c.h.b16 %v108
  %v450 = vunpack.c.l.b16 %v109
  %v451 = vunpack.c.h.b16 %v109
  %v452 = vunpack.c.l.b16 %v110
  %v453 = vunpack.c.h.b16 %v110
  %v454 = vunpack.c.l.b16 %v111
  %v455 = vunpack.c.h.b16 %v111
  %v456 = vunpack.c.l.b16 %v112
  %v457 = vunpack.c.h.b16 %v112
  %v458 = vunpack.c.l.b16 %v113
  %v459 = vunpack.c.h.b16 %v113
  %v460 = vunpack.c.l.b16 %v114
  %v461 = vunpack.c.h.b16 %v114
  %v462 = vunpack.c.l.b16 %v115
  %v463 = vunpack.c.h.b16 %v115
  %v464 = vunpack.c.l.b16 %v116
  %v465 = vunpack.c.h.b16 %v116
  %v466 = vunpack.c.l.b16 %v117
  %v467 = vunpack.c.h.b16 %v117
  %v468 = vunpack.c.l.b16 %v118
  %v469 = vunpack.c.h.b16 %v118
  %v470 = vunpack.c.l.b16 %v119
  %v471 = vunpack.c.h.b16 %v119
  %v472 = vunpack.c.l.b16 %v120
  %v473 = vunpack.c.h.b16 %v120
  %v474 = vunpack.c.l.b16 %v121
  %v475 = vunpack.c.h.b16 %v121
  %v476 = vunpack.c.l.b16 %v122
  %v477 = vunpack.c.h.b16 %v122
  %v478 = vunpack.c.l.b16 %v123
  %v479 = vunpack.c.h.b16 %v123
  %v480 = vunpack.c.l.b16 %v124
  %v481 = vunpack.c.h.b16 %v124
  %v482 = vunpack.c.l.b16 %v125
  %v483 = vunpack.c.h.b16 %v125
  %v484 = vunpack.c.l.b16 %v126
  %v485 = vunpack.c.h.b16 %v126
  %v486 = vunpack.c.l.b16 %v127
  %v487 = vunpack.c.h.b16 %v127
  %v488 = vunpack.c.l.b16 %v128
  %v489 = vunpack.c.h.b16 %v128
  %v490 = vunpack.c.l.b16 %v129
  %v491 = vunpack.c.h.b16 %v129
  %v492 = vunpack.c.l.b16 %v130
  %v493 = vunpack.c.h.b16 %v130
  %v494 = vunpack.c.l.b16 %v131
  %v495 = vunpack.c.h.b16 %v131
  %v496 = vunpack.c.l.b16 %v132
  %v497 = vunpack.c.h.b16 %v132
  %v498 = vunpack.c.l.b16 %v133
  %v499 = vunpack.c.h.b16 %v133
  %v500 = vunpack.c.l.b16 %v134
  %v501 = vunpack.c.h.b16 %v134
  %v502 = vunpack.c.l.b16 %v135
  %v503 = vunpack.c.h.b16 %v135
  %v504 = vunpack.c.l.b16 %v136
  %v505 = vunpack.c.h.b16 %v136
  %v506 = vunpack.c.l.b16 %v137
  %v507 = vunpack.c.h.b16 %v137
  %v508 = vunpack.c.l.b16 %v138
  %v509 = vunpack.c.h.b16 %v138
  %v510 = vunpack.c.l.b16 %v139
  %v511 = vunpack.c.h.b16 %v139
  %v512 = vunpack.c.l.b16 %v140
  %v513 = vunpack.c.h.b16 %v140
  %v514 = vunpack.c.l.b16 %v141
  %v515 = vunpack.c.h.b16 %v141
  %v516 = vunpack.c.l.b16 %v142
  %v517 = vunpack.c.h.b16 %v142
  %v518 = vunpack.c.l.b16 %v143
  %v519 = vunpack.c.h.b16 %v143
  %v520 = vunpack.c.l.b16 %v144
  %v521 = vunpack.c.h.b16 %v144
  %v522 = vunpack.c.l.b16 %v145
  %v523 = vunpack.c.h.b16 %v145
  %v524 = vunpack.c.l.b16 %v146
  %v525 = vunpack.c.h.b16 %v146
  %v526 = vunpack.c.l.b16 %v147
  %v527 = vunpack.c.h.b16 %v147
  %v528 = vunpack.c.l.b16 %v148
  %v529 = vunpack.c.h.b16 %v148
  %v530 = vunpack.c.l.b16 %v149
  %v531 = vunpack.c.h.b16 %v149
  %v532 = vunpack.c.l.b16 %v150
  %v533 = vunpack.c.h.b16 %v150
  %v534 = vunpack.c.l.b16 %v151
  %v535 = vunpack.c.h.b16 %v151
  %v536 = vpack.c.b16 %v296, %v280
  %v537 = vpack.c.b16 %v297, %v281
  %v538 = vpack.c.b16 %v298, %v282
  %v539 = vpack.c.b16 %v299, %v283
  %v540 = vpack.c.b16 %v300, %v284
  %v541 = vpack.c.b16 %v301, %v285
  %v542 = vpack.c.b16 %v302, %v286
  %v543 = vpack.c.b16 %v303, %v287
  %v544 = vpack.c.b16 %v304, %v288
  %v545 = vpack.c.b16 %v305, %v289
  %v546 = vpack.c.b16 %v306, %v290
  %v547 = vpack.c.b16 %v307, %v291
  %v548 = vpack.c.b16 %v308, %v292
  %v549 = vpack.c.b16 %v309, %v293
  %v550 = vpack.c.b16 %v310, %v294
  %v551 = vpack.c.b16 %v311, %v295
  %v552 = vpack.c.b16 %v328, %v312
  %v553 = vpack.c.b16 %v329, %v313
  %v554 = vpack.c.b16 %v330, %v314
  %v555 = vpack.c.b16 %v331, %v315
  %v556 = vpack.c.b16 %v332, %v316
  %v557 = vpack.c.b16 %v333, %v317
  %v558 = vpack.c.b16 %v334, %v318
  %v559 = vpack.c.b16 %v335, %v319
  %v560 = vpack.c.b16 %v336, %v320
  %v561 = vpack.c.b16 %v337, %v321
  %v562 = vpack.c.b16 %v338, %v322
  %v563 = vpack.c.b16 %v339, %v323
  %v564 = vpack.c.b16 %v340, %v324
  %v565 = vpack.c.b16 %v341, %v325
  %v566 = vpack.c.b16 %v342, %v326
  %v567 = vpack.c.b16 %v343, %v327
  %v568 = vpack.c.b16 %v360, %v344
  %v569 = vpack.c.b16 %v361, %v345
  %v570 = vpack.c.b16 %v362, %v346
  %v571 = vpack.c.b16 %v363, %v347
  %v572 = vpack.c.b16 %v364, %v348
  %v573 = vpack.c.b16 %v365, %v349
  %v574 = vpack.c.b16 %v366, %v350
  %v575 = vpack.c.b16 %v367, %v351
  %v576 = vpack.c.b16 %v368, %v352
  %v577 = vpack.c.b16 %v369, %v353
  %v578 = vpack.c.b16 %v370, %v354
  %v579 = vpack.c.b16 %v371, %v355
  %v580 = vpack.c.b16 %v372, %v356
  %v581 = vpack.c.b16 %v373, %v357
  %v582 = vpack.c.b16 %v374, %v358
  %v583 = vpack.c.b16 %v375, %v359
  %v584 = vpack.c.b16 %v392, %v376
  %v585 = vpack.c.b16 %v393, %v377
  %v586 = vpack.c.b16 %v394, %v378
  %v587 = vpack.c.b16 %v395, %v379
  %v588 = vpack.c.b16 %v396, %v380
  %v589 = vpack.c.b16 %v397, %v381
  %v590 = vpack.c.b16 %v398, %v382
  %v591 = vpack.c.b16 %v399, %v383
  %v592 = vpack.c.b16 %v400, %v384
  %v593 = vpack.c.b16 %v401, %v385
  %v594 = vpack.c.b16 %v402, %v386
  %v595 = vpack.c.b16 %v403, %v387
  %v596 = vpack.c.b16 %v404, %v388
  %v597 = vpack.c.b16 %v405, %v389
  %v598 = vpack.c.b16 %v406, %v390
  %v599 = vpack.c.b16 %v407, %v391
  %v600 = vpack.c.b16 %v424, %v408
  %v601 = vpack.c.b16 %v425, %v409
  %v602 = vpack.c.b16 %v426, %v410
  %v603 = vpack.c.b16 %v427, %v411
  %v604 = vpack.c.b16 %v428, %v412
  %v605 = vpack.c.b16 %v429, %v413
  %v606 = vpack.c.b16 %v430, %v414
  %v607 = vpack.c.b16 %v431, %v415
  %v608 = vpack.c.b16 %v432, %v416
  %v609 = vpack.c.b16 %v433, %v417
  %v610 = vpack.c.b16 %v434, %v418
  %v611 = vpack.c.b16 %v435, %v419
  %v612 = vpack.c.b16 %v436, %v420
  %v613 = vpack.c.b16 %v437, %v421
  %v614 = vpack.c.b16 %v438, %v422
  %v615 = vpack.c.b16 %v439, %v423
  %v616 = vpack.c.b16 %v456, %v440
  %v617 = vpack.c.b16 %v457, %v441
  %v618 = vpack.c.b16 %v458, %v442
  %v619 = vpack.c.b16 %v459, %v443
  %v620 = vpack.c.b16 %v460, %v444
  %v621 = vpack.c.b16 %v461, %v445
  %v622 = vpack.c.b16 %v462, %v446
  %v623 = vpack.c.b16 %v463, %v447
  %v624 = vpack.c.b16 %v464, %v448
  %v625 = vpack.c.b16 %v465, %v449
  %v626 = vpack.c.b16 %v466, %v450
  %v627 = vpack.c.b16 %v467, %v451
  %v628 = vpack.c.b16 %v468, %v452
  %v629 = vpack.c.b16 %v469, %v453
  %v630 = vpack.c.b16 %v470, %v454
  %v631 = vpack.c.b16 %v471, %v455
  %v632 = vpack.c.b16 %v488, %v472
  %v633 = vpack.c.b16 %v489, %v473
  %v634 = vpack.c.b16 %v490, %v474
  %v635 = vpack.c.b16 %v491, %v475
  %v636 = vpack.c.b16 %v492, %v476
  %v637 = vpack.c.b16 %v493, %v477
  %v638 = vpack.c.b16 %v494, %v478
  %v639 = vpack.c.b16 %v495, %v479
  %v640 = vpack.c.b16 %v496, %v480
  %v641 = vpack.c.b16 %v497, %v481
  %v642 = vpack.c.b16 %v498, %v482
  %v643 = vpack.c.b16 %v499, %v483
  %v644 = vpack.c.b16 %v500, %v484
  %v645 = vpack.c.b16 %v501, %v485
  %v646 = vpack.c.b16 %v502, %v486
  %v647 = vpack.c.b16 %v503, %v487
  %v648 = vpack.c.b16 %v520, %v504
  %v649 = vpack.c.b16 %v521, %v505
  %v650 = vpack.c.b16 %v522, %v506
  %v651 = vpack.c.b16 %v523, %v507
  %v652 = vpack.c.b16 %v524, %v508
  %v653 = vpack.c.b16 %v525, %v509
  %v654 = vpack.c.b16 %v526, %v510
  %v655 = vpack.c.b16 %v527, %v511
  %v656 = vpack.c.b16 %v528, %v512
  %v657 = vpack.c.b16 %v529, %v513
  %v658 = vpack.c.b16 %v530, %v514
  %v659 = vpack.c.b16 %v531, %v515
  %v660 = vpack.c.b16 %v532, %v516
  %v661 = vpack.c.b16 %v533, %v517
  %v662 = vpack.c.b16 %v534, %v518
  %v663 = vpack.c.b16 %v535, %v519
  %792 = vmatprep.subr.bf16.mxu0 %v537
  %793 = vmatpush1.bf16.msra.mxu0 %v536
  %794 = vmatprep.subr.bf16.mxu0 %v553
  %795 = vmatpush1.bf16.msra.mxu0 %v552
  %796 = vmatprep.subr.bf16.mxu0 %v569
  %797 = vmatpush1.bf16.msra.mxu0 %v568
  %798 = vmatprep.subr.bf16.mxu0 %v585
  %799 = vmatpush1.bf16.msra.mxu0 %v584
  %800 = vmatprep.subr.bf16.mxu0 %v601
  %801 = vmatpush1.bf16.msra.mxu0 %v600
  %802 = vmatprep.subr.bf16.mxu0 %v617
  %803 = vmatpush1.bf16.msra.mxu0 %v616
  %804 = vmatprep.subr.bf16.mxu0 %v633
  %805 = vmatpush1.bf16.msra.mxu0 %v632
  %806 = vmatprep.subr.bf16.mxu0 %v649
  %807 = vmatpush1.bf16.msra.mxu0 %v648
  %808 = vmatprep.subr.bf16.mxu0 0
  %809 = vmatpush1.bf16.msra.mxu0 0
  %810 = vmatprep.subr.bf16.mxu0 0
  %811 = vmatpush1.bf16.msra.mxu0 0
  %812 = vmatprep.subr.bf16.mxu0 0
  %813 = vmatpush1.bf16.msra.mxu0 0
  %814 = vmatprep.subr.bf16.mxu0 0
  %815 = vmatpush1.bf16.msra.mxu0 0
  %816 = vmatprep.subr.bf16.mxu0 0
  %817 = vmatpush1.bf16.msra.mxu0 0
  %818 = vmatprep.subr.bf16.mxu0 0
  %819 = vmatpush1.bf16.msra.mxu0 0
  %820 = vmatprep.subr.bf16.mxu0 0
  %821 = vmatpush1.bf16.msra.mxu0 0
  %822 = vmatprep.subr.bf16.mxu0 0
  %823 = vmatpush1.bf16.msra.mxu0 0
  %824 = vmatprep.mubr.bf16.mxu0 0
  %825 = vmatmul.mubr.bf16.gmra.mrb[0].mxu0 %v23
  %v826 = vpop.f32.mrb[0].mxu0
  %v827 = vadd.f32 0.0, %v826
  %v828 = vpop.f32.mrb[0].mxu0
  %v829 = vadd.f32 0.0, %v828
  %v830 = vpop.f32.mrb[0].mxu0
  %v831 = vadd.f32 0.0, %v830
  %v832 = vpop.f32.mrb[0].mxu0
  %v833 = vadd.f32 0.0, %v832
  %834 = vdwg.mxu0
  %835 = vmatprep.subr.bf16.mxu0 %v539
  %836 = vmatpush1.bf16.msra.mxu0 %v538
  %837 = vmatprep.subr.bf16.mxu0 %v555
  %838 = vmatpush1.bf16.msra.mxu0 %v554
  %839 = vmatprep.subr.bf16.mxu0 %v571
  %840 = vmatpush1.bf16.msra.mxu0 %v570
  %841 = vmatprep.subr.bf16.mxu0 %v587
  %842 = vmatpush1.bf16.msra.mxu0 %v586
  %843 = vmatprep.subr.bf16.mxu0 %v603
  %844 = vmatpush1.bf16.msra.mxu0 %v602
  %845 = vmatprep.subr.bf16.mxu0 %v619
  %846 = vmatpush1.bf16.msra.mxu0 %v618
  %847 = vmatprep.subr.bf16.mxu0 %v635
  %848 = vmatpush1.bf16.msra.mxu0 %v634
  %849 = vmatprep.subr.bf16.mxu0 %v651
  %850 = vmatpush1.bf16.msra.mxu0 %v650
  %851 = vmatprep.subr.bf16.mxu0 0
  %852 = vmatpush1.bf16.msra.mxu0 0
  %853 = vmatprep.subr.bf16.mxu0 0
  %854 = vmatpush1.bf16.msra.mxu0 0
  %855 = vmatprep.subr.bf16.mxu0 0
  %856 = vmatpush1.bf16.msra.mxu0 0
  %857 = vmatprep.subr.bf16.mxu0 0
  %858 = vmatpush1.bf16.msra.mxu0 0
  %859 = vmatprep.subr.bf16.mxu0 0
  %860 = vmatpush1.bf16.msra.mxu0 0
  %861 = vmatprep.subr.bf16.mxu0 0
  %862 = vmatpush1.bf16.msra.mxu0 0
  %863 = vmatprep.subr.bf16.mxu0 0
  %864 = vmatpush1.bf16.msra.mxu0 0
  %865 = vmatprep.subr.bf16.mxu0 0
  %866 = vmatpush1.bf16.msra.mxu0 0
  %867 = vmatprep.mubr.bf16.mxu0 0
  %868 = vmatmul.mubr.bf16.gmra.mrb[0].mxu0 %v23
  %v869 = vpop.f32.mrb[0].mxu0
  %v870 = vadd.f32 0.0, %v869
  %v871 = vpop.f32.mrb[0].mxu0
  %v872 = vadd.f32 0.0, %v871
  %v873 = vpop.f32.mrb[0].mxu0
  %v874 = vadd.f32 0.0, %v873
  %v875 = vpop.f32.mrb[0].mxu0
  %v876 = vadd.f32 0.0, %v875
  %877 = vdwg.mxu0
  %878 = vmatprep.subr.bf16.mxu0 %v541
  %879 = vmatpush1.bf16.msra.mxu0 %v540
  %880 = vmatprep.subr.bf16.mxu0 %v557
  %881 = vmatpush1.bf16.msra.mxu0 %v556
  %882 = vmatprep.subr.bf16.mxu0 %v573
  %883 = vmatpush1.bf16.msra.mxu0 %v572
  %884 = vmatprep.subr.bf16.mxu0 %v589
  %885 = vmatpush1.bf16.msra.mxu0 %v588
  %886 = vmatprep.subr.bf16.mxu0 %v605
  %887 = vmatpush1.bf16.msra.mxu0 %v604
  %888 = vmatprep.subr.bf16.mxu0 %v621
  %889 = vmatpush1.bf16.msra.mxu0 %v620
  %890 = vmatprep.subr.bf16.mxu0 %v637
  %891 = vmatpush1.bf16.msra.mxu0 %v636
  %892 = vmatprep.subr.bf16.mxu0 %v653
  %893 = vmatpush1.bf16.msra.mxu0 %v652
  %894 = vmatprep.subr.bf16.mxu0 0
  %895 = vmatpush1.bf16.msra.mxu0 0
  %896 = vmatprep.subr.bf16.mxu0 0
  %897 = vmatpush1.bf16.msra.mxu0 0
  %898 = vmatprep.subr.bf16.mxu0 0
  %899 = vmatpush1.bf16.msra.mxu0 0
  %900 = vmatprep.subr.bf16.mxu0 0
  %901 = vmatpush1.bf16.msra.mxu0 0
  %902 = vmatprep.subr.bf16.mxu0 0
  %903 = vmatpush1.bf16.msra.mxu0 0
  %904 = vmatprep.subr.bf16.mxu0 0
  %905 = vmatpush1.bf16.msra.mxu0 0
  %906 = vmatprep.subr.bf16.mxu0 0
  %907 = vmatpush1.bf16.msra.mxu0 0
  %908 = vmatprep.subr.bf16.mxu0 0
  %909 = vmatpush1.bf16.msra.mxu0 0
  %910 = vmatprep.mubr.bf16.mxu0 0
  %911 = vmatmul.mubr.bf16.gmra.mrb[0].mxu0 %v23
  %v912 = vpop.f32.mrb[0].mxu0
  %v913 = vadd.f32 0.0, %v912
  %v914 = vpop.f32.mrb[0].mxu0
  %v915 = vadd.f32 0.0, %v914
  %v916 = vpop.f32.mrb[0].mxu0
  %v917 = vadd.f32 0.0, %v916
  %v918 = vpop.f32.mrb[0].mxu0
  %v919 = vadd.f32 0.0, %v918
  %920 = vdwg.mxu0
  %921 = vmatprep.subr.bf16.mxu0 %v543
  %922 = vmatpush1.bf16.msra.mxu0 %v542
  %923 = vmatprep.subr.bf16.mxu0 %v559
  %924 = vmatpush1.bf16.msra.mxu0 %v558
  %925 = vmatprep.subr.bf16.mxu0 %v575
  %926 = vmatpush1.bf16.msra.mxu0 %v574
  %927 = vmatprep.subr.bf16.mxu0 %v591
  %928 = vmatpush1.bf16.msra.mxu0 %v590
  %929 = vmatprep.subr.bf16.mxu0 %v607
  %930 = vmatpush1.bf16.msra.mxu0 %v606
  %931 = vmatprep.subr.bf16.mxu0 %v623
  %932 = vmatpush1.bf16.msra.mxu0 %v622
  %933 = vmatprep.subr.bf16.mxu0 %v639
  %934 = vmatpush1.bf16.msra.mxu0 %v638
  %935 = vmatprep.subr.bf16.mxu0 %v655
  %936 = vmatpush1.bf16.msra.mxu0 %v654
  %937 = vmatprep.subr.bf16.mxu0 0
  %938 = vmatpush1.bf16.msra.mxu0 0
  %939 = vmatprep.subr.bf16.mxu0 0
  %940 = vmatpush1.bf16.msra.mxu0 0
  %941 = vmatprep.subr.bf16.mxu0 0
  %942 = vmatpush1.bf16.msra.mxu0 0
  %943 = vmatprep.subr.bf16.mxu0 0
  %944 = vmatpush1.bf16.msra.mxu0 0
  %945 = vmatprep.subr.bf16.mxu0 0
  %946 = vmatpush1.bf16.msra.mxu0 0
  %947 = vmatprep.subr.bf16.mxu0 0
  %948 = vmatpush1.bf16.msra.mxu0 0
  %949 = vmatprep.subr.bf16.mxu0 0
  %950 = vmatpush1.bf16.msra.mxu0 0
  %951 = vmatprep.subr.bf16.mxu0 0
  %952 = vmatpush1.bf16.msra.mxu0 0
  %953 = vmatprep.mubr.bf16.mxu0 0
  %954 = vmatmul.mubr.bf16.gmra.mrb[0].mxu0 %v23
  %v955 = vpop.f32.mrb[0].mxu0
  %v956 = vadd.f32 0.0, %v955
  %v957 = vpop.f32.mrb[0].mxu0
  %v958 = vadd.f32 0.0, %v957
  %v959 = vpop.f32.mrb[0].mxu0
  %v960 = vadd.f32 0.0, %v959
  %v961 = vpop.f32.mrb[0].mxu0
  %v962 = vadd.f32 0.0, %v961
  %963 = vdwg.mxu0
  %964 = vmatprep.subr.bf16.mxu0 %v545
  %965 = vmatpush1.bf16.msra.mxu0 %v544
  %966 = vmatprep.subr.bf16.mxu0 %v561
  %967 = vmatpush1.bf16.msra.mxu0 %v560
  %968 = vmatprep.subr.bf16.mxu0 %v577
  %969 = vmatpush1.bf16.msra.mxu0 %v576
  %970 = vmatprep.subr.bf16.mxu0 %v593
  %971 = vmatpush1.bf16.msra.mxu0 %v592
  %972 = vmatprep.subr.bf16.mxu0 %v609
  %973 = vmatpush1.bf16.msra.mxu0 %v608
  %974 = vmatprep.subr.bf16.mxu0 %v625
  %975 = vmatpush1.bf16.msra.mxu0 %v624
  %976 = vmatprep.subr.bf16.mxu0 %v641
  %977 = vmatpush1.bf16.msra.mxu0 %v640
  %978 = vmatprep.subr.bf16.mxu0 %v657
  %979 = vmatpush1.bf16.msra.mxu0 %v656
  %980 = vmatprep.subr.bf16.mxu0 0
  %981 = vmatpush1.bf16.msra.mxu0 0
  %982 = vmatprep.subr.bf16.mxu0 0
  %983 = vmatpush1.bf16.msra.mxu0 0
  %984 = vmatprep.subr.bf16.mxu0 0
  %985 = vmatpush1.bf16.msra.mxu0 0
  %986 = vmatprep.subr.bf16.mxu0 0
  %987 = vmatpush1.bf16.msra.mxu0 0
  %988 = vmatprep.subr.bf16.mxu0 0
  %989 = vmatpush1.bf16.msra.mxu0 0
  %990 = vmatprep.subr.bf16.mxu0 0
  %991 = vmatpush1.bf16.msra.mxu0 0
  %992 = vmatprep.subr.bf16.mxu0 0
  %993 = vmatpush1.bf16.msra.mxu0 0
  %994 = vmatprep.subr.bf16.mxu0 0
  %995 = vmatpush1.bf16.msra.mxu0 0
  %996 = vmatprep.mubr.bf16.mxu0 0
  %997 = vmatmul.mubr.bf16.gmra.mrb[0].mxu0 %v23
  %v998 = vpop.f32.mrb[0].mxu0
  %v999 = vadd.f32 0.0, %v998
  %v1000 = vpop.f32.mrb[0].mxu0
  %v1001 = vadd.f32 0.0, %v1000
  %v1002 = vpop.f32.mrb[0].mxu0
  %v1003 = vadd.f32 0.0, %v1002
  %v1004 = vpop.f32.mrb[0].mxu0
  %v1005 = vadd.f32 0.0, %v1004
  %1006 = vdwg.mxu0
  %1007 = vmatprep.subr.bf16.mxu0 %v547
  %1008 = vmatpush1.bf16.msra.mxu0 %v546
  %1009 = vmatprep.subr.bf16.mxu0 %v563
  %1010 = vmatpush1.bf16.msra.mxu0 %v562
  %1011 = vmatprep.subr.bf16.mxu0 %v579
  %1012 = vmatpush1.bf16.msra.mxu0 %v578
  %1013 = vmatprep.subr.bf16.mxu0 %v595
  %1014 = vmatpush1.bf16.msra.mxu0 %v594
  %1015 = vmatprep.subr.bf16.mxu0 %v611
  %1016 = vmatpush1.bf16.msra.mxu0 %v610
  %1017 = vmatprep.subr.bf16.mxu0 %v627
  %1018 = vmatpush1.bf16.msra.mxu0 %v626
  %1019 = vmatprep.subr.bf16.mxu0 %v643
  %1020 = vmatpush1.bf16.msra.mxu0 %v642
  %1021 = vmatprep.subr.bf16.mxu0 %v659
  %1022 = vmatpush1.bf16.msra.mxu0 %v658
  %1023 = vmatprep.subr.bf16.mxu0 0
  %1024 = vmatpush1.bf16.msra.mxu0 0
  %1025 = vmatprep.subr.bf16.mxu0 0
  %1026 = vmatpush1.bf16.msra.mxu0 0
  %1027 = vmatprep.subr.bf16.mxu0 0
  %1028 = vmatpush1.bf16.msra.mxu0 0
  %1029 = vmatprep.subr.bf16.mxu0 0
  %1030 = vmatpush1.bf16.msra.mxu0 0
  %1031 = vmatprep.subr.bf16.mxu0 0
  %1032 = vmatpush1.bf16.msra.mxu0 0
  %1033 = vmatprep.subr.bf16.mxu0 0
  %1034 = vmatpush1.bf16.msra.mxu0 0
  %1035 = vmatprep.subr.bf16.mxu0 0
  %1036 = vmatpush1.bf16.msra.mxu0 0
  %1037 = vmatprep.subr.bf16.mxu0 0
  %1038 = vmatpush1.bf16.msra.mxu0 0
  %1039 = vmatprep.mubr.bf16.mxu0 0
  %1040 = vmatmul.mubr.bf16.gmra.mrb[0].mxu0 %v23
  %v1041 = vpop.f32.mrb[0].mxu0
  %v1042 = vadd.f32 0.0, %v1041
  %v1043 = vpop.f32.mrb[0].mxu0
  %v1044 = vadd.f32 0.0, %v1043
  %v1045 = vpop.f32.mrb[0].mxu0
  %v1046 = vadd.f32 0.0, %v1045
  %v1047 = vpop.f32.mrb[0].mxu0
  %v1048 = vadd.f32 0.0, %v1047
  %1049 = vdwg.mxu0
  %1050 = vmatprep.subr.bf16.mxu0 %v549
  %1051 = vmatpush1.bf16.msra.mxu0 %v548
  %1052 = vmatprep.subr.bf16.mxu0 %v565
  %1053 = vmatpush1.bf16.msra.mxu0 %v564
  %1054 = vmatprep.subr.bf16.mxu0 %v581
  %1055 = vmatpush1.bf16.msra.mxu0 %v580
  %1056 = vmatprep.subr.bf16.mxu0 %v597
  %1057 = vmatpush1.bf16.msra.mxu0 %v596
  %1058 = vmatprep.subr.bf16.mxu0 %v613
  %1059 = vmatpush1.bf16.msra.mxu0 %v612
  %1060 = vmatprep.subr.bf16.mxu0 %v629
  %1061 = vmatpush1.bf16.msra.mxu0 %v628
  %1062 = vmatprep.subr.bf16.mxu0 %v645
  %1063 = vmatpush1.bf16.msra.mxu0 %v644
  %1064 = vmatprep.subr.bf16.mxu0 %v661
  %1065 = vmatpush1.bf16.msra.mxu0 %v660
  %1066 = vmatprep.subr.bf16.mxu0 0
  %1067 = vmatpush1.bf16.msra.mxu0 0
  %1068 = vmatprep.subr.bf16.mxu0 0
  %1069 = vmatpush1.bf16.msra.mxu0 0
  %1070 = vmatprep.subr.bf16.mxu0 0
  %1071 = vmatpush1.bf16.msra.mxu0 0
  %1072 = vmatprep.subr.bf16.mxu0 0
  %1073 = vmatpush1.bf16.msra.mxu0 0
  %1074 = vmatprep.subr.bf16.mxu0 0
  %1075 = vmatpush1.bf16.msra.mxu0 0
  %1076 = vmatprep.subr.bf16.mxu0 0
  %1077 = vmatpush1.bf16.msra.mxu0 0
  %1078 = vmatprep.subr.bf16.mxu0 0
  %1079 = vmatpush1.bf16.msra.mxu0 0
  %1080 = vmatprep.subr.bf16.mxu0 0
  %1081 = vmatpush1.bf16.msra.mxu0 0
  %1082 = vmatprep.mubr.bf16.mxu0 0
  %1083 = vmatmul.mubr.bf16.gmra.mrb[0].mxu0 %v23
  %v1084 = vpop.f32.mrb[0].mxu0
  %v1085 = vadd.f32 0.0, %v1084
  %v1086 = vpop.f32.mrb[0].mxu0
  %v1087 = vadd.f32 0.0, %v1086
  %v1088 = vpop.f32.mrb[0].mxu0
  %v1089 = vadd.f32 0.0, %v1088
  %v1090 = vpop.f32.mrb[0].mxu0
  %v1091 = vadd.f32 0.0, %v1090
  %1092 = vdwg.mxu0
  %1093 = vmatprep.subr.bf16.mxu0 %v551
  %1094 = vmatpush1.bf16.msra.mxu0 %v550
  %1095 = vmatprep.subr.bf16.mxu0 %v567
  %1096 = vmatpush1.bf16.msra.mxu0 %v566
  %1097 = vmatprep.subr.bf16.mxu0 %v583
  %1098 = vmatpush1.bf16.msra.mxu0 %v582
  %1099 = vmatprep.subr.bf16.mxu0 %v599
  %1100 = vmatpush1.bf16.msra.mxu0 %v598
  %1101 = vmatprep.subr.bf16.mxu0 %v615
  %1102 = vmatpush1.bf16.msra.mxu0 %v614
  %1103 = vmatprep.subr.bf16.mxu0 %v631
  %1104 = vmatpush1.bf16.msra.mxu0 %v630
  %1105 = vmatprep.subr.bf16.mxu0 %v647
  %1106 = vmatpush1.bf16.msra.mxu0 %v646
  %1107 = vmatprep.subr.bf16.mxu0 %v663
  %1108 = vmatpush1.bf16.msra.mxu0 %v662
  %1109 = vmatprep.subr.bf16.mxu0 0
  %1110 = vmatpush1.bf16.msra.mxu0 0
  %1111 = vmatprep.subr.bf16.mxu0 0
  %1112 = vmatpush1.bf16.msra.mxu0 0
  %1113 = vmatprep.subr.bf16.mxu0 0
  %1114 = vmatpush1.bf16.msra.mxu0 0
  %1115 = vmatprep.subr.bf16.mxu0 0
  %1116 = vmatpush1.bf16.msra.mxu0 0
  %1117 = vmatprep.subr.bf16.mxu0 0
  %1118 = vmatpush1.bf16.msra.mxu0 0
  %1119 = vmatprep.subr.bf16.mxu0 0
  %1120 = vmatpush1.bf16.msra.mxu0 0
  %1121 = vmatprep.subr.bf16.mxu0 0
  %1122 = vmatpush1.bf16.msra.mxu0 0
  %1123 = vmatprep.subr.bf16.mxu0 0
  %1124 = vmatpush1.bf16.msra.mxu0 0
  %1125 = vmatprep.mubr.bf16.mxu0 0
  %1126 = vmatmul.mubr.bf16.gmra.mrb[0].mxu0 %v23
  %v1127 = vpop.f32.mrb[0].mxu0
  %v1128 = vadd.f32 0.0, %v1127
  %v1129 = vpop.f32.mrb[0].mxu0
  %v1130 = vadd.f32 0.0, %v1129
  %v1131 = vpop.f32.mrb[0].mxu0
  %v1132 = vadd.f32 0.0, %v1131
  %v1133 = vpop.f32.mrb[0].mxu0
  %v1134 = vadd.f32 0.0, %v1133
  %1135 = vdwg.mxu0
  %v1136 = vmax.f32 %v827, 0.0
  %v1137 = vmax.f32 %v829, 0.0
  %v1138 = vmax.f32 %v870, 0.0
  %v1139 = vmax.f32 %v872, 0.0
  %v1140 = vmax.f32 %v913, 0.0
  %v1141 = vmax.f32 %v915, 0.0
  %v1142 = vmax.f32 %v956, 0.0
  %v1143 = vmax.f32 %v958, 0.0
  %v1144 = vmax.f32 %v999, 0.0
  %v1145 = vmax.f32 %v1001, 0.0
  %v1146 = vmax.f32 %v1042, 0.0
  %v1147 = vmax.f32 %v1044, 0.0
  %v1148 = vmax.f32 %v1085, 0.0
  %v1149 = vmax.f32 %v1087, 0.0
  %v1150 = vmax.f32 %v1128, 0.0
  %v1151 = vmax.f32 %v1130, 0.0
  %v1152 = vmax.f32 %v831, 0.0
  %v1153 = vmax.f32 %v833, 0.0
  %v1154 = vmax.f32 %v874, 0.0
  %v1155 = vmax.f32 %v876, 0.0
  %v1156 = vmax.f32 %v917, 0.0
  %v1157 = vmax.f32 %v919, 0.0
  %v1158 = vmax.f32 %v960, 0.0
  %v1159 = vmax.f32 %v962, 0.0
  %v1160 = vmax.f32 %v1003, 0.0
  %v1161 = vmax.f32 %v1005, 0.0
  %v1162 = vmax.f32 %v1046, 0.0
  %v1163 = vmax.f32 %v1048, 0.0
  %v1164 = vmax.f32 %v1089, 0.0
  %v1165 = vmax.f32 %v1091, 0.0
  %v1166 = vmax.f32 %v1132, 0.0
  %v1167 = vmax.f32 %v1134, 0.0
  %v1168 = vpack.c.bf16 %v1152, %v1136
  %v1169 = vpack.c.bf16 %v1153, %v1137
  %v1170 = vpack.c.bf16 %v1154, %v1138
  %v1171 = vpack.c.bf16 %v1155, %v1139
  %v1172 = vpack.c.bf16 %v1156, %v1140
  %v1173 = vpack.c.bf16 %v1157, %v1141
  %v1174 = vpack.c.bf16 %v1158, %v1142
  %v1175 = vpack.c.bf16 %v1159, %v1143
  %v1176 = vpack.c.bf16 %v1160, %v1144
  %v1177 = vpack.c.bf16 %v1161, %v1145
  %v1178 = vpack.c.bf16 %v1162, %v1146
  %v1179 = vpack.c.bf16 %v1163, %v1147
  %v1180 = vpack.c.bf16 %v1164, %v1148
  %v1181 = vpack.c.bf16 %v1165, %v1149
  %v1182 = vpack.c.bf16 %v1166, %v1150
  %v1183 = vpack.c.bf16 %v1167, %v1151
  %v1184 = vld [vmem:[%s2] sm:$0xf]
  %v1185 = vld [vmem:[%s2 + $0x4] sm:$0xf]
  %v1186 = vld [vmem:[%s2 + $0x8] sm:$0xf]
  %v1187 = vld [vmem:[%s2 + $0xc] sm:$0xf]
  %v1188 = vld [vmem:[%s2 + $0x10] sm:$0xf]
  %v1189 = vld [vmem:[%s2 + $0x14] sm:$0xf]
  %v1190 = vld [vmem:[%s2 + $0x18] sm:$0xf]
  %v1191 = vld [vmem:[%s2 + $0x1c] sm:$0xf]
  %v1192 = vld [vmem:[%s2 + $0x20] sm:$0xf]
  %v1193 = vld [vmem:[%s2 + $0x24] sm:$0xf]
  %v1194 = vld [vmem:[%s2 + $0x28] sm:$0xf]
  %v1195 = vld [vmem:[%s2 + $0x2c] sm:$0xf]
  %v1196 = vld [vmem:[%s2 + $0x30] sm:$0xf]
  %v1197 = vld [vmem:[%s2 + $0x34] sm:$0xf]
  %v1198 = vld [vmem:[%s2 + $0x38] sm:$0xf]
  %v1199 = vld [vmem:[%s2 + $0x3c] sm:$0xf]
  %v1200 = vld [vmem:[%s2 + $0x40] sm:$0xf]
  %v1201 = vld [vmem:[%s2 + $0x44] sm:$0xf]
  %v1202 = vld [vmem:[%s2 + $0x48] sm:$0xf]
  %v1203 = vld [vmem:[%s2 + $0x4c] sm:$0xf]
  %v1204 = vld [vmem:[%s2 + $0x50] sm:$0xf]
  %v1205 = vld [vmem:[%s2 + $0x54] sm:$0xf]
  %v1206 = vld [vmem:[%s2 + $0x58] sm:$0xf]
  %v1207 = vld [vmem:[%s2 + $0x5c] sm:$0xf]
  %v1208 = vld [vmem:[%s2 + $0x60] sm:$0xf]
  %v1209 = vld [vmem:[%s2 + $0x64] sm:$0xf]
  %v1210 = vld [vmem:[%s2 + $0x68] sm:$0xf]
  %v1211 = vld [vmem:[%s2 + $0x6c] sm:$0xf]
  %v1212 = vld [vmem:[%s2 + $0x70] sm:$0xf]
  %v1213 = vld [vmem:[%s2 + $0x74] sm:$0xf]
  %v1214 = vld [vmem:[%s2 + $0x78] sm:$0xf]
  %v1215 = vld [vmem:[%s2 + $0x7c] sm:$0xf]
  %v1216 = vld [vmem:[%s2 + $0x80] sm:$0xf]
  %v1217 = vld [vmem:[%s2 + $0x84] sm:$0xf]
  %v1218 = vld [vmem:[%s2 + $0x88] sm:$0xf]
  %v1219 = vld [vmem:[%s2 + $0x8c] sm:$0xf]
  %v1220 = vld [vmem:[%s2 + $0x90] sm:$0xf]
  %v1221 = vld [vmem:[%s2 + $0x94] sm:$0xf]
  %v1222 = vld [vmem:[%s2 + $0x98] sm:$0xf]
  %v1223 = vld [vmem:[%s2 + $0x9c] sm:$0xf]
  %v1224 = vld [vmem:[%s2 + $0xa0] sm:$0xf]
  %v1225 = vld [vmem:[%s2 + $0xa4] sm:$0xf]
  %v1226 = vld [vmem:[%s2 + $0xa8] sm:$0xf]
  %v1227 = vld [vmem:[%s2 + $0xac] sm:$0xf]
  %v1228 = vld [vmem:[%s2 + $0xb0] sm:$0xf]
  %v1229 = vld [vmem:[%s2 + $0xb4] sm:$0xf]
  %v1230 = vld [vmem:[%s2 + $0xb8] sm:$0xf]
  %v1231 = vld [vmem:[%s2 + $0xbc] sm:$0xf]
  %v1232 = vld [vmem:[%s2 + $0xc0] sm:$0xf]
  %v1233 = vld [vmem:[%s2 + $0xc4] sm:$0xf]
  %v1234 = vld [vmem:[%s2 + $0xc8] sm:$0xf]
  %v1235 = vld [vmem:[%s2 + $0xcc] sm:$0xf]
  %v1236 = vld [vmem:[%s2 + $0xd0] sm:$0xf]
  %v1237 = vld [vmem:[%s2 + $0xd4] sm:$0xf]
  %v1238 = vld [vmem:[%s2 + $0xd8] sm:$0xf]
  %v1239 = vld [vmem:[%s2 + $0xdc] sm:$0xf]
  %v1240 = vld [vmem:[%s2 + $0xe0] sm:$0xf]
  %v1241 = vld [vmem:[%s2 + $0xe4] sm:$0xf]
  %v1242 = vld [vmem:[%s2 + $0xe8] sm:$0xf]
  %v1243 = vld [vmem:[%s2 + $0xec] sm:$0xf]
  %v1244 = vld [vmem:[%s2 + $0xf0] sm:$0xf]
  %v1245 = vld [vmem:[%s2 + $0xf4] sm:$0xf]
  %v1246 = vld [vmem:[%s2 + $0xf8] sm:$0xf]
  %v1247 = vld [vmem:[%s2 + $0xfc] sm:$0xf]
  %v1248 = vld [vmem:[%s2 + $0x100] sm:$0xf]
  %v1249 = vld [vmem:[%s2 + $0x104] sm:$0xf]
  %v1250 = vld [vmem:[%s2 + $0x108] sm:$0xf]
  %v1251 = vld [vmem:[%s2 + $0x10c] sm:$0xf]
  %v1252 = vld [vmem:[%s2 + $0x110] sm:$0xf]
  %v1253 = vld [vmem:[%s2 + $0x114] sm:$0xf]
  %v1254 = vld [vmem:[%s2 + $0x118] sm:$0xf]
  %v1255 = vld [vmem:[%s2 + $0x11c] sm:$0xf]
  %v1256 = vld [vmem:[%s2 + $0x120] sm:$0xf]
  %v1257 = vld [vmem:[%s2 + $0x124] sm:$0xf]
  %v1258 = vld [vmem:[%s2 + $0x128] sm:$0xf]
  %v1259 = vld [vmem:[%s2 + $0x12c] sm:$0xf]
  %v1260 = vld [vmem:[%s2 + $0x130] sm:$0xf]
  %v1261 = vld [vmem:[%s2 + $0x134] sm:$0xf]
  %v1262 = vld [vmem:[%s2 + $0x138] sm:$0xf]
  %v1263 = vld [vmem:[%s2 + $0x13c] sm:$0xf]
  %v1264 = vld [vmem:[%s2 + $0x140] sm:$0xf]
  %v1265 = vld [vmem:[%s2 + $0x144] sm:$0xf]
  %v1266 = vld [vmem:[%s2 + $0x148] sm:$0xf]
  %v1267 = vld [vmem:[%s2 + $0x14c] sm:$0xf]
  %v1268 = vld [vmem:[%s2 + $0x150] sm:$0xf]
  %v1269 = vld [vmem:[%s2 + $0x154] sm:$0xf]
  %v1270 = vld [vmem:[%s2 + $0x158] sm:$0xf]
  %v1271 = vld [vmem:[%s2 + $0x15c] sm:$0xf]
  %v1272 = vld [vmem:[%s2 + $0x160] sm:$0xf]
  %v1273 = vld [vmem:[%s2 + $0x164] sm:$0xf]
  %v1274 = vld [vmem:[%s2 + $0x168] sm:$0xf]
  %v1275 = vld [vmem:[%s2 + $0x16c] sm:$0xf]
  %v1276 = vld [vmem:[%s2 + $0x170] sm:$0xf]
  %v1277 = vld [vmem:[%s2 + $0x174] sm:$0xf]
  %v1278 = vld [vmem:[%s2 + $0x178] sm:$0xf]
  %v1279 = vld [vmem:[%s2 + $0x17c] sm:$0xf]
  %v1280 = vld [vmem:[%s2 + $0x180] sm:$0xf]
  %v1281 = vld [vmem:[%s2 + $0x184] sm:$0xf]
  %v1282 = vld [vmem:[%s2 + $0x188] sm:$0xf]
  %v1283 = vld [vmem:[%s2 + $0x18c] sm:$0xf]
  %v1284 = vld [vmem:[%s2 + $0x190] sm:$0xf]
  %v1285 = vld [vmem:[%s2 + $0x194] sm:$0xf]
  %v1286 = vld [vmem:[%s2 + $0x198] sm:$0xf]
  %v1287 = vld [vmem:[%s2 + $0x19c] sm:$0xf]
  %v1288 = vld [vmem:[%s2 + $0x1a0] sm:$0xf]
  %v1289 = vld [vmem:[%s2 + $0x1a4] sm:$0xf]
  %v1290 = vld [vmem:[%s2 + $0x1a8] sm:$0xf]
  %v1291 = vld [vmem:[%s2 + $0x1ac] sm:$0xf]
  %v1292 = vld [vmem:[%s2 + $0x1b0] sm:$0xf]
  %v1293 = vld [vmem:[%s2 + $0x1b4] sm:$0xf]
  %v1294 = vld [vmem:[%s2 + $0x1b8] sm:$0xf]
  %v1295 = vld [vmem:[%s2 + $0x1bc] sm:$0xf]
  %v1296 = vld [vmem:[%s2 + $0x1c0] sm:$0xf]
  %v1297 = vld [vmem:[%s2 + $0x1c4] sm:$0xf]
  %v1298 = vld [vmem:[%s2 + $0x1c8] sm:$0xf]
  %v1299 = vld [vmem:[%s2 + $0x1cc] sm:$0xf]
  %v1300 = vld [vmem:[%s2 + $0x1d0] sm:$0xf]
  %v1301 = vld [vmem:[%s2 + $0x1d4] sm:$0xf]
  %v1302 = vld [vmem:[%s2 + $0x1d8] sm:$0xf]
  %v1303 = vld [vmem:[%s2 + $0x1dc] sm:$0xf]
  %v1304 = vld [vmem:[%s2 + $0x1e0] sm:$0xf]
  %v1305 = vld [vmem:[%s2 + $0x1e4] sm:$0xf]
  %v1306 = vld [vmem:[%s2 + $0x1e8] sm:$0xf]
  %v1307 = vld [vmem:[%s2 + $0x1ec] sm:$0xf]
  %v1308 = vld [vmem:[%s2 + $0x1f0] sm:$0xf]
  %v1309 = vld [vmem:[%s2 + $0x1f4] sm:$0xf]
  %v1310 = vld [vmem:[%s2 + $0x1f8] sm:$0xf]
  %v1311 = vld [vmem:[%s2 + $0x1fc] sm:$0xf]
  %v1312 = vld [vmem:[%s2 + $0x200] sm:$0xf]
  %v1313 = vld [vmem:[%s2 + $0x204] sm:$0xf]
  %v1314 = vld [vmem:[%s2 + $0x208] sm:$0xf]
  %v1315 = vld [vmem:[%s2 + $0x20c] sm:$0xf]
  %v1316 = vld [vmem:[%s2 + $0x210] sm:$0xf]
  %v1317 = vld [vmem:[%s2 + $0x214] sm:$0xf]
  %v1318 = vld [vmem:[%s2 + $0x218] sm:$0xf]
  %v1319 = vld [vmem:[%s2 + $0x21c] sm:$0xf]
  %v1320 = vld [vmem:[%s2 + $0x220] sm:$0xf]
  %v1321 = vld [vmem:[%s2 + $0x224] sm:$0xf]
  %v1322 = vld [vmem:[%s2 + $0x228] sm:$0xf]
  %v1323 = vld [vmem:[%s2 + $0x22c] sm:$0xf]
  %v1324 = vld [vmem:[%s2 + $0x230] sm:$0xf]
  %v1325 = vld [vmem:[%s2 + $0x234] sm:$0xf]
  %v1326 = vld [vmem:[%s2 + $0x238] sm:$0xf]
  %v1327 = vld [vmem:[%s2 + $0x23c] sm:$0xf]
  %v1328 = vld [vmem:[%s2 + $0x240] sm:$0xf]
  %v1329 = vld [vmem:[%s2 + $0x244] sm:$0xf]
  %v1330 = vld [vmem:[%s2 + $0x248] sm:$0xf]
  %v1331 = vld [vmem:[%s2 + $0x24c] sm:$0xf]
  %v1332 = vld [vmem:[%s2 + $0x250] sm:$0xf]
  %v1333 = vld [vmem:[%s2 + $0x254] sm:$0xf]
  %v1334 = vld [vmem:[%s2 + $0x258] sm:$0xf]
  %v1335 = vld [vmem:[%s2 + $0x25c] sm:$0xf]
  %v1336 = vld [vmem:[%s2 + $0x260] sm:$0xf]
  %v1337 = vld [vmem:[%s2 + $0x264] sm:$0xf]
  %v1338 = vld [vmem:[%s2 + $0x268] sm:$0xf]
  %v1339 = vld [vmem:[%s2 + $0x26c] sm:$0xf]
  %v1340 = vld [vmem:[%s2 + $0x270] sm:$0xf]
  %v1341 = vld [vmem:[%s2 + $0x274] sm:$0xf]
  %v1342 = vld [vmem:[%s2 + $0x278] sm:$0xf]
  %v1343 = vld [vmem:[%s2 + $0x27c] sm:$0xf]
  %v1344 = vld [vmem:[%s2 + $0x280] sm:$0xf]
  %v1345 = vld [vmem:[%s2 + $0x284] sm:$0xf]
  %v1346 = vld [vmem:[%s2 + $0x288] sm:$0xf]
  %v1347 = vld [vmem:[%s2 + $0x28c] sm:$0xf]
  %v1348 = vld [vmem:[%s2 + $0x290] sm:$0xf]
  %v1349 = vld [vmem:[%s2 + $0x294] sm:$0xf]
  %v1350 = vld [vmem:[%s2 + $0x298] sm:$0xf]
  %v1351 = vld [vmem:[%s2 + $0x29c] sm:$0xf]
  %v1352 = vld [vmem:[%s2 + $0x2a0] sm:$0xf]
  %v1353 = vld [vmem:[%s2 + $0x2a4] sm:$0xf]
  %v1354 = vld [vmem:[%s2 + $0x2a8] sm:$0xf]
  %v1355 = vld [vmem:[%s2 + $0x2ac] sm:$0xf]
  %v1356 = vld [vmem:[%s2 + $0x2b0] sm:$0xf]
  %v1357 = vld [vmem:[%s2 + $0x2b4] sm:$0xf]
  %v1358 = vld [vmem:[%s2 + $0x2b8] sm:$0xf]
  %v1359 = vld [vmem:[%s2 + $0x2bc] sm:$0xf]
  %v1360 = vld [vmem:[%s2 + $0x2c0] sm:$0xf]
  %v1361 = vld [vmem:[%s2 + $0x2c4] sm:$0xf]
  %v1362 = vld [vmem:[%s2 + $0x2c8] sm:$0xf]
  %v1363 = vld [vmem:[%s2 + $0x2cc] sm:$0xf]
  %v1364 = vld [vmem:[%s2 + $0x2d0] sm:$0xf]
  %v1365 = vld [vmem:[%s2 + $0x2d4] sm:$0xf]
  %v1366 = vld [vmem:[%s2 + $0x2d8] sm:$0xf]
  %v1367 = vld [vmem:[%s2 + $0x2dc] sm:$0xf]
  %v1368 = vld [vmem:[%s2 + $0x2e0] sm:$0xf]
  %v1369 = vld [vmem:[%s2 + $0x2e4] sm:$0xf]
  %v1370 = vld [vmem:[%s2 + $0x2e8] sm:$0xf]
  %v1371 = vld [vmem:[%s2 + $0x2ec] sm:$0xf]
  %v1372 = vld [vmem:[%s2 + $0x2f0] sm:$0xf]
  %v1373 = vld [vmem:[%s2 + $0x2f4] sm:$0xf]
  %v1374 = vld [vmem:[%s2 + $0x2f8] sm:$0xf]
  %v1375 = vld [vmem:[%s2 + $0x2fc] sm:$0xf]
  %v1376 = vld [vmem:[%s2 + $0x300] sm:$0xf]
  %v1377 = vld [vmem:[%s2 + $0x304] sm:$0xf]
  %v1378 = vld [vmem:[%s2 + $0x308] sm:$0xf]
  %v1379 = vld [vmem:[%s2 + $0x30c] sm:$0xf]
  %v1380 = vld [vmem:[%s2 + $0x310] sm:$0xf]
  %v1381 = vld [vmem:[%s2 + $0x314] sm:$0xf]
  %v1382 = vld [vmem:[%s2 + $0x318] sm:$0xf]
  %v1383 = vld [vmem:[%s2 + $0x31c] sm:$0xf]
  %v1384 = vld [vmem:[%s2 + $0x320] sm:$0xf]
  %v1385 = vld [vmem:[%s2 + $0x324] sm:$0xf]
  %v1386 = vld [vmem:[%s2 + $0x328] sm:$0xf]
  %v1387 = vld [vmem:[%s2 + $0x32c] sm:$0xf]
  %v1388 = vld [vmem:[%s2 + $0x330] sm:$0xf]
  %v1389 = vld [vmem:[%s2 + $0x334] sm:$0xf]
  %v1390 = vld [vmem:[%s2 + $0x338] sm:$0xf]
  %v1391 = vld [vmem:[%s2 + $0x33c] sm:$0xf]
  %v1392 = vld [vmem:[%s2 + $0x340] sm:$0xf]
  %v1393 = vld [vmem:[%s2 + $0x344] sm:$0xf]
  %v1394 = vld [vmem:[%s2 + $0x348] sm:$0xf]
  %v1395 = vld [vmem:[%s2 + $0x34c] sm:$0xf]
  %v1396 = vld [vmem:[%s2 + $0x350] sm:$0xf]
  %v1397 = vld [vmem:[%s2 + $0x354] sm:$0xf]
  %v1398 = vld [vmem:[%s2 + $0x358] sm:$0xf]
  %v1399 = vld [vmem:[%s2 + $0x35c] sm:$0xf]
  %v1400 = vld [vmem:[%s2 + $0x360] sm:$0xf]
  %v1401 = vld [vmem:[%s2 + $0x364] sm:$0xf]
  %v1402 = vld [vmem:[%s2 + $0x368] sm:$0xf]
  %v1403 = vld [vmem:[%s2 + $0x36c] sm:$0xf]
  %v1404 = vld [vmem:[%s2 + $0x370] sm:$0xf]
  %v1405 = vld [vmem:[%s2 + $0x374] sm:$0xf]
  %v1406 = vld [vmem:[%s2 + $0x378] sm:$0xf]
  %v1407 = vld [vmem:[%s2 + $0x37c] sm:$0xf]
  %v1408 = vld [vmem:[%s2 + $0x380] sm:$0xf]
  %v1409 = vld [vmem:[%s2 + $0x384] sm:$0xf]
  %v1410 = vld [vmem:[%s2 + $0x388] sm:$0xf]
  %v1411 = vld [vmem:[%s2 + $0x38c] sm:$0xf]
  %v1412 = vld [vmem:[%s2 + $0x390] sm:$0xf]
  %v1413 = vld [vmem:[%s2 + $0x394] sm:$0xf]
  %v1414 = vld [vmem:[%s2 + $0x398] sm:$0xf]
  %v1415 = vld [vmem:[%s2 + $0x39c] sm:$0xf]
  %v1416 = vld [vmem:[%s2 + $0x3a0] sm:$0xf]
  %v1417 = vld [vmem:[%s2 + $0x3a4] sm:$0xf]
  %v1418 = vld [vmem:[%s2 + $0x3a8] sm:$0xf]
  %v1419 = vld [vmem:[%s2 + $0x3ac] sm:$0xf]
  %v1420 = vld [vmem:[%s2 + $0x3b0] sm:$0xf]
  %v1421 = vld [vmem:[%s2 + $0x3b4] sm:$0xf]
  %v1422 = vld [vmem:[%s2 + $0x3b8] sm:$0xf]
  %v1423 = vld [vmem:[%s2 + $0x3bc] sm:$0xf]
  %v1424 = vld [vmem:[%s2 + $0x3c0] sm:$0xf]
  %v1425 = vld [vmem:[%s2 + $0x3c4] sm:$0xf]
  %v1426 = vld [vmem:[%s2 + $0x3c8] sm:$0xf]
  %v1427 = vld [vmem:[%s2 + $0x3cc] sm:$0xf]
  %v1428 = vld [vmem:[%s2 + $0x3d0] sm:$0xf]
  %v1429 = vld [vmem:[%s2 + $0x3d4] sm:$0xf]
  %v1430 = vld [vmem:[%s2 + $0x3d8] sm:$0xf]
  %v1431 = vld [vmem:[%s2 + $0x3dc] sm:$0xf]
  %v1432 = vld [vmem:[%s2 + $0x3e0] sm:$0xf]
  %v1433 = vld [vmem:[%s2 + $0x3e4] sm:$0xf]
  %v1434 = vld [vmem:[%s2 + $0x3e8] sm:$0xf]
  %v1435 = vld [vmem:[%s2 + $0x3ec] sm:$0xf]
  %v1436 = vld [vmem:[%s2 + $0x3f0] sm:$0xf]
  %v1437 = vld [vmem:[%s2 + $0x3f4] sm:$0xf]
  %v1438 = vld [vmem:[%s2 + $0x3f8] sm:$0xf]
  %v1439 = vld [vmem:[%s2 + $0x3fc] sm:$0xf]
  %v1696 = vunpack.c.l.b16 %v1184
  %v1697 = vunpack.c.l.b16 %v1185
  %v1698 = vunpack.c.l.b16 %v1186
  %v1699 = vunpack.c.l.b16 %v1187
  %v1700 = vunpack.c.l.b16 %v1188
  %v1701 = vunpack.c.l.b16 %v1189
  %v1702 = vunpack.c.l.b16 %v1190
  %v1703 = vunpack.c.l.b16 %v1191
  %v1704 = vunpack.c.l.b16 %v1192
  %v1705 = vunpack.c.l.b16 %v1193
  %v1706 = vunpack.c.l.b16 %v1194
  %v1707 = vunpack.c.l.b16 %v1195
  %v1708 = vunpack.c.l.b16 %v1196
  %v1709 = vunpack.c.l.b16 %v1197
  %v1710 = vunpack.c.l.b16 %v1198
  %v1711 = vunpack.c.l.b16 %v1199
  %v1712 = vunpack.c.l.b16 %v1200
  %v1713 = vunpack.c.l.b16 %v1201
  %v1714 = vunpack.c.l.b16 %v1202
  %v1715 = vunpack.c.l.b16 %v1203
  %v1716 = vunpack.c.l.b16 %v1204
  %v1717 = vunpack.c.l.b16 %v1205
  %v1718 = vunpack.c.l.b16 %v1206
  %v1719 = vunpack.c.l.b16 %v1207
  %v1720 = vunpack.c.l.b16 %v1208
  %v1721 = vunpack.c.l.b16 %v1209
  %v1722 = vunpack.c.l.b16 %v1210
  %v1723 = vunpack.c.l.b16 %v1211
  %v1724 = vunpack.c.l.b16 %v1212
  %v1725 = vunpack.c.l.b16 %v1213
  %v1726 = vunpack.c.l.b16 %v1214
  %v1727 = vunpack.c.l.b16 %v1215
  %v1728 = vunpack.c.l.b16 %v1216
  %v1729 = vunpack.c.l.b16 %v1217
  %v1730 = vunpack.c.l.b16 %v1218
  %v1731 = vunpack.c.l.b16 %v1219
  %v1732 = vunpack.c.l.b16 %v1220
  %v1733 = vunpack.c.l.b16 %v1221
  %v1734 = vunpack.c.l.b16 %v1222
  %v1735 = vunpack.c.l.b16 %v1223
  %v1736 = vunpack.c.l.b16 %v1224
  %v1737 = vunpack.c.l.b16 %v1225
  %v1738 = vunpack.c.l.b16 %v1226
  %v1739 = vunpack.c.l.b16 %v1227
  %v1740 = vunpack.c.l.b16 %v1228
  %v1741 = vunpack.c.l.b16 %v1229
  %v1742 = vunpack.c.l.b16 %v1230
  %v1743 = vunpack.c.l.b16 %v1231
  %v1744 = vunpack.c.l.b16 %v1232
  %v1745 = vunpack.c.l.b16 %v1233
  %v1746 = vunpack.c.l.b16 %v1234
  %v1747 = vunpack.c.l.b16 %v1235
  %v1748 = vunpack.c.l.b16 %v1236
  %v1749 = vunpack.c.l.b16 %v1237
  %v1750 = vunpack.c.l.b16 %v1238
  %v1751 = vunpack.c.l.b16 %v1239
  %v1752 = vunpack.c.l.b16 %v1240
  %v1753 = vunpack.c.l.b16 %v1241
  %v1754 = vunpack.c.l.b16 %v1242
  %v1755 = vunpack.c.l.b16 %v1243
  %v1756 = vunpack.c.l.b16 %v1244
  %v1757 = vunpack.c.l.b16 %v1245
  %v1758 = vunpack.c.l.b16 %v1246
  %v1759 = vunpack.c.l.b16 %v1247
  %v1760 = vunpack.c.l.b16 %v1248
  %v1761 = vunpack.c.l.b16 %v1249
  %v1762 = vunpack.c.l.b16 %v1250
  %v1763 = vunpack.c.l.b16 %v1251
  %v1764 = vunpack.c.l.b16 %v1252
  %v1765 = vunpack.c.l.b16 %v1253
  %v1766 = vunpack.c.l.b16 %v1254
  %v1767 = vunpack.c.l.b16 %v1255
  %v1768 = vunpack.c.l.b16 %v1256
  %v1769 = vunpack.c.l.b16 %v1257
  %v1770 = vunpack.c.l.b16 %v1258
  %v1771 = vunpack.c.l.b16 %v1259
  %v1772 = vunpack.c.l.b16 %v1260
  %v1773 = vunpack.c.l.b16 %v1261
  %v1774 = vunpack.c.l.b16 %v1262
  %v1775 = vunpack.c.l.b16 %v1263
  %v1776 = vunpack.c.l.b16 %v1264
  %v1777 = vunpack.c.l.b16 %v1265
  %v1778 = vunpack.c.l.b16 %v1266
  %v1779 = vunpack.c.l.b16 %v1267
  %v1780 = vunpack.c.l.b16 %v1268
  %v1781 = vunpack.c.l.b16 %v1269
  %v1782 = vunpack.c.l.b16 %v1270
  %v1783 = vunpack.c.l.b16 %v1271
  %v1784 = vunpack.c.l.b16 %v1272
  %v1785 = vunpack.c.l.b16 %v1273
  %v1786 = vunpack.c.l.b16 %v1274
  %v1787 = vunpack.c.l.b16 %v1275
  %v1788 = vunpack.c.l.b16 %v1276
  %v1789 = vunpack.c.l.b16 %v1277
  %v1790 = vunpack.c.l.b16 %v1278
  %v1791 = vunpack.c.l.b16 %v1279
  %v1792 = vunpack.c.l.b16 %v1280
  %v1793 = vunpack.c.l.b16 %v1281
  %v1794 = vunpack.c.l.b16 %v1282
  %v1795 = vunpack.c.l.b16 %v1283
  %v1796 = vunpack.c.l.b16 %v1284
  %v1797 = vunpack.c.l.b16 %v1285
  %v1798 = vunpack.c.l.b16 %v1286
  %v1799 = vunpack.c.l.b16 %v1287
  %v1800 = vunpack.c.l.b16 %v1288
  %v1801 = vunpack.c.l.b16 %v1289
  %v1802 = vunpack.c.l.b16 %v1290
  %v1803 = vunpack.c.l.b16 %v1291
  %v1804 = vunpack.c.l.b16 %v1292
  %v1805 = vunpack.c.l.b16 %v1293
  %v1806 = vunpack.c.l.b16 %v1294
  %v1807 = vunpack.c.l.b16 %v1295
  %v1808 = vunpack.c.l.b16 %v1296
  %v1809 = vunpack.c.l.b16 %v1297
  %v1810 = vunpack.c.l.b16 %v1298
  %v1811 = vunpack.c.l.b16 %v1299
  %v1812 = vunpack.c.l.b16 %v1300
  %v1813 = vunpack.c.l.b16 %v1301
  %v1814 = vunpack.c.l.b16 %v1302
  %v1815 = vunpack.c.l.b16 %v1303
  %v1816 = vunpack.c.l.b16 %v1304
  %v1817 = vunpack.c.l.b16 %v1305
  %v1818 = vunpack.c.l.b16 %v1306
  %v1819 = vunpack.c.l.b16 %v1307
  %v1820 = vunpack.c.l.b16 %v1308
  %v1821 = vunpack.c.l.b16 %v1309
  %v1822 = vunpack.c.l.b16 %v1310
  %v1823 = vunpack.c.l.b16 %v1311
  %v1824 = vunpack.c.l.b16 %v1312
  %v1825 = vunpack.c.l.b16 %v1313
  %v1826 = vunpack.c.l.b16 %v1314
  %v1827 = vunpack.c.l.b16 %v1315
  %v1828 = vunpack.c.l.b16 %v1316
  %v1829 = vunpack.c.l.b16 %v1317
  %v1830 = vunpack.c.l.b16 %v1318
  %v1831 = vunpack.c.l.b16 %v1319
  %v1832 = vunpack.c.l.b16 %v1320
  %v1833 = vunpack.c.l.b16 %v1321
  %v1834 = vunpack.c.l.b16 %v1322
  %v1835 = vunpack.c.l.b16 %v1323
  %v1836 = vunpack.c.l.b16 %v1324
  %v1837 = vunpack.c.l.b16 %v1325
  %v1838 = vunpack.c.l.b16 %v1326
  %v1839 = vunpack.c.l.b16 %v1327
  %v1840 = vunpack.c.l.b16 %v1328
  %v1841 = vunpack.c.l.b16 %v1329
  %v1842 = vunpack.c.l.b16 %v1330
  %v1843 = vunpack.c.l.b16 %v1331
  %v1844 = vunpack.c.l.b16 %v1332
  %v1845 = vunpack.c.l.b16 %v1333
  %v1846 = vunpack.c.l.b16 %v1334
  %v1847 = vunpack.c.l.b16 %v1335
  %v1848 = vunpack.c.l.b16 %v1336
  %v1849 = vunpack.c.l.b16 %v1337
  %v1850 = vunpack.c.l.b16 %v1338
  %v1851 = vunpack.c.l.b16 %v1339
  %v1852 = vunpack.c.l.b16 %v1340
  %v1853 = vunpack.c.l.b16 %v1341
  %v1854 = vunpack.c.l.b16 %v1342
  %v1855 = vunpack.c.l.b16 %v1343
  %v1856 = vunpack.c.l.b16 %v1344
  %v1857 = vunpack.c.l.b16 %v1345
  %v1858 = vunpack.c.l.b16 %v1346
  %v1859 = vunpack.c.l.b16 %v1347
  %v1860 = vunpack.c.l.b16 %v1348
  %v1861 = vunpack.c.l.b16 %v1349
  %v1862 = vunpack.c.l.b16 %v1350
  %v1863 = vunpack.c.l.b16 %v1351
  %v1864 = vunpack.c.l.b16 %v1352
  %v1865 = vunpack.c.l.b16 %v1353
  %v1866 = vunpack.c.l.b16 %v1354
  %v1867 = vunpack.c.l.b16 %v1355
  %v1868 = vunpack.c.l.b16 %v1356
  %v1869 = vunpack.c.l.b16 %v1357
  %v1870 = vunpack.c.l.b16 %v1358
  %v1871 = vunpack.c.l.b16 %v1359
  %v1872 = vunpack.c.l.b16 %v1360
  %v1873 = vunpack.c.l.b16 %v1361
  %v1874 = vunpack.c.l.b16 %v1362
  %v1875 = vunpack.c.l.b16 %v1363
  %v1876 = vunpack.c.l.b16 %v1364
  %v1877 = vunpack.c.l.b16 %v1365
  %v1878 = vunpack.c.l.b16 %v1366
  %v1879 = vunpack.c.l.b16 %v1367
  %v1880 = vunpack.c.l.b16 %v1368
  %v1881 = vunpack.c.l.b16 %v1369
  %v1882 = vunpack.c.l.b16 %v1370
  %v1883 = vunpack.c.l.b16 %v1371
  %v1884 = vunpack.c.l.b16 %v1372
  %v1885 = vunpack.c.l.b16 %v1373
  %v1886 = vunpack.c.l.b16 %v1374
  %v1887 = vunpack.c.l.b16 %v1375
  %v1888 = vunpack.c.l.b16 %v1376
  %v1889 = vunpack.c.l.b16 %v1377
  %v1890 = vunpack.c.l.b16 %v1378
  %v1891 = vunpack.c.l.b16 %v1379
  %v1892 = vunpack.c.l.b16 %v1380
  %v1893 = vunpack.c.l.b16 %v1381
  %v1894 = vunpack.c.l.b16 %v1382
  %v1895 = vunpack.c.l.b16 %v1383
  %v1896 = vunpack.c.l.b16 %v1384
  %v1897 = vunpack.c.l.b16 %v1385
  %v1898 = vunpack.c.l.b16 %v1386
  %v1899 = vunpack.c.l.b16 %v1387
  %v1900 = vunpack.c.l.b16 %v1388
  %v1901 = vunpack.c.l.b16 %v1389
  %v1902 = vunpack.c.l.b16 %v1390
  %v1903 = vunpack.c.l.b16 %v1391
  %v1904 = vunpack.c.l.b16 %v1392
  %v1905 = vunpack.c.l.b16 %v1393
  %v1906 = vunpack.c.l.b16 %v1394
  %v1907 = vunpack.c.l.b16 %v1395
  %v1908 = vunpack.c.l.b16 %v1396
  %v1909 = vunpack.c.l.b16 %v1397
  %v1910 = vunpack.c.l.b16 %v1398
  %v1911 = vunpack.c.l.b16 %v1399
  %v1912 = vunpack.c.l.b16 %v1400
  %v1913 = vunpack.c.l.b16 %v1401
  %v1914 = vunpack.c.l.b16 %v1402
  %v1915 = vunpack.c.l.b16 %v1403
  %v1916 = vunpack.c.l.b16 %v1404
  %v1917 = vunpack.c.l.b16 %v1405
  %v1918 = vunpack.c.l.b16 %v1406
  %v1919 = vunpack.c.l.b16 %v1407
  %v1920 = vunpack.c.l.b16 %v1408
  %v1921 = vunpack.c.l.b16 %v1409
  %v1922 = vunpack.c.l.b16 %v1410
  %v1923 = vunpack.c.l.b16 %v1411
  %v1924 = vunpack.c.l.b16 %v1412
  %v1925 = vunpack.c.l.b16 %v1413
  %v1926 = vunpack.c.l.b16 %v1414
  %v1927 = vunpack.c.l.b16 %v1415
  %v1928 = vunpack.c.l.b16 %v1416
  %v1929 = vunpack.c.l.b16 %v1417
  %v1930 = vunpack.c.l.b16 %v1418
  %v1931 = vunpack.c.l.b16 %v1419
  %v1932 = vunpack.c.l.b16 %v1420
  %v1933 = vunpack.c.l.b16 %v1421
  %v1934 = vunpack.c.l.b16 %v1422
  %v1935 = vunpack.c.l.b16 %v1423
  %v1936 = vunpack.c.l.b16 %v1424
  %v1937 = vunpack.c.l.b16 %v1425
  %v1938 = vunpack.c.l.b16 %v1426
  %v1939 = vunpack.c.l.b16 %v1427
  %v1940 = vunpack.c.l.b16 %v1428
  %v1941 = vunpack.c.l.b16 %v1429
  %v1942 = vunpack.c.l.b16 %v1430
  %v1943 = vunpack.c.l.b16 %v1431
  %v1944 = vunpack.c.l.b16 %v1432
  %v1945 = vunpack.c.l.b16 %v1433
  %v1946 = vunpack.c.l.b16 %v1434
  %v1947 = vunpack.c.l.b16 %v1435
  %v1948 = vunpack.c.l.b16 %v1436
  %v1949 = vunpack.c.l.b16 %v1437
  %v1950 = vunpack.c.l.b16 %v1438
  %v1951 = vunpack.c.l.b16 %v1439
  %v1952 = vpack.c.b16 %v1697, %v1696
  %v1953 = vpack.c.b16 %v1699, %v1698
  %v1954 = vpack.c.b16 %v1701, %v1700
  %v1955 = vpack.c.b16 %v1703, %v1702
  %v1956 = vpack.c.b16 %v1705, %v1704
  %v1957 = vpack.c.b16 %v1707, %v1706
  %v1958 = vpack.c.b16 %v1709, %v1708
  %v1959 = vpack.c.b16 %v1711, %v1710
  %v1960 = vpack.c.b16 %v1713, %v1712
  %v1961 = vpack.c.b16 %v1715, %v1714
  %v1962 = vpack.c.b16 %v1717, %v1716
  %v1963 = vpack.c.b16 %v1719, %v1718
  %v1964 = vpack.c.b16 %v1721, %v1720
  %v1965 = vpack.c.b16 %v1723, %v1722
  %v1966 = vpack.c.b16 %v1725, %v1724
  %v1967 = vpack.c.b16 %v1727, %v1726
  %v1968 = vpack.c.b16 %v1729, %v1728
  %v1969 = vpack.c.b16 %v1731, %v1730
  %v1970 = vpack.c.b16 %v1733, %v1732
  %v1971 = vpack.c.b16 %v1735, %v1734
  %v1972 = vpack.c.b16 %v1737, %v1736
  %v1973 = vpack.c.b16 %v1739, %v1738
  %v1974 = vpack.c.b16 %v1741, %v1740
  %v1975 = vpack.c.b16 %v1743, %v1742
  %v1976 = vpack.c.b16 %v1745, %v1744
  %v1977 = vpack.c.b16 %v1747, %v1746
  %v1978 = vpack.c.b16 %v1749, %v1748
  %v1979 = vpack.c.b16 %v1751, %v1750
  %v1980 = vpack.c.b16 %v1753, %v1752
  %v1981 = vpack.c.b16 %v1755, %v1754
  %v1982 = vpack.c.b16 %v1757, %v1756
  %v1983 = vpack.c.b16 %v1759, %v1758
  %v1984 = vpack.c.b16 %v1761, %v1760
  %v1985 = vpack.c.b16 %v1763, %v1762
  %v1986 = vpack.c.b16 %v1765, %v1764
  %v1987 = vpack.c.b16 %v1767, %v1766
  %v1988 = vpack.c.b16 %v1769, %v1768
  %v1989 = vpack.c.b16 %v1771, %v1770
  %v1990 = vpack.c.b16 %v1773, %v1772
  %v1991 = vpack.c.b16 %v1775, %v1774
  %v1992 = vpack.c.b16 %v1777, %v1776
  %v1993 = vpack.c.b16 %v1779, %v1778
  %v1994 = vpack.c.b16 %v1781, %v1780
  %v1995 = vpack.c.b16 %v1783, %v1782
  %v1996 = vpack.c.b16 %v1785, %v1784
  %v1997 = vpack.c.b16 %v1787, %v1786
  %v1998 = vpack.c.b16 %v1789, %v1788
  %v1999 = vpack.c.b16 %v1791, %v1790
  %v2000 = vpack.c.b16 %v1793, %v1792
  %v2001 = vpack.c.b16 %v1795, %v1794
  %v2002 = vpack.c.b16 %v1797, %v1796
  %v2003 = vpack.c.b16 %v1799, %v1798
  %v2004 = vpack.c.b16 %v1801, %v1800
  %v2005 = vpack.c.b16 %v1803, %v1802
  %v2006 = vpack.c.b16 %v1805, %v1804
  %v2007 = vpack.c.b16 %v1807, %v1806
  %v2008 = vpack.c.b16 %v1809, %v1808
  %v2009 = vpack.c.b16 %v1811, %v1810
  %v2010 = vpack.c.b16 %v1813, %v1812
  %v2011 = vpack.c.b16 %v1815, %v1814
  %v2012 = vpack.c.b16 %v1817, %v1816
  %v2013 = vpack.c.b16 %v1819, %v1818
  %v2014 = vpack.c.b16 %v1821, %v1820
  %v2015 = vpack.c.b16 %v1823, %v1822
  %v2016 = vpack.c.b16 %v1825, %v1824
  %v2017 = vpack.c.b16 %v1827, %v1826
  %v2018 = vpack.c.b16 %v1829, %v1828
  %v2019 = vpack.c.b16 %v1831, %v1830
  %v2020 = vpack.c.b16 %v1833, %v1832
  %v2021 = vpack.c.b16 %v1835, %v1834
  %v2022 = vpack.c.b16 %v1837, %v1836
  %v2023 = vpack.c.b16 %v1839, %v1838
  %v2024 = vpack.c.b16 %v1841, %v1840
  %v2025 = vpack.c.b16 %v1843, %v1842
  %v2026 = vpack.c.b16 %v1845, %v1844
  %v2027 = vpack.c.b16 %v1847, %v1846
  %v2028 = vpack.c.b16 %v1849, %v1848
  %v2029 = vpack.c.b16 %v1851, %v1850
  %v2030 = vpack.c.b16 %v1853, %v1852
  %v2031 = vpack.c.b16 %v1855, %v1854
  %v2032 = vpack.c.b16 %v1857, %v1856
  %v2033 = vpack.c.b16 %v1859, %v1858
  %v2034 = vpack.c.b16 %v1861, %v1860
  %v2035 = vpack.c.b16 %v1863, %v1862
  %v2036 = vpack.c.b16 %v1865, %v1864
  %v2037 = vpack.c.b16 %v1867, %v1866
  %v2038 = vpack.c.b16 %v1869, %v1868
  %v2039 = vpack.c.b16 %v1871, %v1870
  %v2040 = vpack.c.b16 %v1873, %v1872
  %v2041 = vpack.c.b16 %v1875, %v1874
  %v2042 = vpack.c.b16 %v1877, %v1876
  %v2043 = vpack.c.b16 %v1879, %v1878
  %v2044 = vpack.c.b16 %v1881, %v1880
  %v2045 = vpack.c.b16 %v1883, %v1882
  %v2046 = vpack.c.b16 %v1885, %v1884
  %v2047 = vpack.c.b16 %v1887, %v1886
  %v2048 = vpack.c.b16 %v1889, %v1888
  %v2049 = vpack.c.b16 %v1891, %v1890
  %v2050 = vpack.c.b16 %v1893, %v1892
  %v2051 = vpack.c.b16 %v1895, %v1894
  %v2052 = vpack.c.b16 %v1897, %v1896
  %v2053 = vpack.c.b16 %v1899, %v1898
  %v2054 = vpack.c.b16 %v1901, %v1900
  %v2055 = vpack.c.b16 %v1903, %v1902
  %v2056 = vpack.c.b16 %v1905, %v1904
  %v2057 = vpack.c.b16 %v1907, %v1906
  %v2058 = vpack.c.b16 %v1909, %v1908
  %v2059 = vpack.c.b16 %v1911, %v1910
  %v2060 = vpack.c.b16 %v1913, %v1912
  %v2061 = vpack.c.b16 %v1915, %v1914
  %v2062 = vpack.c.b16 %v1917, %v1916
  %v2063 = vpack.c.b16 %v1919, %v1918
  %v2064 = vpack.c.b16 %v1921, %v1920
  %v2065 = vpack.c.b16 %v1923, %v1922
  %v2066 = vpack.c.b16 %v1925, %v1924
  %v2067 = vpack.c.b16 %v1927, %v1926
  %v2068 = vpack.c.b16 %v1929, %v1928
  %v2069 = vpack.c.b16 %v1931, %v1930
  %v2070 = vpack.c.b16 %v1933, %v1932
  %v2071 = vpack.c.b16 %v1935, %v1934
  %v2072 = vpack.c.b16 %v1937, %v1936
  %v2073 = vpack.c.b16 %v1939, %v1938
  %v2074 = vpack.c.b16 %v1941, %v1940
  %v2075 = vpack.c.b16 %v1943, %v1942
  %v2076 = vpack.c.b16 %v1945, %v1944
  %v2077 = vpack.c.b16 %v1947, %v1946
  %v2078 = vpack.c.b16 %v1949, %v1948
  %v2079 = vpack.c.b16 %v1951, %v1950
  %2208 = vmatprep.subr.bf16.mxu0 0
  %2209 = vmatpush1.bf16.msra.mxu0 %v1952
  %2210 = vmatprep.subr.bf16.mxu0 0
  %2211 = vmatpush1.bf16.msra.mxu0 %v1953
  %2212 = vmatprep.subr.bf16.mxu0 0
  %2213 = vmatpush1.bf16.msra.mxu0 %v1954
  %2214 = vmatprep.subr.bf16.mxu0 0
  %2215 = vmatpush1.bf16.msra.mxu0 %v1955
  %2216 = vmatprep.subr.bf16.mxu0 0
  %2217 = vmatpush1.bf16.msra.mxu0 %v1956
  %2218 = vmatprep.subr.bf16.mxu0 0
  %2219 = vmatpush1.bf16.msra.mxu0 %v1957
  %2220 = vmatprep.subr.bf16.mxu0 0
  %2221 = vmatpush1.bf16.msra.mxu0 %v1958
  %2222 = vmatprep.subr.bf16.mxu0 0
  %2223 = vmatpush1.bf16.msra.mxu0 %v1959
  %2224 = vmatprep.subr.bf16.mxu0 0
  %2225 = vmatpush1.bf16.msra.mxu0 %v1960
  %2226 = vmatprep.subr.bf16.mxu0 0
  %2227 = vmatpush1.bf16.msra.mxu0 %v1961
  %2228 = vmatprep.subr.bf16.mxu0 0
  %2229 = vmatpush1.bf16.msra.mxu0 %v1962
  %2230 = vmatprep.subr.bf16.mxu0 0
  %2231 = vmatpush1.bf16.msra.mxu0 %v1963
  %2232 = vmatprep.subr.bf16.mxu0 0
  %2233 = vmatpush1.bf16.msra.mxu0 %v1964
  %2234 = vmatprep.subr.bf16.mxu0 0
  %2235 = vmatpush1.bf16.msra.mxu0 %v1965
  %2236 = vmatprep.subr.bf16.mxu0 0
  %2237 = vmatpush1.bf16.msra.mxu0 %v1966
  %2238 = vmatprep.subr.bf16.mxu0 0
  %2239 = vmatpush1.bf16.msra.mxu0 %v1967
  %2240 = vmatprep.mubr.bf16.mxu0 %v1169
  %2241 = vmatmul.mubr.bf16.gmra.mrb[0].mxu0 %v1168
  %v2242 = vpop.f32.mrb[0].mxu0
  %v2243 = vadd.f32 %v21, %v2242
  %v2244 = vpop.f32.mrb[0].mxu0
  %v2245 = vpop.f32.mrb[0].mxu0
  %v2246 = vadd.f32 %v22, %v2245
  %v2247 = vpop.f32.mrb[0].mxu0
  %2248 = vdwg.mxu0
  %2249 = vmatprep.subr.bf16.mxu0 0
  %2250 = vmatpush1.bf16.msra.mxu0 %v1968
  %2251 = vmatprep.subr.bf16.mxu0 0
  %2252 = vmatpush1.bf16.msra.mxu0 %v1969
  %2253 = vmatprep.subr.bf16.mxu0 0
  %2254 = vmatpush1.bf16.msra.mxu0 %v1970
  %2255 = vmatprep.subr.bf16.mxu0 0
  %2256 = vmatpush1.bf16.msra.mxu0 %v1971
  %2257 = vmatprep.subr.bf16.mxu0 0
  %2258 = vmatpush1.bf16.msra.mxu0 %v1972
  %2259 = vmatprep.subr.bf16.mxu0 0
  %2260 = vmatpush1.bf16.msra.mxu0 %v1973
  %2261 = vmatprep.subr.bf16.mxu0 0
  %2262 = vmatpush1.bf16.msra.mxu0 %v1974
  %2263 = vmatprep.subr.bf16.mxu0 0
  %2264 = vmatpush1.bf16.msra.mxu0 %v1975
  %2265 = vmatprep.subr.bf16.mxu0 0
  %2266 = vmatpush1.bf16.msra.mxu0 %v1976
  %2267 = vmatprep.subr.bf16.mxu0 0
  %2268 = vmatpush1.bf16.msra.mxu0 %v1977
  %2269 = vmatprep.subr.bf16.mxu0 0
  %2270 = vmatpush1.bf16.msra.mxu0 %v1978
  %2271 = vmatprep.subr.bf16.mxu0 0
  %2272 = vmatpush1.bf16.msra.mxu0 %v1979
  %2273 = vmatprep.subr.bf16.mxu0 0
  %2274 = vmatpush1.bf16.msra.mxu0 %v1980
  %2275 = vmatprep.subr.bf16.mxu0 0
  %2276 = vmatpush1.bf16.msra.mxu0 %v1981
  %2277 = vmatprep.subr.bf16.mxu0 0
  %2278 = vmatpush1.bf16.msra.mxu0 %v1982
  %2279 = vmatprep.subr.bf16.mxu0 0
  %2280 = vmatpush1.bf16.msra.mxu0 %v1983
  %2281 = vmatprep.mubr.bf16.mxu0 %v1171
  %2282 = vmatmul.mubr.bf16.gmra.mrb[0].mxu0 %v1170
  %v2283 = vpop.f32.mrb[0].mxu0
  %v2284 = vadd.f32 %v2243, %v2283
  %v2285 = vpop.f32.mrb[0].mxu0
  %v2286 = vpop.f32.mrb[0].mxu0
  %v2287 = vadd.f32 %v2246, %v2286
  %v2288 = vpop.f32.mrb[0].mxu0
  %2289 = vdwg.mxu0
  %2290 = vmatprep.subr.bf16.mxu0 0
  %2291 = vmatpush1.bf16.msra.mxu0 %v1984
  %2292 = vmatprep.subr.bf16.mxu0 0
  %2293 = vmatpush1.bf16.msra.mxu0 %v1985
  %2294 = vmatprep.subr.bf16.mxu0 0
  %2295 = vmatpush1.bf16.msra.mxu0 %v1986
  %2296 = vmatprep.subr.bf16.mxu0 0
  %2297 = vmatpush1.bf16.msra.mxu0 %v1987
  %2298 = vmatprep.subr.bf16.mxu0 0
  %2299 = vmatpush1.bf16.msra.mxu0 %v1988
  %2300 = vmatprep.subr.bf16.mxu0 0
  %2301 = vmatpush1.bf16.msra.mxu0 %v1989
  %2302 = vmatprep.subr.bf16.mxu0 0
  %2303 = vmatpush1.bf16.msra.mxu0 %v1990
  %2304 = vmatprep.subr.bf16.mxu0 0
  %2305 = vmatpush1.bf16.msra.mxu0 %v1991
  %2306 = vmatprep.subr.bf16.mxu0 0
  %2307 = vmatpush1.bf16.msra.mxu0 %v1992
  %2308 = vmatprep.subr.bf16.mxu0 0
  %2309 = vmatpush1.bf16.msra.mxu0 %v1993
  %2310 = vmatprep.subr.bf16.mxu0 0
  %2311 = vmatpush1.bf16.msra.mxu0 %v1994
  %2312 = vmatprep.subr.bf16.mxu0 0
  %2313 = vmatpush1.bf16.msra.mxu0 %v1995
  %2314 = vmatprep.subr.bf16.mxu0 0
  %2315 = vmatpush1.bf16.msra.mxu0 %v1996
  %2316 = vmatprep.subr.bf16.mxu0 0
  %2317 = vmatpush1.bf16.msra.mxu0 %v1997
  %2318 = vmatprep.subr.bf16.mxu0 0
  %2319 = vmatpush1.bf16.msra.mxu0 %v1998
  %2320 = vmatprep.subr.bf16.mxu0 0
  %2321 = vmatpush1.bf16.msra.mxu0 %v1999
  %2322 = vmatprep.mubr.bf16.mxu0 %v1173
  %2323 = vmatmul.mubr.bf16.gmra.mrb[0].mxu0 %v1172
  %v2324 = vpop.f32.mrb[0].mxu0
  %v2325 = vadd.f32 %v2284, %v2324
  %v2326 = vpop.f32.mrb[0].mxu0
  %v2327 = vpop.f32.mrb[0].mxu0
  %v2328 = vadd.f32 %v2287, %v2327
  %v2329 = vpop.f32.mrb[0].mxu0
  %2330 = vdwg.mxu0
  %2331 = vmatprep.subr.bf16.mxu0 0
  %2332 = vmatpush1.bf16.msra.mxu0 %v2000
  %2333 = vmatprep.subr.bf16.mxu0 0
  %2334 = vmatpush1.bf16.msra.mxu0 %v2001
  %2335 = vmatprep.subr.bf16.mxu0 0
  %2336 = vmatpush1.bf16.msra.mxu0 %v2002
  %2337 = vmatprep.subr.bf16.mxu0 0
  %2338 = vmatpush1.bf16.msra.mxu0 %v2003
  %2339 = vmatprep.subr.bf16.mxu0 0
  %2340 = vmatpush1.bf16.msra.mxu0 %v2004
  %2341 = vmatprep.subr.bf16.mxu0 0
  %2342 = vmatpush1.bf16.msra.mxu0 %v2005
  %2343 = vmatprep.subr.bf16.mxu0 0
  %2344 = vmatpush1.bf16.msra.mxu0 %v2006
  %2345 = vmatprep.subr.bf16.mxu0 0
  %2346 = vmatpush1.bf16.msra.mxu0 %v2007
  %2347 = vmatprep.subr.bf16.mxu0 0
  %2348 = vmatpush1.bf16.msra.mxu0 %v2008
  %2349 = vmatprep.subr.bf16.mxu0 0
  %2350 = vmatpush1.bf16.msra.mxu0 %v2009
  %2351 = vmatprep.subr.bf16.mxu0 0
  %2352 = vmatpush1.bf16.msra.mxu0 %v2010
  %2353 = vmatprep.subr.bf16.mxu0 0
  %2354 = vmatpush1.bf16.msra.mxu0 %v2011
  %2355 = vmatprep.subr.bf16.mxu0 0
  %2356 = vmatpush1.bf16.msra.mxu0 %v2012
  %2357 = vmatprep.subr.bf16.mxu0 0
  %2358 = vmatpush1.bf16.msra.mxu0 %v2013
  %2359 = vmatprep.subr.bf16.mxu0 0
  %2360 = vmatpush1.bf16.msra.mxu0 %v2014
  %2361 = vmatprep.subr.bf16.mxu0 0
  %2362 = vmatpush1.bf16.msra.mxu0 %v2015
  %2363 = vmatprep.mubr.bf16.mxu0 %v1175
  %2364 = vmatmul.mubr.bf16.gmra.mrb[0].mxu0 %v1174
  %v2365 = vpop.f32.mrb[0].mxu0
  %v2366 = vadd.f32 %v2325, %v2365
  %v2367 = vpop.f32.mrb[0].mxu0
  %v2368 = vpop.f32.mrb[0].mxu0
  %v2369 = vadd.f32 %v2328, %v2368
  %v2370 = vpop.f32.mrb[0].mxu0
  %2371 = vdwg.mxu0
  %2372 = vmatprep.subr.bf16.mxu0 0
  %2373 = vmatpush1.bf16.msra.mxu0 %v2016
  %2374 = vmatprep.subr.bf16.mxu0 0
  %2375 = vmatpush1.bf16.msra.mxu0 %v2017
  %2376 = vmatprep.subr.bf16.mxu0 0
  %2377 = vmatpush1.bf16.msra.mxu0 %v2018
  %2378 = vmatprep.subr.bf16.mxu0 0
  %2379 = vmatpush1.bf16.msra.mxu0 %v2019
  %2380 = vmatprep.subr.bf16.mxu0 0
  %2381 = vmatpush1.bf16.msra.mxu0 %v2020
  %2382 = vmatprep.subr.bf16.mxu0 0
  %2383 = vmatpush1.bf16.msra.mxu0 %v2021
  %2384 = vmatprep.subr.bf16.mxu0 0
  %2385 = vmatpush1.bf16.msra.mxu0 %v2022
  %2386 = vmatprep.subr.bf16.mxu0 0
  %2387 = vmatpush1.bf16.msra.mxu0 %v2023
  %2388 = vmatprep.subr.bf16.mxu0 0
  %2389 = vmatpush1.bf16.msra.mxu0 %v2024
  %2390 = vmatprep.subr.bf16.mxu0 0
  %2391 = vmatpush1.bf16.msra.mxu0 %v2025
  %2392 = vmatprep.subr.bf16.mxu0 0
  %2393 = vmatpush1.bf16.msra.mxu0 %v2026
  %2394 = vmatprep.subr.bf16.mxu0 0
  %2395 = vmatpush1.bf16.msra.mxu0 %v2027
  %2396 = vmatprep.subr.bf16.mxu0 0
  %2397 = vmatpush1.bf16.msra.mxu0 %v2028
  %2398 = vmatprep.subr.bf16.mxu0 0
  %2399 = vmatpush1.bf16.msra.mxu0 %v2029
  %2400 = vmatprep.subr.bf16.mxu0 0
  %2401 = vmatpush1.bf16.msra.mxu0 %v2030
  %2402 = vmatprep.subr.bf16.mxu0 0
  %2403 = vmatpush1.bf16.msra.mxu0 %v2031
  %2404 = vmatprep.mubr.bf16.mxu0 %v1177
  %2405 = vmatmul.mubr.bf16.gmra.mrb[0].mxu0 %v1176
  %v2406 = vpop.f32.mrb[0].mxu0
  %v2407 = vadd.f32 %v2366, %v2406
  %v2408 = vpop.f32.mrb[0].mxu0
  %v2409 = vpop.f32.mrb[0].mxu0
  %v2410 = vadd.f32 %v2369, %v2409
  %v2411 = vpop.f32.mrb[0].mxu0
  %2412 = vdwg.mxu0
  %2413 = vmatprep.subr.bf16.mxu0 0
  %2414 = vmatpush1.bf16.msra.mxu0 %v2032
  %2415 = vmatprep.subr.bf16.mxu0 0
  %2416 = vmatpush1.bf16.msra.mxu0 %v2033
  %2417 = vmatprep.subr.bf16.mxu0 0
  %2418 = vmatpush1.bf16.msra.mxu0 %v2034
  %2419 = vmatprep.subr.bf16.mxu0 0
  %2420 = vmatpush1.bf16.msra.mxu0 %v2035
  %2421 = vmatprep.subr.bf16.mxu0 0
  %2422 = vmatpush1.bf16.msra.mxu0 %v2036
  %2423 = vmatprep.subr.bf16.mxu0 0
  %2424 = vmatpush1.bf16.msra.mxu0 %v2037
  %2425 = vmatprep.subr.bf16.mxu0 0
  %2426 = vmatpush1.bf16.msra.mxu0 %v2038
  %2427 = vmatprep.subr.bf16.mxu0 0
  %2428 = vmatpush1.bf16.msra.mxu0 %v2039
  %2429 = vmatprep.subr.bf16.mxu0 0
  %2430 = vmatpush1.bf16.msra.mxu0 %v2040
  %2431 = vmatprep.subr.bf16.mxu0 0
  %2432 = vmatpush1.bf16.msra.mxu0 %v2041
  %2433 = vmatprep.subr.bf16.mxu0 0
  %2434 = vmatpush1.bf16.msra.mxu0 %v2042
  %2435 = vmatprep.subr.bf16.mxu0 0
  %2436 = vmatpush1.bf16.msra.mxu0 %v2043
  %2437 = vmatprep.subr.bf16.mxu0 0
  %2438 = vmatpush1.bf16.msra.mxu0 %v2044
  %2439 = vmatprep.subr.bf16.mxu0 0
  %2440 = vmatpush1.bf16.msra.mxu0 %v2045
  %2441 = vmatprep.subr.bf16.mxu0 0
  %2442 = vmatpush1.bf16.msra.mxu0 %v2046
  %2443 = vmatprep.subr.bf16.mxu0 0
  %2444 = vmatpush1.bf16.msra.mxu0 %v2047
  %2445 = vmatprep.mubr.bf16.mxu0 %v1179
  %2446 = vmatmul.mubr.bf16.gmra.mrb[0].mxu0 %v1178
  %v2447 = vpop.f32.mrb[0].mxu0
  %v2448 = vadd.f32 %v2407, %v2447
  %v2449 = vpop.f32.mrb[0].mxu0
  %v2450 = vpop.f32.mrb[0].mxu0
  %v2451 = vadd.f32 %v2410, %v2450
  %v2452 = vpop.f32.mrb[0].mxu0
  %2453 = vdwg.mxu0
  %2454 = vmatprep.subr.bf16.mxu0 0
  %2455 = vmatpush1.bf16.msra.mxu0 %v2048
  %2456 = vmatprep.subr.bf16.mxu0 0
  %2457 = vmatpush1.bf16.msra.mxu0 %v2049
  %2458 = vmatprep.subr.bf16.mxu0 0
  %2459 = vmatpush1.bf16.msra.mxu0 %v2050
  %2460 = vmatprep.subr.bf16.mxu0 0
  %2461 = vmatpush1.bf16.msra.mxu0 %v2051
  %2462 = vmatprep.subr.bf16.mxu0 0
  %2463 = vmatpush1.bf16.msra.mxu0 %v2052
  %2464 = vmatprep.subr.bf16.mxu0 0
  %2465 = vmatpush1.bf16.msra.mxu0 %v2053
  %2466 = vmatprep.subr.bf16.mxu0 0
  %2467 = vmatpush1.bf16.msra.mxu0 %v2054
  %2468 = vmatprep.subr.bf16.mxu0 0
  %2469 = vmatpush1.bf16.msra.mxu0 %v2055
  %2470 = vmatprep.subr.bf16.mxu0 0
  %2471 = vmatpush1.bf16.msra.mxu0 %v2056
  %2472 = vmatprep.subr.bf16.mxu0 0
  %2473 = vmatpush1.bf16.msra.mxu0 %v2057
  %2474 = vmatprep.subr.bf16.mxu0 0
  %2475 = vmatpush1.bf16.msra.mxu0 %v2058
  %2476 = vmatprep.subr.bf16.mxu0 0
  %2477 = vmatpush1.bf16.msra.mxu0 %v2059
  %2478 = vmatprep.subr.bf16.mxu0 0
  %2479 = vmatpush1.bf16.msra.mxu0 %v2060
  %2480 = vmatprep.subr.bf16.mxu0 0
  %2481 = vmatpush1.bf16.msra.mxu0 %v2061
  %2482 = vmatprep.subr.bf16.mxu0 0
  %2483 = vmatpush1.bf16.msra.mxu0 %v2062
  %2484 = vmatprep.subr.bf16.mxu0 0
  %2485 = vmatpush1.bf16.msra.mxu0 %v2063
  %2486 = vmatprep.mubr.bf16.mxu0 %v1181
  %2487 = vmatmul.mubr.bf16.gmra.mrb[0].mxu0 %v1180
  %v2488 = vpop.f32.mrb[0].mxu0
  %v2489 = vadd.f32 %v2448, %v2488
  %v2490 = vpop.f32.mrb[0].mxu0
  %v2491 = vpop.f32.mrb[0].mxu0
  %v2492 = vadd.f32 %v2451, %v2491
  %v2493 = vpop.f32.mrb[0].mxu0
  %2494 = vdwg.mxu0
  %2495 = vmatprep.subr.bf16.mxu0 0
  %2496 = vmatpush1.bf16.msra.mxu0 %v2064
  %2497 = vmatprep.subr.bf16.mxu0 0
  %2498 = vmatpush1.bf16.msra.mxu0 %v2065
  %2499 = vmatprep.subr.bf16.mxu0 0
  %2500 = vmatpush1.bf16.msra.mxu0 %v2066
  %2501 = vmatprep.subr.bf16.mxu0 0
  %2502 = vmatpush1.bf16.msra.mxu0 %v2067
  %2503 = vmatprep.subr.bf16.mxu0 0
  %2504 = vmatpush1.bf16.msra.mxu0 %v2068
  %2505 = vmatprep.subr.bf16.mxu0 0
  %2506 = vmatpush1.bf16.msra.mxu0 %v2069
  %2507 = vmatprep.subr.bf16.mxu0 0
  %2508 = vmatpush1.bf16.msra.mxu0 %v2070
  %2509 = vmatprep.subr.bf16.mxu0 0
  %2510 = vmatpush1.bf16.msra.mxu0 %v2071
  %2511 = vmatprep.subr.bf16.mxu0 0
  %2512 = vmatpush1.bf16.msra.mxu0 %v2072
  %2513 = vmatprep.subr.bf16.mxu0 0
  %2514 = vmatpush1.bf16.msra.mxu0 %v2073
  %2515 = vmatprep.subr.bf16.mxu0 0
  %2516 = vmatpush1.bf16.msra.mxu0 %v2074
  %2517 = vmatprep.subr.bf16.mxu0 0
  %2518 = vmatpush1.bf16.msra.mxu0 %v2075
  %2519 = vmatprep.subr.bf16.mxu0 0
  %2520 = vmatpush1.bf16.msra.mxu0 %v2076
  %2521 = vmatprep.subr.bf16.mxu0 0
  %2522 = vmatpush1.bf16.msra.mxu0 %v2077
  %2523 = vmatprep.subr.bf16.mxu0 0
  %2524 = vmatpush1.bf16.msra.mxu0 %v2078
  %2525 = vmatprep.subr.bf16.mxu0 0
  %2526 = vmatpush1.bf16.msra.mxu0 %v2079
  %2527 = vmatprep.mubr.bf16.mxu0 %v1183
  %2528 = vmatmul.mubr.bf16.gmra.mrb[0].mxu0 %v1182
  %v2529 = vpop.f32.mrb[0].mxu0
  %v2530 = vadd.f32 %v2489, %v2529
  %v2531 = vpop.f32.mrb[0].mxu0
  %v2532 = vpop.f32.mrb[0].mxu0
  %v2533 = vadd.f32 %v2492, %v2532
  %v2534 = vpop.f32.mrb[0].mxu0
  %2535 = vdwg.mxu0
  %v2536 = vld [vmem:[%s3] sm:$0x1]
  %v2537 = vld [vmem:[%s4] sm:$0x1]
  %2538 = vadd.xlane.f32.xlu0 %v2530
  %v2539 = vpop.xlane.xlu0 %2538
  %2540 = vadd.xlane.f32.xlu0 %v2533
  %v2541 = vpop.xlane.xlu0 %2540
  %v2542 = vrcp.pop 128.0
  %v2543 = vmul.f32 %v2539, %v2542
  %v2544 = vmul.f32 %v2541, %v2542
  %v2545 = vsub.f32 %v2530, %v2543
  %v2546 = vsub.f32 %v2533, %v2544
  %v2547 = vmul.f32 %v2545, %v2545
  %v2548 = vmul.f32 %v2546, %v2546
  %2549 = vadd.xlane.f32.xlu0 %v2547
  %v2550 = vpop.xlane.xlu0 %2549
  %2551 = vadd.xlane.f32.xlu0 %v2548
  %v2552 = vpop.xlane.xlu0 %2551
  %v2553 = vmul.f32 %v2550, %v2542
  %v2554 = vmul.f32 %v2552, %v2542
  %v2555 = vadd.f32 %v2553, 1e-05
  %v2556 = vadd.f32 %v2554, 1e-05
  %v2557 = vrsqrt.pop %v2555
  %v2558 = vrsqrt.pop %v2556
  %v2559 = vmul.f32 %v2545, %v2557
  %v2560 = vmul.f32 %v2546, %v2558
  %v2562 = vlaneseq
  %v2563 = vshrl.u32 %v2562, 7
  %v2564 = vsub.s32 0, %v2563
  %v2565 = vrot.slane %v2536, %v2564
  %v2567 = vmul.f32 %v2559, %v2565
  %v2568 = vmul.f32 %v2560, %v2565
  %v2570 = vlaneseq
  %v2571 = vshrl.u32 %v2570, 7
  %v2572 = vsub.s32 0, %v2571
  %v2573 = vrot.slane %v2537, %v2572
  %v2575 = vadd.f32 %v2567, %v2573
  %v2576 = vadd.f32 %v2568, %v2573
  %2577 = vst [vmem:[%s5] sm:$0xff] %v2575
  %2578 = vst [vmem:[%s5 + $0x8] sm:$0xff] %v2576
  // Predicated region
  $region22: #{poem_model_forward.6} parent=0 // pred_check
    _
  $region23: #{poem_model_forward.6} parent=0 // pred_check_branch
    %2580 = sbr.rel (0) target = $region25
  $region24: #{poem_model_forward.6} parent=0 // pred_region
    _
  $region25: #{poem_model_forward.6} parent=0 // pred_fallthru
    _
  // Predicated region
  $region26: #{poem_model_forward.6} parent=0 // pred_check
    _
  $region27: #{poem_model_forward.6} parent=0 // pred_check_branch
    %2582 = sbr.rel (0) target = $region29
  $region28: #{poem_model_forward.6} parent=0 // pred_region
    _
  $region29: #{poem_model_forward.6} parent=0 // pred_fallthru
    _

</llo_original>
